<compile_context>
chip_gen: v6e
topology: v6e:2x2x1
jax: 0.10.0
libtpu: 0.0.40
codegen_flags: <defaults>
</compile_context>

<pallas_src>
import functools

import jax
import jax.numpy as jnp
from jax.experimental import pallas as pl
from jax.experimental.pallas import tpu as pltpu  # noqa: F401  (TPU backend assumed)

# ---------------- config (small, synthetic) ----------------
VOCAB = 64
BLOCK_SIZE = 16          # max positions for the positional embedding
N_EMBD = 32
N_HEAD = 4
N_LAYER = 2
HEAD_DIM = N_EMBD // N_HEAD


# ---------------- the single fused Pallas kernel ----------------

def _fused_encoder_kernel(*refs, B, T, L, H, Dh, past_len):
    """Whole transformer forward in one kernel invocation (no grid).

    refs = [x, stacked per-layer weights..., final-LN + lm_head,
            (past_k, past_v if past_len > 0)], then outputs [logits, kv_new].
    """
    D = H * Dh
    has_past = past_len > 0
    n_in = 18 if has_past else 16

    (x_ref,
     ln1_g_ref, ln1_b_ref, w_qkv_ref, b_qkv_ref, w_proj_ref, b_proj_ref,
     ln2_g_ref, ln2_b_ref, w_fc_ref, b_fc_ref, w_out_ref, b_out_ref,
     lnf_g_ref, lnf_b_ref, lm_head_ref) = refs[:16]
    if has_past:
        past_k_ref, past_v_ref = refs[16:18]         # (L*H, B, P, Dh) each
    logits_ref, kv_ref = refs[n_in], refs[n_in + 1]

    scale = 1.0 / (Dh ** 0.5)
    Tk = past_len + T

    # causal mask (with KV-cache offset), hoisted out of all loops
    qpos = jax.lax.broadcasted_iota(jnp.int32, (B, T, Tk), 1) + past_len
    kpos = jax.lax.broadcasted_iota(jnp.int32, (B, T, Tk), 2)
    causal_ok = kpos <= qpos                                     # (B, T, Tk)

    def layer_norm(v, g, b):                                     # f32 stats
        mu = jnp.mean(v, axis=-1, keepdims=True)
        var = jnp.mean(jnp.square(v - mu), axis=-1, keepdims=True)
        return (v - mu) * jax.lax.rsqrt(var + 1e-5) * g + b

    x = x_ref[...]                                               # (B*T, D)

    for li in range(L):                                          # static unroll
        # ---------------- attention block ----------------
        h1 = layer_norm(x, ln1_g_ref[li], ln1_b_ref[li])
        qkv = jnp.dot(h1, w_qkv_ref[li],
                      preferred_element_type=jnp.float32) + b_qkv_ref[li]

        # new K / V for the cache, written once per layer in row layout
        kv_ref[li, 0] = qkv[:, D:2 * D]
        kv_ref[li, 1] = qkv[:, 2 * D:3 * D]

        head_outs = []
        for hh in range(H):                                      # static slices
            q_h = qkv[:, hh * Dh:(hh + 1) * Dh].reshape(B, T, Dh)
            k_h = qkv[:, D + hh * Dh:D + (hh + 1) * Dh].reshape(B, T, Dh)
            v_h = qkv[:, 2 * D + hh * Dh:2 * D + (hh + 1) * Dh].reshape(B, T, Dh)
            if has_past:
                pk = past_k_ref[li * H + hh]                     # (B, P, Dh)
                pv = past_v_ref[li * H + hh]
                k_h = jnp.concatenate([pk, k_h], axis=1)         # (B, Tk, Dh)
                v_h = jnp.concatenate([pv, v_h], axis=1)

            s = jnp.einsum("bqd,bkd->bqk", q_h, k_h,
                           preferred_element_type=jnp.float32) * scale
            s = jnp.where(causal_ok, s, -1e30)
            m = jnp.max(s, axis=-1, keepdims=True)
            p = jnp.exp(s - m)
            denom = jnp.sum(p, axis=-1, keepdims=True)
            p = p * pl.reciprocal(denom, approx=True)            # divide on EUP
            o_h = jnp.einsum("bqk,bkd->bqd", p, v_h,
                             preferred_element_type=jnp.float32)
            head_outs.append(o_h.reshape(B * T, Dh))
        attn = jnp.concatenate(head_outs, axis=-1)               # (B*T, D)

        x = x + (jnp.dot(attn, w_proj_ref[li],
                         preferred_element_type=jnp.float32) + b_proj_ref[li])

        # ---------------- MLP block ----------------
        h2 = layer_norm(x, ln2_g_ref[li], ln2_b_ref[li])
        ff = jnp.dot(h2, w_fc_ref[li],
                     preferred_element_type=jnp.float32) + b_fc_ref[li]
        c = 0.7978845608028654                                   # GPT tanh-GELU
        ff = 0.5 * ff * (1.0 + jnp.tanh(c * (ff + 0.044715 * ff * ff * ff)))
        x = x + (jnp.dot(ff, w_out_ref[li],
                         preferred_element_type=jnp.float32) + b_out_ref[li])

    # ---------------- final LN + lm_head ----------------
    xf = layer_norm(x, lnf_g_ref[...], lnf_b_ref[...])
    logits_ref[...] = jnp.dot(xf, lm_head_ref[...],
                              preferred_element_type=jnp.float32)


# ---------------- parameters (deterministic, synthetic, pre-stacked) ----------------

def init_params(key):
    keys = iter(jax.random.split(key, 8))

    def nrm(shape, scale=0.02):
        return scale * jax.random.normal(next(keys), shape, dtype=jnp.float32)

    D, L = N_EMBD, N_LAYER
    # Per-layer weights are stacked on a leading layer axis so one kernel input
    # carries all layers; 1-D vectors are stored (L, 1, dim) so that in-kernel
    # ref[li] loads a broadcast-ready (1, dim) row.
    return {
        "wte": nrm((VOCAB, D)),
        "wpe": nrm((BLOCK_SIZE, D)),
        "ln1_g": jnp.ones((L, 1, D), jnp.float32),
        "ln1_b": jnp.zeros((L, 1, D), jnp.float32),
        "w_qkv": nrm((L, D, 3 * D)),
        "b_qkv": jnp.zeros((L, 1, 3 * D), jnp.float32),
        "w_proj": nrm((L, D, D)),
        "b_proj": jnp.zeros((L, 1, D), jnp.float32),
        "ln2_g": jnp.ones((L, 1, D), jnp.float32),
        "ln2_b": jnp.zeros((L, 1, D), jnp.float32),
        "w_fc": nrm((L, D, 4 * D)),
        "b_fc": jnp.zeros((L, 1, 4 * D), jnp.float32),
        "w_out": nrm((L, 4 * D, D)),
        "b_out": jnp.zeros((L, 1, D), jnp.float32),
        "ln_f_g": jnp.ones((1, D), jnp.float32),
        "ln_f_b": jnp.zeros((1, D), jnp.float32),
        "lm_head": nrm((D, VOCAB)),
    }


# ---------------- encoder forward (use_cache=True semantics) ----------------

def gpt_coarse_encoder(params, idx, past_kv=None, use_cache=True):
    """Returns (logits, present_kv) exactly like encoder(idx, past_kv, use_cache=True)."""
    B, T = idx.shape
    past_len = 0 if past_kv is None else int(past_kv[0][0].shape[2])
    assert past_len + T <= BLOCK_SIZE, "past_len + T exceeds positional table"
    # NOTE: past_len is shape-derived (static) -> one retrace per distinct
    # cache length; acceptable here, would be prefetched scalars in a real
    # decode loop.

    # TODO(synk): token-id embedding gather has no clean block-level Pallas
    # form at this size; it stays as a single fused XLA gather + add.
    tok = jnp.take(params["wte"], idx, axis=0)                   # (B, T, D)
    pos = params["wpe"][past_len:past_len + T]                   # (T, D)
    x = (tok + pos[None, :, :]).reshape(B * T, N_EMBD)

    inputs = [x,
              params["ln1_g"], params["ln1_b"],
              params["w_qkv"], params["b_qkv"],
              params["w_proj"], params["b_proj"],
              params["ln2_g"], params["ln2_b"],
              params["w_fc"], params["b_fc"],
              params["w_out"], params["b_out"],
              params["ln_f_g"], params["ln_f_b"], params["lm_head"]]
    if past_len > 0:
        # (L, B, H, P, Dh) -> (L*H, B, P, Dh): one static leading index per
        # (layer, head) inside the kernel.
        pk = jnp.stack([kv[0] for kv in past_kv]).astype(jnp.float32)
        pv = jnp.stack([kv[1] for kv in past_kv]).astype(jnp.float32)
        pk = pk.transpose(0, 2, 1, 3, 4).reshape(
            N_LAYER * N_HEAD, B, past_len, HEAD_DIM)
        pv = pv.transpose(0, 2, 1, 3, 4).reshape(
            N_LAYER * N_HEAD, B, past_len, HEAD_DIM)
        inputs += [pk, pv]

    kernel = functools.partial(_fused_encoder_kernel, B=B, T=T, L=N_LAYER,
                               H=N_HEAD, Dh=HEAD_DIM, past_len=past_len)
    # One fused pallas_call: no grid, whole arrays resident in VMEM.
    logits, kv_new = pl.pallas_call(
        kernel,
        out_shape=(
            jax.ShapeDtypeStruct((B * T, VOCAB), jnp.float32),
            jax.ShapeDtypeStruct((N_LAYER, 2, B * T, N_EMBD), jnp.float32),
        ),
    )(*inputs)

    logits = logits.reshape(B, T, VOCAB)
    present = []
    for li in range(N_LAYER):
        k_new = kv_new[li, 0].reshape(B, T, N_HEAD, HEAD_DIM).transpose(0, 2, 1, 3)
        v_new = kv_new[li, 1].reshape(B, T, N_HEAD, HEAD_DIM).transpose(0, 2, 1, 3)
        if past_kv is not None:
            pk0, pv0 = past_kv[li]
            k_new = jnp.concatenate([pk0.astype(jnp.float32), k_new], axis=2)
            v_new = jnp.concatenate([pv0.astype(jnp.float32), v_new], axis=2)
        present.append((k_new, v_new))
    if use_cache:
        return logits, tuple(present)
    return logits


def make_encoder(params):
    """Jitted encoder so the glue ops fuse around the single Pallas kernel."""
    @functools.partial(jax.jit, static_argnames=("use_cache",))
    def encoder(idx, past_kv=None, use_cache=True):
        return gpt_coarse_encoder(params, idx, past_kv, use_cache)
    return encoder


class CoarseEncoderModel:
    """JAX/Pallas counterpart of the PyTorch wrapper module."""

    def __init__(self, encoder):
        self.encoder = encoder

    def __call__(self, idx, past_kv=None):
        return self.encoder(idx, past_kv=past_kv, use_cache=True)


# ---------------- main ----------------
if __name__ == "__main__":
    key = jax.random.PRNGKey(0)
    pkey, ikey, ikey2 = jax.random.split(key, 3)

    params = init_params(pkey)
    model = CoarseEncoderModel(make_encoder(params))

    B, T = 2, 8
    idx = jax.random.randint(ikey, (B, T), 0, VOCAB, dtype=jnp.int32)

    # prefill (no cache)
    logits, present_kv = model(idx, past_kv=None)
    jax.block_until_ready(logits)
    jax.block_until_ready(present_kv)
    assert logits.shape == (B, T, VOCAB)
    assert len(present_kv) == N_LAYER
    assert present_kv[0][0].shape == (B, N_HEAD, T, HEAD_DIM)

    # decode step reusing the KV cache (exercises the past_kv path)
    T2 = 4
    idx2 = jax.random.randint(ikey2, (B, T2), 0, VOCAB, dtype=jnp.int32)
    logits2, present_kv2 = model(idx2, past_kv=present_kv)
    jax.block_until_ready(logits2)
    jax.block_until_ready(present_kv2)
    assert logits2.shape == (B, T2, VOCAB)
    assert present_kv2[0][0].shape == (B, N_HEAD, T + T2, HEAD_DIM)

    print("KERNEL_OK")
</pallas_src>

<mosaic_0001>
module attributes {stable_mosaic.version = 11 : i64} {
  func.func @_fused_encoder_kernel(%arg0: memref<16x32xf32, #tpu.memory_space<vmem>>, %arg1: memref<2x1x32xf32, #tpu.memory_space<vmem>>, %arg2: memref<2x1x32xf32, #tpu.memory_space<vmem>>, %arg3: memref<2x32x96xf32, #tpu.memory_space<vmem>>, %arg4: memref<2x1x96xf32, #tpu.memory_space<vmem>>, %arg5: memref<2x32x32xf32, #tpu.memory_space<vmem>>, %arg6: memref<2x1x32xf32, #tpu.memory_space<vmem>>, %arg7: memref<2x1x32xf32, #tpu.memory_space<vmem>>, %arg8: memref<2x1x32xf32, #tpu.memory_space<vmem>>, %arg9: memref<2x32x128xf32, #tpu.memory_space<vmem>>, %arg10: memref<2x1x128xf32, #tpu.memory_space<vmem>>, %arg11: memref<2x128x32xf32, #tpu.memory_space<vmem>>, %arg12: memref<2x1x32xf32, #tpu.memory_space<vmem>>, %arg13: memref<1x32xf32, #tpu.memory_space<vmem>>, %arg14: memref<1x32xf32, #tpu.memory_space<vmem>>, %arg15: memref<32x64xf32, #tpu.memory_space<vmem>>, %arg16: memref<16x64xf32, #tpu.memory_space<vmem>>, %arg17: memref<2x2x16x32xf32, #tpu.memory_space<vmem>>) attributes {dimension_semantics = [], scalar_prefetch = 0 : i64, scratch_operands = 0 : i64, tpu.core_type = #tpu.core_type<tc>} {
    %0 = tpu.iota {dimensions = array<i32: 1>} : vector<2x8x8xi32>
    %c0_i32 = arith.constant 0 : i32
    %1 = vector.broadcast %c0_i32 : i32 to vector<2x8x8xi32>
    %2 = arith.addi %0, %1 : vector<2x8x8xi32>
    %3 = tpu.iota {dimensions = array<i32: 2>} : vector<2x8x8xi32>
    %4 = arith.cmpi sle, %3, %2 : vector<2x8x8xi32>
    %c0 = arith.constant 0 : index
    %c0_0 = arith.constant 0 : index
    %5 = vector.load %arg0[%c0, %c0_0] : memref<16x32xf32, #tpu.memory_space<vmem>>, vector<16x32xf32>
    %c0_1 = arith.constant 0 : index
    %c0_2 = arith.constant 0 : index
    %c0_3 = arith.constant 0 : index
    %6 = vector.load %arg1[%c0_1, %c0_2, %c0_3] : memref<2x1x32xf32, #tpu.memory_space<vmem>>, vector<1x1x32xf32>
    %7 = vector.shape_cast %6 : vector<1x1x32xf32> to vector<1x32xf32>
    %c0_4 = arith.constant 0 : index
    %c0_5 = arith.constant 0 : index
    %c0_6 = arith.constant 0 : index
    %8 = vector.load %arg2[%c0_4, %c0_5, %c0_6] : memref<2x1x32xf32, #tpu.memory_space<vmem>>, vector<1x1x32xf32>
    %9 = vector.shape_cast %8 : vector<1x1x32xf32> to vector<1x32xf32>
    %cst = arith.constant dense<0.000000e+00> : vector<16xf32>
    %10 = vector.multi_reduction <add>, %5, %cst [1] : vector<16x32xf32> to vector<16xf32>
    %11 = vector.shape_cast %10 : vector<16xf32> to vector<16x1xf32>
    %cst_7 = arith.constant 3.200000e+01 : f32
    %12 = vector.broadcast %cst_7 : f32 to vector<16x1xf32>
    %13 = arith.divf %11, %12 : vector<16x1xf32>
    %14 = vector.broadcast %13 : vector<16x1xf32> to vector<16x32xf32>
    %15 = arith.subf %5, %14 : vector<16x32xf32>
    %16 = arith.mulf %15, %15 : vector<16x32xf32>
    %cst_8 = arith.constant dense<0.000000e+00> : vector<16xf32>
    %17 = vector.multi_reduction <add>, %16, %cst_8 [1] : vector<16x32xf32> to vector<16xf32>
    %18 = vector.shape_cast %17 : vector<16xf32> to vector<16x1xf32>
    %cst_9 = arith.constant 3.200000e+01 : f32
    %19 = vector.broadcast %cst_9 : f32 to vector<16x1xf32>
    %20 = arith.divf %18, %19 : vector<16x1xf32>
    %21 = vector.broadcast %13 : vector<16x1xf32> to vector<16x32xf32>
    %22 = arith.subf %5, %21 : vector<16x32xf32>
    %cst_10 = arith.constant 9.99999974E-6 : f32
    %23 = vector.broadcast %cst_10 : f32 to vector<16x1xf32>
    %24 = arith.addf %20, %23 : vector<16x1xf32>
    %25 = math.rsqrt %24 : vector<16x1xf32>
    %26 = vector.broadcast %25 : vector<16x1xf32> to vector<16x32xf32>
    %27 = arith.mulf %22, %26 : vector<16x32xf32>
    %28 = vector.broadcast %7 : vector<1x32xf32> to vector<16x32xf32>
    %29 = arith.mulf %27, %28 : vector<16x32xf32>
    %30 = vector.broadcast %9 : vector<1x32xf32> to vector<16x32xf32>
    %31 = arith.addf %29, %30 : vector<16x32xf32>
    %c0_11 = arith.constant 0 : index
    %c0_12 = arith.constant 0 : index
    %c0_13 = arith.constant 0 : index
    %32 = vector.load %arg3[%c0_11, %c0_12, %c0_13] : memref<2x32x96xf32, #tpu.memory_space<vmem>>, vector<1x32x96xf32>
    %33 = vector.shape_cast %32 : vector<1x32x96xf32> to vector<32x96xf32>
    %cst_14 = arith.constant dense<0.000000e+00> : vector<16x96xf32>
    %34 = tpu.matmul %31, %33, %cst_14 {dimension_numbers = #tpu.dot_dimension_numbers<[1], [0], [0], [1], [0, 0, 1, 1], [], []>} : vector<16x32xf32>, vector<32x96xf32>, vector<16x96xf32> -> vector<16x96xf32>
    %c0_15 = arith.constant 0 : index
    %c0_16 = arith.constant 0 : index
    %c0_17 = arith.constant 0 : index
    %35 = vector.load %arg4[%c0_15, %c0_16, %c0_17] : memref<2x1x96xf32, #tpu.memory_space<vmem>>, vector<1x1x96xf32>
    %36 = vector.shape_cast %35 : vector<1x1x96xf32> to vector<1x96xf32>
    %37 = vector.broadcast %36 : vector<1x96xf32> to vector<16x96xf32>
    %38 = arith.addf %34, %37 : vector<16x96xf32>
    %39 = vector.extract_strided_slice %38 {offsets = [0, 32], sizes = [16, 32], strides = [1, 1]} : vector<16x96xf32> to vector<16x32xf32>
    %c0_18 = arith.constant 0 : index
    %c0_19 = arith.constant 0 : index
    %c0_20 = arith.constant 0 : index
    %c0_21 = arith.constant 0 : index
    %40 = vector.load %arg17[%c0_18, %c0_19, %c0_20, %c0_21] : memref<2x2x16x32xf32, #tpu.memory_space<vmem>>, vector<1x1x16x32xf32>
    %41 = vector.shape_cast %40 : vector<1x1x16x32xf32> to vector<16x32xf32>
    %42 = vector.shape_cast %39 : vector<16x32xf32> to vector<1x1x16x32xf32>
    tpu.vector_store %arg17[%c0_18, %c0_19, %c0_20, %c0_21], %42 {strides = array<i32>} : memref<2x2x16x32xf32, #tpu.memory_space<vmem>>, vector<1x1x16x32xf32>,
    %43 = vector.extract_strided_slice %38 {offsets = [0, 64], sizes = [16, 32], strides = [1, 1]} : vector<16x96xf32> to vector<16x32xf32>
    %c0_22 = arith.constant 0 : index
    %c1 = arith.constant 1 : index
    %c0_23 = arith.constant 0 : index
    %c0_24 = arith.constant 0 : index
    %44 = vector.load %arg17[%c0_22, %c1, %c0_23, %c0_24] : memref<2x2x16x32xf32, #tpu.memory_space<vmem>>, vector<1x1x16x32xf32>
    %45 = vector.shape_cast %44 : vector<1x1x16x32xf32> to vector<16x32xf32>
    %46 = vector.shape_cast %43 : vector<16x32xf32> to vector<1x1x16x32xf32>
    tpu.vector_store %arg17[%c0_22, %c1, %c0_23, %c0_24], %46 {strides = array<i32>} : memref<2x2x16x32xf32, #tpu.memory_space<vmem>>, vector<1x1x16x32xf32>,
    %47 = vector.extract_strided_slice %38 {offsets = [0, 0], sizes = [16, 8], strides = [1, 1]} : vector<16x96xf32> to vector<16x8xf32>
    %48 = vector.shape_cast %47 : vector<16x8xf32> to vector<2x8x8xf32>
    %49 = vector.extract_strided_slice %38 {offsets = [0, 32], sizes = [16, 8], strides = [1, 1]} : vector<16x96xf32> to vector<16x8xf32>
    %50 = vector.shape_cast %49 : vector<16x8xf32> to vector<2x8x8xf32>
    %51 = vector.extract_strided_slice %38 {offsets = [0, 64], sizes = [16, 8], strides = [1, 1]} : vector<16x96xf32> to vector<16x8xf32>
    %52 = vector.shape_cast %51 : vector<16x8xf32> to vector<2x8x8xf32>
    "tpu.trace_start"() <{level = 10 : i32, message = "bqd,bkd->bqk"}> : () -> ()
    %cst_25 = arith.constant dense<0.000000e+00> : vector<2x8x8xf32>
    %53 = tpu.matmul %48, %50, %cst_25 {dimension_numbers = #tpu.dot_dimension_numbers<[2], [2], [1], [1], [0, 0, 0, 1, 1, 1], [0], [0]>} : vector<2x8x8xf32>, vector<2x8x8xf32>, vector<2x8x8xf32> -> vector<2x8x8xf32>
    "tpu.trace_stop"() : () -> ()
    %cst_26 = arith.constant 0.353553385 : f32
    %54 = vector.broadcast %cst_26 : f32 to vector<2x8x8xf32>
    %55 = arith.mulf %53, %54 : vector<2x8x8xf32>
    %cst_27 = arith.constant -1.000000e+30 : f32
    %56 = vector.broadcast %cst_27 : f32 to vector<2x8x8xf32>
    %57 = arith.select %4, %55, %56 : vector<2x8x8xi1>, vector<2x8x8xf32>
    %cst_28 = arith.constant dense<0xFF800000> : vector<2x8xf32>
    %58 = vector.multi_reduction <maximumf>, %57, %cst_28 [2] : vector<2x8x8xf32> to vector<2x8xf32>
    %59 = vector.shape_cast %58 : vector<2x8xf32> to vector<2x8x1xf32>
    %60 = vector.broadcast %59 : vector<2x8x1xf32> to vector<2x8x8xf32>
    %61 = arith.subf %57, %60 : vector<2x8x8xf32>
    %62 = math.exp %61 : vector<2x8x8xf32>
    %cst_29 = arith.constant dense<0.000000e+00> : vector<2x8xf32>
    %63 = vector.multi_reduction <add>, %62, %cst_29 [2] : vector<2x8x8xf32> to vector<2x8xf32>
    %64 = vector.shape_cast %63 : vector<2x8xf32> to vector<2x8x1xf32>
    %65 = tpu.reciprocal %64 {approx = true} : vector<2x8x1xf32> -> vector<2x8x1xf32>
    %66 = vector.broadcast %65 : vector<2x8x1xf32> to vector<2x8x8xf32>
    %67 = arith.mulf %62, %66 : vector<2x8x8xf32>
    "tpu.trace_start"() <{level = 10 : i32, message = "bqk,bkd->bqd"}> : () -> ()
    %cst_30 = arith.constant dense<0.000000e+00> : vector<2x8x8xf32>
    %68 = tpu.matmul %67, %52, %cst_30 {dimension_numbers = #tpu.dot_dimension_numbers<[2], [1], [1], [2], [0, 0, 0, 1, 1, 2], [0], [0]>} : vector<2x8x8xf32>, vector<2x8x8xf32>, vector<2x8x8xf32> -> vector<2x8x8xf32>
    "tpu.trace_stop"() : () -> ()
    %69 = vector.shape_cast %68 : vector<2x8x8xf32> to vector<16x8xf32>
    %70 = vector.extract_strided_slice %38 {offsets = [0, 8], sizes = [16, 8], strides = [1, 1]} : vector<16x96xf32> to vector<16x8xf32>
    %71 = vector.shape_cast %70 : vector<16x8xf32> to vector<2x8x8xf32>
    %72 = vector.extract_strided_slice %38 {offsets = [0, 40], sizes = [16, 8], strides = [1, 1]} : vector<16x96xf32> to vector<16x8xf32>
    %73 = vector.shape_cast %72 : vector<16x8xf32> to vector<2x8x8xf32>
    %74 = vector.extract_strided_slice %38 {offsets = [0, 72], sizes = [16, 8], strides = [1, 1]} : vector<16x96xf32> to vector<16x8xf32>
    %75 = vector.shape_cast %74 : vector<16x8xf32> to vector<2x8x8xf32>
    "tpu.trace_start"() <{level = 10 : i32, message = "bqd,bkd->bqk"}> : () -> ()
    %cst_31 = arith.constant dense<0.000000e+00> : vector<2x8x8xf32>
    %76 = tpu.matmul %71, %73, %cst_31 {dimension_numbers = #tpu.dot_dimension_numbers<[2], [2], [1], [1], [0, 0, 0, 1, 1, 1], [0], [0]>} : vector<2x8x8xf32>, vector<2x8x8xf32>, vector<2x8x8xf32> -> vector<2x8x8xf32>
    "tpu.trace_stop"() : () -> ()
    %cst_32 = arith.constant 0.353553385 : f32
    %77 = vector.broadcast %cst_32 : f32 to vector<2x8x8xf32>
    %78 = arith.mulf %76, %77 : vector<2x8x8xf32>
    %cst_33 = arith.constant -1.000000e+30 : f32
    %79 = vector.broadcast %cst_33 : f32 to vector<2x8x8xf32>
    %80 = arith.select %4, %78, %79 : vector<2x8x8xi1>, vector<2x8x8xf32>
    %cst_34 = arith.constant dense<0xFF800000> : vector<2x8xf32>
    %81 = vector.multi_reduction <maximumf>, %80, %cst_34 [2] : vector<2x8x8xf32> to vector<2x8xf32>
    %82 = vector.shape_cast %81 : vector<2x8xf32> to vector<2x8x1xf32>
    %83 = vector.broadcast %82 : vector<2x8x1xf32> to vector<2x8x8xf32>
    %84 = arith.subf %80, %83 : vector<2x8x8xf32>
    %85 = math.exp %84 : vector<2x8x8xf32>
    %cst_35 = arith.constant dense<0.000000e+00> : vector<2x8xf32>
    %86 = vector.multi_reduction <add>, %85, %cst_35 [2] : vector<2x8x8xf32> to vector<2x8xf32>
    %87 = vector.shape_cast %86 : vector<2x8xf32> to vector<2x8x1xf32>
    %88 = tpu.reciprocal %87 {approx = true} : vector<2x8x1xf32> -> vector<2x8x1xf32>
    %89 = vector.broadcast %88 : vector<2x8x1xf32> to vector<2x8x8xf32>
    %90 = arith.mulf %85, %89 : vector<2x8x8xf32>
    "tpu.trace_start"() <{level = 10 : i32, message = "bqk,bkd->bqd"}> : () -> ()
    %cst_36 = arith.constant dense<0.000000e+00> : vector<2x8x8xf32>
    %91 = tpu.matmul %90, %75, %cst_36 {dimension_numbers = #tpu.dot_dimension_numbers<[2], [1], [1], [2], [0, 0, 0, 1, 1, 2], [0], [0]>} : vector<2x8x8xf32>, vector<2x8x8xf32>, vector<2x8x8xf32> -> vector<2x8x8xf32>
    "tpu.trace_stop"() : () -> ()
    %92 = vector.shape_cast %91 : vector<2x8x8xf32> to vector<16x8xf32>
    %93 = vector.extract_strided_slice %38 {offsets = [0, 16], sizes = [16, 8], strides = [1, 1]} : vector<16x96xf32> to vector<16x8xf32>
    %94 = vector.shape_cast %93 : vector<16x8xf32> to vector<2x8x8xf32>
    %95 = vector.extract_strided_slice %38 {offsets = [0, 48], sizes = [16, 8], strides = [1, 1]} : vector<16x96xf32> to vector<16x8xf32>
    %96 = vector.shape_cast %95 : vector<16x8xf32> to vector<2x8x8xf32>
    %97 = vector.extract_strided_slice %38 {offsets = [0, 80], sizes = [16, 8], strides = [1, 1]} : vector<16x96xf32> to vector<16x8xf32>
    %98 = vector.shape_cast %97 : vector<16x8xf32> to vector<2x8x8xf32>
    "tpu.trace_start"() <{level = 10 : i32, message = "bqd,bkd->bqk"}> : () -> ()
    %cst_37 = arith.constant dense<0.000000e+00> : vector<2x8x8xf32>
    %99 = tpu.matmul %94, %96, %cst_37 {dimension_numbers = #tpu.dot_dimension_numbers<[2], [2], [1], [1], [0, 0, 0, 1, 1, 1], [0], [0]>} : vector<2x8x8xf32>, vector<2x8x8xf32>, vector<2x8x8xf32> -> vector<2x8x8xf32>
    "tpu.trace_stop"() : () -> ()
    %cst_38 = arith.constant 0.353553385 : f32
    %100 = vector.broadcast %cst_38 : f32 to vector<2x8x8xf32>
    %101 = arith.mulf %99, %100 : vector<2x8x8xf32>
    %cst_39 = arith.constant -1.000000e+30 : f32
    %102 = vector.broadcast %cst_39 : f32 to vector<2x8x8xf32>
    %103 = arith.select %4, %101, %102 : vector<2x8x8xi1>, vector<2x8x8xf32>
    %cst_40 = arith.constant dense<0xFF800000> : vector<2x8xf32>
    %104 = vector.multi_reduction <maximumf>, %103, %cst_40 [2] : vector<2x8x8xf32> to vector<2x8xf32>
    %105 = vector.shape_cast %104 : vector<2x8xf32> to vector<2x8x1xf32>
    %106 = vector.broadcast %105 : vector<2x8x1xf32> to vector<2x8x8xf32>
    %107 = arith.subf %103, %106 : vector<2x8x8xf32>
    %108 = math.exp %107 : vector<2x8x8xf32>
    %cst_41 = arith.constant dense<0.000000e+00> : vector<2x8xf32>
    %109 = vector.multi_reduction <add>, %108, %cst_41 [2] : vector<2x8x8xf32> to vector<2x8xf32>
    %110 = vector.shape_cast %109 : vector<2x8xf32> to vector<2x8x1xf32>
    %111 = tpu.reciprocal %110 {approx = true} : vector<2x8x1xf32> -> vector<2x8x1xf32>
    %112 = vector.broadcast %111 : vector<2x8x1xf32> to vector<2x8x8xf32>
    %113 = arith.mulf %108, %112 : vector<2x8x8xf32>
    "tpu.trace_start"() <{level = 10 : i32, message = "bqk,bkd->bqd"}> : () -> ()
    %cst_42 = arith.constant dense<0.000000e+00> : vector<2x8x8xf32>
    %114 = tpu.matmul %113, %98, %cst_42 {dimension_numbers = #tpu.dot_dimension_numbers<[2], [1], [1], [2], [0, 0, 0, 1, 1, 2], [0], [0]>} : vector<2x8x8xf32>, vector<2x8x8xf32>, vector<2x8x8xf32> -> vector<2x8x8xf32>
    "tpu.trace_stop"() : () -> ()
    %115 = vector.shape_cast %114 : vector<2x8x8xf32> to vector<16x8xf32>
    %116 = vector.extract_strided_slice %38 {offsets = [0, 24], sizes = [16, 8], strides = [1, 1]} : vector<16x96xf32> to vector<16x8xf32>
    %117 = vector.shape_cast %116 : vector<16x8xf32> to vector<2x8x8xf32>
    %118 = vector.extract_strided_slice %38 {offsets = [0, 56], sizes = [16, 8], strides = [1, 1]} : vector<16x96xf32> to vector<16x8xf32>
    %119 = vector.shape_cast %118 : vector<16x8xf32> to vector<2x8x8xf32>
    %120 = vector.extract_strided_slice %38 {offsets = [0, 88], sizes = [16, 8], strides = [1, 1]} : vector<16x96xf32> to vector<16x8xf32>
    %121 = vector.shape_cast %120 : vector<16x8xf32> to vector<2x8x8xf32>
    "tpu.trace_start"() <{level = 10 : i32, message = "bqd,bkd->bqk"}> : () -> ()
    %cst_43 = arith.constant dense<0.000000e+00> : vector<2x8x8xf32>
    %122 = tpu.matmul %117, %119, %cst_43 {dimension_numbers = #tpu.dot_dimension_numbers<[2], [2], [1], [1], [0, 0, 0, 1, 1, 1], [0], [0]>} : vector<2x8x8xf32>, vector<2x8x8xf32>, vector<2x8x8xf32> -> vector<2x8x8xf32>
    "tpu.trace_stop"() : () -> ()
    %cst_44 = arith.constant 0.353553385 : f32
    %123 = vector.broadcast %cst_44 : f32 to vector<2x8x8xf32>
    %124 = arith.mulf %122, %123 : vector<2x8x8xf32>
    %cst_45 = arith.constant -1.000000e+30 : f32
    %125 = vector.broadcast %cst_45 : f32 to vector<2x8x8xf32>
    %126 = arith.select %4, %124, %125 : vector<2x8x8xi1>, vector<2x8x8xf32>
    %cst_46 = arith.constant dense<0xFF800000> : vector<2x8xf32>
    %127 = vector.multi_reduction <maximumf>, %126, %cst_46 [2] : vector<2x8x8xf32> to vector<2x8xf32>
    %128 = vector.shape_cast %127 : vector<2x8xf32> to vector<2x8x1xf32>
    %129 = vector.broadcast %128 : vector<2x8x1xf32> to vector<2x8x8xf32>
    %130 = arith.subf %126, %129 : vector<2x8x8xf32>
    %131 = math.exp %130 : vector<2x8x8xf32>
    %cst_47 = arith.constant dense<0.000000e+00> : vector<2x8xf32>
    %132 = vector.multi_reduction <add>, %131, %cst_47 [2] : vector<2x8x8xf32> to vector<2x8xf32>
    %133 = vector.shape_cast %132 : vector<2x8xf32> to vector<2x8x1xf32>
    %134 = tpu.reciprocal %133 {approx = true} : vector<2x8x1xf32> -> vector<2x8x1xf32>
    %135 = vector.broadcast %134 : vector<2x8x1xf32> to vector<2x8x8xf32>
    %136 = arith.mulf %131, %135 : vector<2x8x8xf32>
    "tpu.trace_start"() <{level = 10 : i32, message = "bqk,bkd->bqd"}> : () -> ()
    %cst_48 = arith.constant dense<0.000000e+00> : vector<2x8x8xf32>
    %137 = tpu.matmul %136, %121, %cst_48 {dimension_numbers = #tpu.dot_dimension_numbers<[2], [1], [1], [2], [0, 0, 0, 1, 1, 2], [0], [0]>} : vector<2x8x8xf32>, vector<2x8x8xf32>, vector<2x8x8xf32> -> vector<2x8x8xf32>
    "tpu.trace_stop"() : () -> ()
    %138 = vector.shape_cast %137 : vector<2x8x8xf32> to vector<16x8xf32>
    %139 = tpu.concatenate %69, %92, %115, %138 in 1 : vector<16x8xf32>, vector<16x8xf32>, vector<16x8xf32>, vector<16x8xf32> -> vector<16x32xf32>
    %c0_49 = arith.constant 0 : index
    %c0_50 = arith.constant 0 : index
    %c0_51 = arith.constant 0 : index
    %140 = vector.load %arg5[%c0_49, %c0_50, %c0_51] : memref<2x32x32xf32, #tpu.memory_space<vmem>>, vector<1x32x32xf32>
    %141 = vector.shape_cast %140 : vector<1x32x32xf32> to vector<32x32xf32>
    %cst_52 = arith.constant dense<0.000000e+00> : vector<16x32xf32>
    %142 = tpu.matmul %139, %141, %cst_52 {dimension_numbers = #tpu.dot_dimension_numbers<[1], [0], [0], [1], [0, 0, 1, 1], [], []>} : vector<16x32xf32>, vector<32x32xf32>, vector<16x32xf32> -> vector<16x32xf32>
    %c0_53 = arith.constant 0 : index
    %c0_54 = arith.constant 0 : index
    %c0_55 = arith.constant 0 : index
    %143 = vector.load %arg6[%c0_53, %c0_54, %c0_55] : memref<2x1x32xf32, #tpu.memory_space<vmem>>, vector<1x1x32xf32>
    %144 = vector.shape_cast %143 : vector<1x1x32xf32> to vector<1x32xf32>
    %145 = vector.broadcast %144 : vector<1x32xf32> to vector<16x32xf32>
    %146 = arith.addf %142, %145 : vector<16x32xf32>
    %147 = arith.addf %5, %146 : vector<16x32xf32>
    %c0_56 = arith.constant 0 : index
    %c0_57 = arith.constant 0 : index
    %c0_58 = arith.constant 0 : index
    %148 = vector.load %arg7[%c0_56, %c0_57, %c0_58] : memref<2x1x32xf32, #tpu.memory_space<vmem>>, vector<1x1x32xf32>
    %149 = vector.shape_cast %148 : vector<1x1x32xf32> to vector<1x32xf32>
    %c0_59 = arith.constant 0 : index
    %c0_60 = arith.constant 0 : index
    %c0_61 = arith.constant 0 : index
    %150 = vector.load %arg8[%c0_59, %c0_60, %c0_61] : memref<2x1x32xf32, #tpu.memory_space<vmem>>, vector<1x1x32xf32>
    %151 = vector.shape_cast %150 : vector<1x1x32xf32> to vector<1x32xf32>
    %cst_62 = arith.constant dense<0.000000e+00> : vector<16xf32>
    %152 = vector.multi_reduction <add>, %147, %cst_62 [1] : vector<16x32xf32> to vector<16xf32>
    %153 = vector.shape_cast %152 : vector<16xf32> to vector<16x1xf32>
    %cst_63 = arith.constant 3.200000e+01 : f32
    %154 = vector.broadcast %cst_63 : f32 to vector<16x1xf32>
    %155 = arith.divf %153, %154 : vector<16x1xf32>
    %156 = vector.broadcast %155 : vector<16x1xf32> to vector<16x32xf32>
    %157 = arith.subf %147, %156 : vector<16x32xf32>
    %158 = arith.mulf %157, %157 : vector<16x32xf32>
    %cst_64 = arith.constant dense<0.000000e+00> : vector<16xf32>
    %159 = vector.multi_reduction <add>, %158, %cst_64 [1] : vector<16x32xf32> to vector<16xf32>
    %160 = vector.shape_cast %159 : vector<16xf32> to vector<16x1xf32>
    %cst_65 = arith.constant 3.200000e+01 : f32
    %161 = vector.broadcast %cst_65 : f32 to vector<16x1xf32>
    %162 = arith.divf %160, %161 : vector<16x1xf32>
    %163 = vector.broadcast %155 : vector<16x1xf32> to vector<16x32xf32>
    %164 = arith.subf %147, %163 : vector<16x32xf32>
    %cst_66 = arith.constant 9.99999974E-6 : f32
    %165 = vector.broadcast %cst_66 : f32 to vector<16x1xf32>
    %166 = arith.addf %162, %165 : vector<16x1xf32>
    %167 = math.rsqrt %166 : vector<16x1xf32>
    %168 = vector.broadcast %167 : vector<16x1xf32> to vector<16x32xf32>
    %169 = arith.mulf %164, %168 : vector<16x32xf32>
    %170 = vector.broadcast %149 : vector<1x32xf32> to vector<16x32xf32>
    %171 = arith.mulf %169, %170 : vector<16x32xf32>
    %172 = vector.broadcast %151 : vector<1x32xf32> to vector<16x32xf32>
    %173 = arith.addf %171, %172 : vector<16x32xf32>
    %c0_67 = arith.constant 0 : index
    %c0_68 = arith.constant 0 : index
    %c0_69 = arith.constant 0 : index
    %174 = vector.load %arg9[%c0_67, %c0_68, %c0_69] : memref<2x32x128xf32, #tpu.memory_space<vmem>>, vector<1x32x128xf32>
    %175 = vector.shape_cast %174 : vector<1x32x128xf32> to vector<32x128xf32>
    %cst_70 = arith.constant dense<0.000000e+00> : vector<16x128xf32>
    %176 = tpu.matmul %173, %175, %cst_70 {dimension_numbers = #tpu.dot_dimension_numbers<[1], [0], [0], [1], [0, 0, 1, 1], [], []>} : vector<16x32xf32>, vector<32x128xf32>, vector<16x128xf32> -> vector<16x128xf32>
    %c0_71 = arith.constant 0 : index
    %c0_72 = arith.constant 0 : index
    %c0_73 = arith.constant 0 : index
    %177 = vector.load %arg10[%c0_71, %c0_72, %c0_73] : memref<2x1x128xf32, #tpu.memory_space<vmem>>, vector<1x1x128xf32>
    %178 = vector.shape_cast %177 : vector<1x1x128xf32> to vector<1x128xf32>
    %179 = vector.broadcast %178 : vector<1x128xf32> to vector<16x128xf32>
    %180 = arith.addf %176, %179 : vector<16x128xf32>
    %cst_74 = arith.constant 5.000000e-01 : f32
    %181 = vector.broadcast %cst_74 : f32 to vector<16x128xf32>
    %182 = arith.mulf %181, %180 : vector<16x128xf32>
    %cst_75 = arith.constant 4.471500e-02 : f32
    %183 = vector.broadcast %cst_75 : f32 to vector<16x128xf32>
    %184 = arith.mulf %183, %180 : vector<16x128xf32>
    %185 = arith.mulf %184, %180 : vector<16x128xf32>
    %186 = arith.mulf %185, %180 : vector<16x128xf32>
    %187 = arith.addf %180, %186 : vector<16x128xf32>
    %cst_76 = arith.constant 0.797884583 : f32
    %188 = vector.broadcast %cst_76 : f32 to vector<16x128xf32>
    %189 = arith.mulf %188, %187 : vector<16x128xf32>
    %190 = math.tanh %189 : vector<16x128xf32>
    %cst_77 = arith.constant 1.000000e+00 : f32
    %191 = vector.broadcast %cst_77 : f32 to vector<16x128xf32>
    %192 = arith.addf %191, %190 : vector<16x128xf32>
    %193 = arith.mulf %182, %192 : vector<16x128xf32>
    %c0_78 = arith.constant 0 : index
    %c0_79 = arith.constant 0 : index
    %c0_80 = arith.constant 0 : index
    %194 = vector.load %arg11[%c0_78, %c0_79, %c0_80] : memref<2x128x32xf32, #tpu.memory_space<vmem>>, vector<1x128x32xf32>
    %195 = vector.shape_cast %194 : vector<1x128x32xf32> to vector<128x32xf32>
    %cst_81 = arith.constant dense<0.000000e+00> : vector<16x32xf32>
    %196 = tpu.matmul %193, %195, %cst_81 {dimension_numbers = #tpu.dot_dimension_numbers<[1], [0], [0], [1], [0, 0, 1, 1], [], []>} : vector<16x128xf32>, vector<128x32xf32>, vector<16x32xf32> -> vector<16x32xf32>
    %c0_82 = arith.constant 0 : index
    %c0_83 = arith.constant 0 : index
    %c0_84 = arith.constant 0 : index
    %197 = vector.load %arg12[%c0_82, %c0_83, %c0_84] : memref<2x1x32xf32, #tpu.memory_space<vmem>>, vector<1x1x32xf32>
    %198 = vector.shape_cast %197 : vector<1x1x32xf32> to vector<1x32xf32>
    %199 = vector.broadcast %198 : vector<1x32xf32> to vector<16x32xf32>
    %200 = arith.addf %196, %199 : vector<16x32xf32>
    %201 = arith.addf %147, %200 : vector<16x32xf32>
    %c1_85 = arith.constant 1 : index
    %c0_86 = arith.constant 0 : index
    %c0_87 = arith.constant 0 : index
    %202 = vector.load %arg1[%c1_85, %c0_86, %c0_87] : memref<2x1x32xf32, #tpu.memory_space<vmem>>, vector<1x1x32xf32>
    %203 = vector.shape_cast %202 : vector<1x1x32xf32> to vector<1x32xf32>
    %c1_88 = arith.constant 1 : index
    %c0_89 = arith.constant 0 : index
    %c0_90 = arith.constant 0 : index
    %204 = vector.load %arg2[%c1_88, %c0_89, %c0_90] : memref<2x1x32xf32, #tpu.memory_space<vmem>>, vector<1x1x32xf32>
    %205 = vector.shape_cast %204 : vector<1x1x32xf32> to vector<1x32xf32>
    %cst_91 = arith.constant dense<0.000000e+00> : vector<16xf32>
    %206 = vector.multi_reduction <add>, %201, %cst_91 [1] : vector<16x32xf32> to vector<16xf32>
    %207 = vector.shape_cast %206 : vector<16xf32> to vector<16x1xf32>
    %cst_92 = arith.constant 3.200000e+01 : f32
    %208 = vector.broadcast %cst_92 : f32 to vector<16x1xf32>
    %209 = arith.divf %207, %208 : vector<16x1xf32>
    %210 = vector.broadcast %209 : vector<16x1xf32> to vector<16x32xf32>
    %211 = arith.subf %201, %210 : vector<16x32xf32>
    %212 = arith.mulf %211, %211 : vector<16x32xf32>
    %cst_93 = arith.constant dense<0.000000e+00> : vector<16xf32>
    %213 = vector.multi_reduction <add>, %212, %cst_93 [1] : vector<16x32xf32> to vector<16xf32>
    %214 = vector.shape_cast %213 : vector<16xf32> to vector<16x1xf32>
    %cst_94 = arith.constant 3.200000e+01 : f32
    %215 = vector.broadcast %cst_94 : f32 to vector<16x1xf32>
    %216 = arith.divf %214, %215 : vector<16x1xf32>
    %217 = vector.broadcast %209 : vector<16x1xf32> to vector<16x32xf32>
    %218 = arith.subf %201, %217 : vector<16x32xf32>
    %cst_95 = arith.constant 9.99999974E-6 : f32
    %219 = vector.broadcast %cst_95 : f32 to vector<16x1xf32>
    %220 = arith.addf %216, %219 : vector<16x1xf32>
    %221 = math.rsqrt %220 : vector<16x1xf32>
    %222 = vector.broadcast %221 : vector<16x1xf32> to vector<16x32xf32>
    %223 = arith.mulf %218, %222 : vector<16x32xf32>
    %224 = vector.broadcast %203 : vector<1x32xf32> to vector<16x32xf32>
    %225 = arith.mulf %223, %224 : vector<16x32xf32>
    %226 = vector.broadcast %205 : vector<1x32xf32> to vector<16x32xf32>
    %227 = arith.addf %225, %226 : vector<16x32xf32>
    %c1_96 = arith.constant 1 : index
    %c0_97 = arith.constant 0 : index
    %c0_98 = arith.constant 0 : index
    %228 = vector.load %arg3[%c1_96, %c0_97, %c0_98] : memref<2x32x96xf32, #tpu.memory_space<vmem>>, vector<1x32x96xf32>
    %229 = vector.shape_cast %228 : vector<1x32x96xf32> to vector<32x96xf32>
    %cst_99 = arith.constant dense<0.000000e+00> : vector<16x96xf32>
    %230 = tpu.matmul %227, %229, %cst_99 {dimension_numbers = #tpu.dot_dimension_numbers<[1], [0], [0], [1], [0, 0, 1, 1], [], []>} : vector<16x32xf32>, vector<32x96xf32>, vector<16x96xf32> -> vector<16x96xf32>
    %c1_100 = arith.constant 1 : index
    %c0_101 = arith.constant 0 : index
    %c0_102 = arith.constant 0 : index
    %231 = vector.load %arg4[%c1_100, %c0_101, %c0_102] : memref<2x1x96xf32, #tpu.memory_space<vmem>>, vector<1x1x96xf32>
    %232 = vector.shape_cast %231 : vector<1x1x96xf32> to vector<1x96xf32>
    %233 = vector.broadcast %232 : vector<1x96xf32> to vector<16x96xf32>
    %234 = arith.addf %230, %233 : vector<16x96xf32>
    %235 = vector.extract_strided_slice %234 {offsets = [0, 32], sizes = [16, 32], strides = [1, 1]} : vector<16x96xf32> to vector<16x32xf32>
    %c1_103 = arith.constant 1 : index
    %c0_104 = arith.constant 0 : index
    %c0_105 = arith.constant 0 : index
    %c0_106 = arith.constant 0 : index
    %236 = vector.load %arg17[%c1_103, %c0_104, %c0_105, %c0_106] : memref<2x2x16x32xf32, #tpu.memory_space<vmem>>, vector<1x1x16x32xf32>
    %237 = vector.shape_cast %236 : vector<1x1x16x32xf32> to vector<16x32xf32>
    %238 = vector.shape_cast %235 : vector<16x32xf32> to vector<1x1x16x32xf32>
    tpu.vector_store %arg17[%c1_103, %c0_104, %c0_105, %c0_106], %238 {strides = array<i32>} : memref<2x2x16x32xf32, #tpu.memory_space<vmem>>, vector<1x1x16x32xf32>,
    %239 = vector.extract_strided_slice %234 {offsets = [0, 64], sizes = [16, 32], strides = [1, 1]} : vector<16x96xf32> to vector<16x32xf32>
    %c1_107 = arith.constant 1 : index
    %c1_108 = arith.constant 1 : index
    %c0_109 = arith.constant 0 : index
    %c0_110 = arith.constant 0 : index
    %240 = vector.load %arg17[%c1_107, %c1_108, %c0_109, %c0_110] : memref<2x2x16x32xf32, #tpu.memory_space<vmem>>, vector<1x1x16x32xf32>
    %241 = vector.shape_cast %240 : vector<1x1x16x32xf32> to vector<16x32xf32>
    %242 = vector.shape_cast %239 : vector<16x32xf32> to vector<1x1x16x32xf32>
    tpu.vector_store %arg17[%c1_107, %c1_108, %c0_109, %c0_110], %242 {strides = array<i32>} : memref<2x2x16x32xf32, #tpu.memory_space<vmem>>, vector<1x1x16x32xf32>,
    %243 = vector.extract_strided_slice %234 {offsets = [0, 0], sizes = [16, 8], strides = [1, 1]} : vector<16x96xf32> to vector<16x8xf32>
    %244 = vector.shape_cast %243 : vector<16x8xf32> to vector<2x8x8xf32>
    %245 = vector.extract_strided_slice %234 {offsets = [0, 32], sizes = [16, 8], strides = [1, 1]} : vector<16x96xf32> to vector<16x8xf32>
    %246 = vector.shape_cast %245 : vector<16x8xf32> to vector<2x8x8xf32>
    %247 = vector.extract_strided_slice %234 {offsets = [0, 64], sizes = [16, 8], strides = [1, 1]} : vector<16x96xf32> to vector<16x8xf32>
    %248 = vector.shape_cast %247 : vector<16x8xf32> to vector<2x8x8xf32>
    "tpu.trace_start"() <{level = 10 : i32, message = "bqd,bkd->bqk"}> : () -> ()
    %cst_111 = arith.constant dense<0.000000e+00> : vector<2x8x8xf32>
    %249 = tpu.matmul %244, %246, %cst_111 {dimension_numbers = #tpu.dot_dimension_numbers<[2], [2], [1], [1], [0, 0, 0, 1, 1, 1], [0], [0]>} : vector<2x8x8xf32>, vector<2x8x8xf32>, vector<2x8x8xf32> -> vector<2x8x8xf32>
    "tpu.trace_stop"() : () -> ()
    %cst_112 = arith.constant 0.353553385 : f32
    %250 = vector.broadcast %cst_112 : f32 to vector<2x8x8xf32>
    %251 = arith.mulf %249, %250 : vector<2x8x8xf32>
    %cst_113 = arith.constant -1.000000e+30 : f32
    %252 = vector.broadcast %cst_113 : f32 to vector<2x8x8xf32>
    %253 = arith.select %4, %251, %252 : vector<2x8x8xi1>, vector<2x8x8xf32>
    %cst_114 = arith.constant dense<0xFF800000> : vector<2x8xf32>
    %254 = vector.multi_reduction <maximumf>, %253, %cst_114 [2] : vector<2x8x8xf32> to vector<2x8xf32>
    %255 = vector.shape_cast %254 : vector<2x8xf32> to vector<2x8x1xf32>
    %256 = vector.broadcast %255 : vector<2x8x1xf32> to vector<2x8x8xf32>
    %257 = arith.subf %253, %256 : vector<2x8x8xf32>
    %258 = math.exp %257 : vector<2x8x8xf32>
    %cst_115 = arith.constant dense<0.000000e+00> : vector<2x8xf32>
    %259 = vector.multi_reduction <add>, %258, %cst_115 [2] : vector<2x8x8xf32> to vector<2x8xf32>
    %260 = vector.shape_cast %259 : vector<2x8xf32> to vector<2x8x1xf32>
    %261 = tpu.reciprocal %260 {approx = true} : vector<2x8x1xf32> -> vector<2x8x1xf32>
    %262 = vector.broadcast %261 : vector<2x8x1xf32> to vector<2x8x8xf32>
    %263 = arith.mulf %258, %262 : vector<2x8x8xf32>
    "tpu.trace_start"() <{level = 10 : i32, message = "bqk,bkd->bqd"}> : () -> ()
    %cst_116 = arith.constant dense<0.000000e+00> : vector<2x8x8xf32>
    %264 = tpu.matmul %263, %248, %cst_116 {dimension_numbers = #tpu.dot_dimension_numbers<[2], [1], [1], [2], [0, 0, 0, 1, 1, 2], [0], [0]>} : vector<2x8x8xf32>, vector<2x8x8xf32>, vector<2x8x8xf32> -> vector<2x8x8xf32>
    "tpu.trace_stop"() : () -> ()
    %265 = vector.shape_cast %264 : vector<2x8x8xf32> to vector<16x8xf32>
    %266 = vector.extract_strided_slice %234 {offsets = [0, 8], sizes = [16, 8], strides = [1, 1]} : vector<16x96xf32> to vector<16x8xf32>
    %267 = vector.shape_cast %266 : vector<16x8xf32> to vector<2x8x8xf32>
    %268 = vector.extract_strided_slice %234 {offsets = [0, 40], sizes = [16, 8], strides = [1, 1]} : vector<16x96xf32> to vector<16x8xf32>
    %269 = vector.shape_cast %268 : vector<16x8xf32> to vector<2x8x8xf32>
    %270 = vector.extract_strided_slice %234 {offsets = [0, 72], sizes = [16, 8], strides = [1, 1]} : vector<16x96xf32> to vector<16x8xf32>
    %271 = vector.shape_cast %270 : vector<16x8xf32> to vector<2x8x8xf32>
    "tpu.trace_start"() <{level = 10 : i32, message = "bqd,bkd->bqk"}> : () -> ()
    %cst_117 = arith.constant dense<0.000000e+00> : vector<2x8x8xf32>
    %272 = tpu.matmul %267, %269, %cst_117 {dimension_numbers = #tpu.dot_dimension_numbers<[2], [2], [1], [1], [0, 0, 0, 1, 1, 1], [0], [0]>} : vector<2x8x8xf32>, vector<2x8x8xf32>, vector<2x8x8xf32> -> vector<2x8x8xf32>
    "tpu.trace_stop"() : () -> ()
    %cst_118 = arith.constant 0.353553385 : f32
    %273 = vector.broadcast %cst_118 : f32 to vector<2x8x8xf32>
    %274 = arith.mulf %272, %273 : vector<2x8x8xf32>
    %cst_119 = arith.constant -1.000000e+30 : f32
    %275 = vector.broadcast %cst_119 : f32 to vector<2x8x8xf32>
    %276 = arith.select %4, %274, %275 : vector<2x8x8xi1>, vector<2x8x8xf32>
    %cst_120 = arith.constant dense<0xFF800000> : vector<2x8xf32>
    %277 = vector.multi_reduction <maximumf>, %276, %cst_120 [2] : vector<2x8x8xf32> to vector<2x8xf32>
    %278 = vector.shape_cast %277 : vector<2x8xf32> to vector<2x8x1xf32>
    %279 = vector.broadcast %278 : vector<2x8x1xf32> to vector<2x8x8xf32>
    %280 = arith.subf %276, %279 : vector<2x8x8xf32>
    %281 = math.exp %280 : vector<2x8x8xf32>
    %cst_121 = arith.constant dense<0.000000e+00> : vector<2x8xf32>
    %282 = vector.multi_reduction <add>, %281, %cst_121 [2] : vector<2x8x8xf32> to vector<2x8xf32>
    %283 = vector.shape_cast %282 : vector<2x8xf32> to vector<2x8x1xf32>
    %284 = tpu.reciprocal %283 {approx = true} : vector<2x8x1xf32> -> vector<2x8x1xf32>
    %285 = vector.broadcast %284 : vector<2x8x1xf32> to vector<2x8x8xf32>
    %286 = arith.mulf %281, %285 : vector<2x8x8xf32>
    "tpu.trace_start"() <{level = 10 : i32, message = "bqk,bkd->bqd"}> : () -> ()
    %cst_122 = arith.constant dense<0.000000e+00> : vector<2x8x8xf32>
    %287 = tpu.matmul %286, %271, %cst_122 {dimension_numbers = #tpu.dot_dimension_numbers<[2], [1], [1], [2], [0, 0, 0, 1, 1, 2], [0], [0]>} : vector<2x8x8xf32>, vector<2x8x8xf32>, vector<2x8x8xf32> -> vector<2x8x8xf32>
    "tpu.trace_stop"() : () -> ()
    %288 = vector.shape_cast %287 : vector<2x8x8xf32> to vector<16x8xf32>
    %289 = vector.extract_strided_slice %234 {offsets = [0, 16], sizes = [16, 8], strides = [1, 1]} : vector<16x96xf32> to vector<16x8xf32>
    %290 = vector.shape_cast %289 : vector<16x8xf32> to vector<2x8x8xf32>
    %291 = vector.extract_strided_slice %234 {offsets = [0, 48], sizes = [16, 8], strides = [1, 1]} : vector<16x96xf32> to vector<16x8xf32>
    %292 = vector.shape_cast %291 : vector<16x8xf32> to vector<2x8x8xf32>
    %293 = vector.extract_strided_slice %234 {offsets = [0, 80], sizes = [16, 8], strides = [1, 1]} : vector<16x96xf32> to vector<16x8xf32>
    %294 = vector.shape_cast %293 : vector<16x8xf32> to vector<2x8x8xf32>
    "tpu.trace_start"() <{level = 10 : i32, message = "bqd,bkd->bqk"}> : () -> ()
    %cst_123 = arith.constant dense<0.000000e+00> : vector<2x8x8xf32>
    %295 = tpu.matmul %290, %292, %cst_123 {dimension_numbers = #tpu.dot_dimension_numbers<[2], [2], [1], [1], [0, 0, 0, 1, 1, 1], [0], [0]>} : vector<2x8x8xf32>, vector<2x8x8xf32>, vector<2x8x8xf32> -> vector<2x8x8xf32>
    "tpu.trace_stop"() : () -> ()
    %cst_124 = arith.constant 0.353553385 : f32
    %296 = vector.broadcast %cst_124 : f32 to vector<2x8x8xf32>
    %297 = arith.mulf %295, %296 : vector<2x8x8xf32>
    %cst_125 = arith.constant -1.000000e+30 : f32
    %298 = vector.broadcast %cst_125 : f32 to vector<2x8x8xf32>
    %299 = arith.select %4, %297, %298 : vector<2x8x8xi1>, vector<2x8x8xf32>
    %cst_126 = arith.constant dense<0xFF800000> : vector<2x8xf32>
    %300 = vector.multi_reduction <maximumf>, %299, %cst_126 [2] : vector<2x8x8xf32> to vector<2x8xf32>
    %301 = vector.shape_cast %300 : vector<2x8xf32> to vector<2x8x1xf32>
    %302 = vector.broadcast %301 : vector<2x8x1xf32> to vector<2x8x8xf32>
    %303 = arith.subf %299, %302 : vector<2x8x8xf32>
    %304 = math.exp %303 : vector<2x8x8xf32>
    %cst_127 = arith.constant dense<0.000000e+00> : vector<2x8xf32>
    %305 = vector.multi_reduction <add>, %304, %cst_127 [2] : vector<2x8x8xf32> to vector<2x8xf32>
    %306 = vector.shape_cast %305 : vector<2x8xf32> to vector<2x8x1xf32>
    %307 = tpu.reciprocal %306 {approx = true} : vector<2x8x1xf32> -> vector<2x8x1xf32>
    %308 = vector.broadcast %307 : vector<2x8x1xf32> to vector<2x8x8xf32>
    %309 = arith.mulf %304, %308 : vector<2x8x8xf32>
    "tpu.trace_start"() <{level = 10 : i32, message = "bqk,bkd->bqd"}> : () -> ()
    %cst_128 = arith.constant dense<0.000000e+00> : vector<2x8x8xf32>
    %310 = tpu.matmul %309, %294, %cst_128 {dimension_numbers = #tpu.dot_dimension_numbers<[2], [1], [1], [2], [0, 0, 0, 1, 1, 2], [0], [0]>} : vector<2x8x8xf32>, vector<2x8x8xf32>, vector<2x8x8xf32> -> vector<2x8x8xf32>
    "tpu.trace_stop"() : () -> ()
    %311 = vector.shape_cast %310 : vector<2x8x8xf32> to vector<16x8xf32>
    %312 = vector.extract_strided_slice %234 {offsets = [0, 24], sizes = [16, 8], strides = [1, 1]} : vector<16x96xf32> to vector<16x8xf32>
    %313 = vector.shape_cast %312 : vector<16x8xf32> to vector<2x8x8xf32>
    %314 = vector.extract_strided_slice %234 {offsets = [0, 56], sizes = [16, 8], strides = [1, 1]} : vector<16x96xf32> to vector<16x8xf32>
    %315 = vector.shape_cast %314 : vector<16x8xf32> to vector<2x8x8xf32>
    %316 = vector.extract_strided_slice %234 {offsets = [0, 88], sizes = [16, 8], strides = [1, 1]} : vector<16x96xf32> to vector<16x8xf32>
    %317 = vector.shape_cast %316 : vector<16x8xf32> to vector<2x8x8xf32>
    "tpu.trace_start"() <{level = 10 : i32, message = "bqd,bkd->bqk"}> : () -> ()
    %cst_129 = arith.constant dense<0.000000e+00> : vector<2x8x8xf32>
    %318 = tpu.matmul %313, %315, %cst_129 {dimension_numbers = #tpu.dot_dimension_numbers<[2], [2], [1], [1], [0, 0, 0, 1, 1, 1], [0], [0]>} : vector<2x8x8xf32>, vector<2x8x8xf32>, vector<2x8x8xf32> -> vector<2x8x8xf32>
    "tpu.trace_stop"() : () -> ()
    %cst_130 = arith.constant 0.353553385 : f32
    %319 = vector.broadcast %cst_130 : f32 to vector<2x8x8xf32>
    %320 = arith.mulf %318, %319 : vector<2x8x8xf32>
    %cst_131 = arith.constant -1.000000e+30 : f32
    %321 = vector.broadcast %cst_131 : f32 to vector<2x8x8xf32>
    %322 = arith.select %4, %320, %321 : vector<2x8x8xi1>, vector<2x8x8xf32>
    %cst_132 = arith.constant dense<0xFF800000> : vector<2x8xf32>
    %323 = vector.multi_reduction <maximumf>, %322, %cst_132 [2] : vector<2x8x8xf32> to vector<2x8xf32>
    %324 = vector.shape_cast %323 : vector<2x8xf32> to vector<2x8x1xf32>
    %325 = vector.broadcast %324 : vector<2x8x1xf32> to vector<2x8x8xf32>
    %326 = arith.subf %322, %325 : vector<2x8x8xf32>
    %327 = math.exp %326 : vector<2x8x8xf32>
    %cst_133 = arith.constant dense<0.000000e+00> : vector<2x8xf32>
    %328 = vector.multi_reduction <add>, %327, %cst_133 [2] : vector<2x8x8xf32> to vector<2x8xf32>
    %329 = vector.shape_cast %328 : vector<2x8xf32> to vector<2x8x1xf32>
    %330 = tpu.reciprocal %329 {approx = true} : vector<2x8x1xf32> -> vector<2x8x1xf32>
    %331 = vector.broadcast %330 : vector<2x8x1xf32> to vector<2x8x8xf32>
    %332 = arith.mulf %327, %331 : vector<2x8x8xf32>
    "tpu.trace_start"() <{level = 10 : i32, message = "bqk,bkd->bqd"}> : () -> ()
    %cst_134 = arith.constant dense<0.000000e+00> : vector<2x8x8xf32>
    %333 = tpu.matmul %332, %317, %cst_134 {dimension_numbers = #tpu.dot_dimension_numbers<[2], [1], [1], [2], [0, 0, 0, 1, 1, 2], [0], [0]>} : vector<2x8x8xf32>, vector<2x8x8xf32>, vector<2x8x8xf32> -> vector<2x8x8xf32>
    "tpu.trace_stop"() : () -> ()
    %334 = vector.shape_cast %333 : vector<2x8x8xf32> to vector<16x8xf32>
    %335 = tpu.concatenate %265, %288, %311, %334 in 1 : vector<16x8xf32>, vector<16x8xf32>, vector<16x8xf32>, vector<16x8xf32> -> vector<16x32xf32>
    %c1_135 = arith.constant 1 : index
    %c0_136 = arith.constant 0 : index
    %c0_137 = arith.constant 0 : index
    %336 = vector.load %arg5[%c1_135, %c0_136, %c0_137] : memref<2x32x32xf32, #tpu.memory_space<vmem>>, vector<1x32x32xf32>
    %337 = vector.shape_cast %336 : vector<1x32x32xf32> to vector<32x32xf32>
    %cst_138 = arith.constant dense<0.000000e+00> : vector<16x32xf32>
    %338 = tpu.matmul %335, %337, %cst_138 {dimension_numbers = #tpu.dot_dimension_numbers<[1], [0], [0], [1], [0, 0, 1, 1], [], []>} : vector<16x32xf32>, vector<32x32xf32>, vector<16x32xf32> -> vector<16x32xf32>
    %c1_139 = arith.constant 1 : index
    %c0_140 = arith.constant 0 : index
    %c0_141 = arith.constant 0 : index
    %339 = vector.load %arg6[%c1_139, %c0_140, %c0_141] : memref<2x1x32xf32, #tpu.memory_space<vmem>>, vector<1x1x32xf32>
    %340 = vector.shape_cast %339 : vector<1x1x32xf32> to vector<1x32xf32>
    %341 = vector.broadcast %340 : vector<1x32xf32> to vector<16x32xf32>
    %342 = arith.addf %338, %341 : vector<16x32xf32>
    %343 = arith.addf %201, %342 : vector<16x32xf32>
    %c1_142 = arith.constant 1 : index
    %c0_143 = arith.constant 0 : index
    %c0_144 = arith.constant 0 : index
    %344 = vector.load %arg7[%c1_142, %c0_143, %c0_144] : memref<2x1x32xf32, #tpu.memory_space<vmem>>, vector<1x1x32xf32>
    %345 = vector.shape_cast %344 : vector<1x1x32xf32> to vector<1x32xf32>
    %c1_145 = arith.constant 1 : index
    %c0_146 = arith.constant 0 : index
    %c0_147 = arith.constant 0 : index
    %346 = vector.load %arg8[%c1_145, %c0_146, %c0_147] : memref<2x1x32xf32, #tpu.memory_space<vmem>>, vector<1x1x32xf32>
    %347 = vector.shape_cast %346 : vector<1x1x32xf32> to vector<1x32xf32>
    %cst_148 = arith.constant dense<0.000000e+00> : vector<16xf32>
    %348 = vector.multi_reduction <add>, %343, %cst_148 [1] : vector<16x32xf32> to vector<16xf32>
    %349 = vector.shape_cast %348 : vector<16xf32> to vector<16x1xf32>
    %cst_149 = arith.constant 3.200000e+01 : f32
    %350 = vector.broadcast %cst_149 : f32 to vector<16x1xf32>
    %351 = arith.divf %349, %350 : vector<16x1xf32>
    %352 = vector.broadcast %351 : vector<16x1xf32> to vector<16x32xf32>
    %353 = arith.subf %343, %352 : vector<16x32xf32>
    %354 = arith.mulf %353, %353 : vector<16x32xf32>
    %cst_150 = arith.constant dense<0.000000e+00> : vector<16xf32>
    %355 = vector.multi_reduction <add>, %354, %cst_150 [1] : vector<16x32xf32> to vector<16xf32>
    %356 = vector.shape_cast %355 : vector<16xf32> to vector<16x1xf32>
    %cst_151 = arith.constant 3.200000e+01 : f32
    %357 = vector.broadcast %cst_151 : f32 to vector<16x1xf32>
    %358 = arith.divf %356, %357 : vector<16x1xf32>
    %359 = vector.broadcast %351 : vector<16x1xf32> to vector<16x32xf32>
    %360 = arith.subf %343, %359 : vector<16x32xf32>
    %cst_152 = arith.constant 9.99999974E-6 : f32
    %361 = vector.broadcast %cst_152 : f32 to vector<16x1xf32>
    %362 = arith.addf %358, %361 : vector<16x1xf32>
    %363 = math.rsqrt %362 : vector<16x1xf32>
    %364 = vector.broadcast %363 : vector<16x1xf32> to vector<16x32xf32>
    %365 = arith.mulf %360, %364 : vector<16x32xf32>
    %366 = vector.broadcast %345 : vector<1x32xf32> to vector<16x32xf32>
    %367 = arith.mulf %365, %366 : vector<16x32xf32>
    %368 = vector.broadcast %347 : vector<1x32xf32> to vector<16x32xf32>
    %369 = arith.addf %367, %368 : vector<16x32xf32>
    %c1_153 = arith.constant 1 : index
    %c0_154 = arith.constant 0 : index
    %c0_155 = arith.constant 0 : index
    %370 = vector.load %arg9[%c1_153, %c0_154, %c0_155] : memref<2x32x128xf32, #tpu.memory_space<vmem>>, vector<1x32x128xf32>
    %371 = vector.shape_cast %370 : vector<1x32x128xf32> to vector<32x128xf32>
    %cst_156 = arith.constant dense<0.000000e+00> : vector<16x128xf32>
    %372 = tpu.matmul %369, %371, %cst_156 {dimension_numbers = #tpu.dot_dimension_numbers<[1], [0], [0], [1], [0, 0, 1, 1], [], []>} : vector<16x32xf32>, vector<32x128xf32>, vector<16x128xf32> -> vector<16x128xf32>
    %c1_157 = arith.constant 1 : index
    %c0_158 = arith.constant 0 : index
    %c0_159 = arith.constant 0 : index
    %373 = vector.load %arg10[%c1_157, %c0_158, %c0_159] : memref<2x1x128xf32, #tpu.memory_space<vmem>>, vector<1x1x128xf32>
    %374 = vector.shape_cast %373 : vector<1x1x128xf32> to vector<1x128xf32>
    %375 = vector.broadcast %374 : vector<1x128xf32> to vector<16x128xf32>
    %376 = arith.addf %372, %375 : vector<16x128xf32>
    %cst_160 = arith.constant 5.000000e-01 : f32
    %377 = vector.broadcast %cst_160 : f32 to vector<16x128xf32>
    %378 = arith.mulf %377, %376 : vector<16x128xf32>
    %cst_161 = arith.constant 4.471500e-02 : f32
    %379 = vector.broadcast %cst_161 : f32 to vector<16x128xf32>
    %380 = arith.mulf %379, %376 : vector<16x128xf32>
    %381 = arith.mulf %380, %376 : vector<16x128xf32>
    %382 = arith.mulf %381, %376 : vector<16x128xf32>
    %383 = arith.addf %376, %382 : vector<16x128xf32>
    %cst_162 = arith.constant 0.797884583 : f32
    %384 = vector.broadcast %cst_162 : f32 to vector<16x128xf32>
    %385 = arith.mulf %384, %383 : vector<16x128xf32>
    %386 = math.tanh %385 : vector<16x128xf32>
    %cst_163 = arith.constant 1.000000e+00 : f32
    %387 = vector.broadcast %cst_163 : f32 to vector<16x128xf32>
    %388 = arith.addf %387, %386 : vector<16x128xf32>
    %389 = arith.mulf %378, %388 : vector<16x128xf32>
    %c1_164 = arith.constant 1 : index
    %c0_165 = arith.constant 0 : index
    %c0_166 = arith.constant 0 : index
    %390 = vector.load %arg11[%c1_164, %c0_165, %c0_166] : memref<2x128x32xf32, #tpu.memory_space<vmem>>, vector<1x128x32xf32>
    %391 = vector.shape_cast %390 : vector<1x128x32xf32> to vector<128x32xf32>
    %cst_167 = arith.constant dense<0.000000e+00> : vector<16x32xf32>
    %392 = tpu.matmul %389, %391, %cst_167 {dimension_numbers = #tpu.dot_dimension_numbers<[1], [0], [0], [1], [0, 0, 1, 1], [], []>} : vector<16x128xf32>, vector<128x32xf32>, vector<16x32xf32> -> vector<16x32xf32>
    %c1_168 = arith.constant 1 : index
    %c0_169 = arith.constant 0 : index
    %c0_170 = arith.constant 0 : index
    %393 = vector.load %arg12[%c1_168, %c0_169, %c0_170] : memref<2x1x32xf32, #tpu.memory_space<vmem>>, vector<1x1x32xf32>
    %394 = vector.shape_cast %393 : vector<1x1x32xf32> to vector<1x32xf32>
    %395 = vector.broadcast %394 : vector<1x32xf32> to vector<16x32xf32>
    %396 = arith.addf %392, %395 : vector<16x32xf32>
    %397 = arith.addf %343, %396 : vector<16x32xf32>
    %c0_171 = arith.constant 0 : index
    %c0_172 = arith.constant 0 : index
    %398 = vector.load %arg13[%c0_171, %c0_172] : memref<1x32xf32, #tpu.memory_space<vmem>>, vector<1x32xf32>
    %c0_173 = arith.constant 0 : index
    %c0_174 = arith.constant 0 : index
    %399 = vector.load %arg14[%c0_173, %c0_174] : memref<1x32xf32, #tpu.memory_space<vmem>>, vector<1x32xf32>
    %cst_175 = arith.constant dense<0.000000e+00> : vector<16xf32>
    %400 = vector.multi_reduction <add>, %397, %cst_175 [1] : vector<16x32xf32> to vector<16xf32>
    %401 = vector.shape_cast %400 : vector<16xf32> to vector<16x1xf32>
    %cst_176 = arith.constant 3.200000e+01 : f32
    %402 = vector.broadcast %cst_176 : f32 to vector<16x1xf32>
    %403 = arith.divf %401, %402 : vector<16x1xf32>
    %404 = vector.broadcast %403 : vector<16x1xf32> to vector<16x32xf32>
    %405 = arith.subf %397, %404 : vector<16x32xf32>
    %406 = arith.mulf %405, %405 : vector<16x32xf32>
    %cst_177 = arith.constant dense<0.000000e+00> : vector<16xf32>
    %407 = vector.multi_reduction <add>, %406, %cst_177 [1] : vector<16x32xf32> to vector<16xf32>
    %408 = vector.shape_cast %407 : vector<16xf32> to vector<16x1xf32>
    %cst_178 = arith.constant 3.200000e+01 : f32
    %409 = vector.broadcast %cst_178 : f32 to vector<16x1xf32>
    %410 = arith.divf %408, %409 : vector<16x1xf32>
    %411 = vector.broadcast %403 : vector<16x1xf32> to vector<16x32xf32>
    %412 = arith.subf %397, %411 : vector<16x32xf32>
    %cst_179 = arith.constant 9.99999974E-6 : f32
    %413 = vector.broadcast %cst_179 : f32 to vector<16x1xf32>
    %414 = arith.addf %410, %413 : vector<16x1xf32>
    %415 = math.rsqrt %414 : vector<16x1xf32>
    %416 = vector.broadcast %415 : vector<16x1xf32> to vector<16x32xf32>
    %417 = arith.mulf %412, %416 : vector<16x32xf32>
    %418 = vector.broadcast %398 : vector<1x32xf32> to vector<16x32xf32>
    %419 = arith.mulf %417, %418 : vector<16x32xf32>
    %420 = vector.broadcast %399 : vector<1x32xf32> to vector<16x32xf32>
    %421 = arith.addf %419, %420 : vector<16x32xf32>
    %c0_180 = arith.constant 0 : index
    %c0_181 = arith.constant 0 : index
    %422 = vector.load %arg15[%c0_180, %c0_181] : memref<32x64xf32, #tpu.memory_space<vmem>>, vector<32x64xf32>
    %cst_182 = arith.constant dense<0.000000e+00> : vector<16x64xf32>
    %423 = tpu.matmul %421, %422, %cst_182 {dimension_numbers = #tpu.dot_dimension_numbers<[1], [0], [0], [1], [0, 0, 1, 1], [], []>} : vector<16x32xf32>, vector<32x64xf32>, vector<16x64xf32> -> vector<16x64xf32>
    %c0_183 = arith.constant 0 : index
    %c0_184 = arith.constant 0 : index
    %424 = vector.load %arg16[%c0_183, %c0_184] : memref<16x64xf32, #tpu.memory_space<vmem>>, vector<16x64xf32>
    tpu.vector_store %arg16[%c0_183, %c0_184], %423 {strides = array<i32>} : memref<16x64xf32, #tpu.memory_space<vmem>>, vector<16x64xf32>,
    return
  }
}

</mosaic_0001>

<llo_original>
// kernel: squeeze.7
$region0: #{squeeze.7}
  %s0 = inlined_call_operand.vmem [shape: f32[1,1,16,32], index: 0, kind: input, shape index: {}]
  %s1 = inlined_call_operand.vmem [shape: f32[2,8,4,8], index: 1, kind: output, shape index: {}]
  $region1: #{squeeze.7} parent=0
    #allocation0 [shape = 'u8[65536]{0}', space=vmem, size = 0x10000, scoped, tag = 'scoped mem for output reshape']
    %v2 = vld [vmem:[%s0] sm:$0xff]
    %vm3 = vcmask 64512
    %4 = vst.msk [vmem:[#allocation0] ss:$8 sm:$0xf] %vm3, %v2
    %5 = vst.msk [vmem:[#allocation0] ss:$8 sm:$0xf0] %vm3, %v2
    %s6 = scalar_lea.vmem %s0, 8
    %v7 = vld [vmem:[%s6] sm:$0xff]
    %vm8 = vcmask 64512
    %s9 = scalar_lea.vmem [#allocation0], 64
    %10 = vst.msk [vmem:[%s9] ss:$8 sm:$0xf] %vm8, %v7
    %s11 = scalar_lea.vmem [#allocation0], 64
    %12 = vst.msk [vmem:[%s11] ss:$8 sm:$0xf0] %vm8, %v7
    %v13 = vld [vmem:[%s0] sm:$0xff]
    %14 = vrot.lane.b32.xlu0 %v13, 120
    %v15 = vpop.permute.xlu0 %14
    %vm16 = vcmask 64512
    %s17 = scalar_lea.vmem [#allocation0], 1
    %18 = vst.msk [vmem:[%s17] ss:$8 sm:$0xf] %vm16, %v15
    %s19 = scalar_lea.vmem [#allocation0], 1
    %20 = vst.msk [vmem:[%s19] ss:$8 sm:$0xf0] %vm16, %v15
    %s21 = scalar_lea.vmem %s0, 8
    %v22 = vld [vmem:[%s21] sm:$0xff]
    %23 = vrot.lane.b32.xlu0 %v22, 120
    %v24 = vpop.permute.xlu0 %23
    %vm25 = vcmask 64512
    %s26 = scalar_lea.vmem [#allocation0], 65
    %27 = vst.msk [vmem:[%s26] ss:$8 sm:$0xf] %vm25, %v24
    %s28 = scalar_lea.vmem [#allocation0], 65
    %29 = vst.msk [vmem:[%s28] ss:$8 sm:$0xf0] %vm25, %v24
    %v30 = vld [vmem:[%s0] sm:$0xff]
    %31 = vrot.lane.b32.xlu0 %v30, 112
    %v32 = vpop.permute.xlu0 %31
    %vm33 = vcmask 64512
    %s34 = scalar_lea.vmem [#allocation0], 2
    %35 = vst.msk [vmem:[%s34] ss:$8 sm:$0xf] %vm33, %v32
    %s36 = scalar_lea.vmem [#allocation0], 2
    %37 = vst.msk [vmem:[%s36] ss:$8 sm:$0xf0] %vm33, %v32
    %s38 = scalar_lea.vmem %s0, 8
    %v39 = vld [vmem:[%s38] sm:$0xff]
    %40 = vrot.lane.b32.xlu0 %v39, 112
    %v41 = vpop.permute.xlu0 %40
    %vm42 = vcmask 64512
    %s43 = scalar_lea.vmem [#allocation0], 66
    %44 = vst.msk [vmem:[%s43] ss:$8 sm:$0xf] %vm42, %v41
    %s45 = scalar_lea.vmem [#allocation0], 66
    %46 = vst.msk [vmem:[%s45] ss:$8 sm:$0xf0] %vm42, %v41
    %v47 = vld [vmem:[%s0] sm:$0xff]
    %48 = vrot.lane.b32.xlu0 %v47, 104
    %v49 = vpop.permute.xlu0 %48
    %vm50 = vcmask 64512
    %s51 = scalar_lea.vmem [#allocation0], 3
    %52 = vst.msk [vmem:[%s51] ss:$8 sm:$0xf] %vm50, %v49
    %s53 = scalar_lea.vmem [#allocation0], 3
    %54 = vst.msk [vmem:[%s53] ss:$8 sm:$0xf0] %vm50, %v49
    %s55 = scalar_lea.vmem %s0, 8
    %v56 = vld [vmem:[%s55] sm:$0xff]
    %57 = vrot.lane.b32.xlu0 %v56, 104
    %v58 = vpop.permute.xlu0 %57
    %vm59 = vcmask 64512
    %s60 = scalar_lea.vmem [#allocation0], 67
    %61 = vst.msk [vmem:[%s60] ss:$8 sm:$0xf] %vm59, %v58
    %s62 = scalar_lea.vmem [#allocation0], 67
    %63 = vst.msk [vmem:[%s62] ss:$8 sm:$0xf0] %vm59, %v58
    %s65 = sshll.u32 1, 4
    %s66 = ssub.s32 %s65, 1
    %v68 = vld [vmem:[#allocation0] sm:%s66]
    %s69 = sshll.u32 1, 4
    %s70 = ssub.s32 %s69, 1
    %71 = vst [vmem:[%s1] sm:%s70] %v68
    %s72 = scalar_lea.vmem [#allocation0], 8
    %v73 = vld [vmem:[%s72] sm:%s66]
    %s74 = sshll.u32 1, 4
    %s75 = ssub.s32 %s74, 1
    %s76 = scalar_lea.vmem %s1, 4
    %77 = vst [vmem:[%s76] sm:%s75] %v73
    %s78 = scalar_lea.vmem [#allocation0], 16
    %v79 = vld [vmem:[%s78] sm:%s66]
    %s80 = sshll.u32 1, 4
    %s81 = ssub.s32 %s80, 1
    %s82 = smul.addr 4, 2
    %s83 = scalar_lea.vmem %s1, %s82
    %84 = vst [vmem:[%s83] sm:%s81] %v79
    %s85 = scalar_lea.vmem [#allocation0], 24
    %v86 = vld [vmem:[%s85] sm:%s66]
    %s87 = sshll.u32 1, 4
    %s88 = ssub.s32 %s87, 1
    %s89 = smul.addr 4, 3
    %s90 = scalar_lea.vmem %s1, %s89
    %91 = vst [vmem:[%s90] sm:%s88] %v86
    %s92 = scalar_lea.vmem [#allocation0], 32
    %v93 = vld [vmem:[%s92] sm:%s66]
    %s94 = sshll.u32 1, 4
    %s95 = ssub.s32 %s94, 1
    %s96 = smul.addr 4, 4
    %s97 = scalar_lea.vmem %s1, %s96
    %98 = vst [vmem:[%s97] sm:%s95] %v93
    %s99 = scalar_lea.vmem [#allocation0], 40
    %v100 = vld [vmem:[%s99] sm:%s66]
    %s101 = sshll.u32 1, 4
    %s102 = ssub.s32 %s101, 1
    %s103 = smul.addr 4, 5
    %s104 = scalar_lea.vmem %s1, %s103
    %105 = vst [vmem:[%s104] sm:%s102] %v100
    %s106 = scalar_lea.vmem [#allocation0], 48
    %v107 = vld [vmem:[%s106] sm:%s66]
    %s108 = sshll.u32 1, 4
    %s109 = ssub.s32 %s108, 1
    %s110 = smul.addr 4, 6
    %s111 = scalar_lea.vmem %s1, %s110
    %112 = vst [vmem:[%s111] sm:%s109] %v107
    %s113 = scalar_lea.vmem [#allocation0], 56
    %v114 = vld [vmem:[%s113] sm:%s66]
    %s115 = sshll.u32 1, 4
    %s116 = ssub.s32 %s115, 1
    %s117 = smul.addr 4, 7
    %s118 = scalar_lea.vmem %s1, %s117
    %119 = vst [vmem:[%s118] sm:%s116] %v114
    %s120 = scalar_lea.vmem [#allocation0], 64
    %v121 = vld [vmem:[%s120] sm:%s66]
    %s122 = sshll.u32 1, 4
    %s123 = ssub.s32 %s122, 1
    %s124 = smul.addr 4, 8
    %s125 = scalar_lea.vmem %s1, %s124
    %126 = vst [vmem:[%s125] sm:%s123] %v121
    %s127 = scalar_lea.vmem [#allocation0], 72
    %v128 = vld [vmem:[%s127] sm:%s66]
    %s129 = sshll.u32 1, 4
    %s130 = ssub.s32 %s129, 1
    %s131 = smul.addr 4, 9
    %s132 = scalar_lea.vmem %s1, %s131
    %133 = vst [vmem:[%s132] sm:%s130] %v128
    %s134 = scalar_lea.vmem [#allocation0], 80
    %v135 = vld [vmem:[%s134] sm:%s66]
    %s136 = sshll.u32 1, 4
    %s137 = ssub.s32 %s136, 1
    %s138 = smul.addr 4, 10
    %s139 = scalar_lea.vmem %s1, %s138
    %140 = vst [vmem:[%s139] sm:%s137] %v135
    %s141 = scalar_lea.vmem [#allocation0], 88
    %v142 = vld [vmem:[%s141] sm:%s66]
    %s143 = sshll.u32 1, 4
    %s144 = ssub.s32 %s143, 1
    %s145 = smul.addr 4, 11
    %s146 = scalar_lea.vmem %s1, %s145
    %147 = vst [vmem:[%s146] sm:%s144] %v142
    %s148 = scalar_lea.vmem [#allocation0], 96
    %v149 = vld [vmem:[%s148] sm:%s66]
    %s150 = sshll.u32 1, 4
    %s151 = ssub.s32 %s150, 1
    %s152 = smul.addr 4, 12
    %s153 = scalar_lea.vmem %s1, %s152
    %154 = vst [vmem:[%s153] sm:%s151] %v149
    %s155 = scalar_lea.vmem [#allocation0], 104
    %v156 = vld [vmem:[%s155] sm:%s66]
    %s157 = sshll.u32 1, 4
    %s158 = ssub.s32 %s157, 1
    %s159 = smul.addr 4, 13
    %s160 = scalar_lea.vmem %s1, %s159
    %161 = vst [vmem:[%s160] sm:%s158] %v156
    %s162 = scalar_lea.vmem [#allocation0], 112
    %v163 = vld [vmem:[%s162] sm:%s66]
    %s164 = sshll.u32 1, 4
    %s165 = ssub.s32 %s164, 1
    %s166 = smul.addr 4, 14
    %s167 = scalar_lea.vmem %s1, %s166
    %168 = vst [vmem:[%s167] sm:%s165] %v163
    %s169 = scalar_lea.vmem [#allocation0], 120
    %v170 = vld [vmem:[%s169] sm:%s66]
    %s171 = sshll.u32 1, 4
    %s172 = ssub.s32 %s171, 1
    %s173 = smul.addr 4, 15
    %s174 = scalar_lea.vmem %s1, %s173
    %175 = vst [vmem:[%s174] sm:%s172] %v170

// kernel: encoder.1
$region0: #{encoder.1}
  #allocation0 [shape = 'u32[]', space=smem, size = 0x4, offset = 0x4, fixed_abs, tag = 'smem constant byte address 0x4 - core index']
  #allocation1 [shape = 'u32[144,128]{1,0:T(1,128)}', space=vmem, size = 0x12000, scoped, tag = 'internal scratch']
  %s0 = inlined_call_operand.vmem [shape: f32[16,32], index: 0, kind: input, shape index: {}]
  %s1 = inlined_call_operand.vmem [shape: f32[2,1,32], index: 1, kind: input, shape index: {}, may-alias: {1,7}]
  %s2 = inlined_call_operand.vmem [shape: f32[2,1,32], index: 2, kind: input, shape index: {}, may-alias: {2,6,8,12}]
  %s3 = inlined_call_operand.vmem [shape: f32[2,32,96], index: 3, kind: input, shape index: {}]
  %s4 = inlined_call_operand.vmem [shape: f32[2,1,96], index: 4, kind: input, shape index: {}]
  %s5 = inlined_call_operand.vmem [shape: f32[2,32,32], index: 5, kind: input, shape index: {}]
  %s6 = inlined_call_operand.vmem [shape: f32[2,1,32], index: 6, kind: input, shape index: {}, may-alias: {2,6,8,12}]
  %s7 = inlined_call_operand.vmem [shape: f32[2,1,32], index: 7, kind: input, shape index: {}, may-alias: {1,7}]
  %s8 = inlined_call_operand.vmem [shape: f32[2,1,32], index: 8, kind: input, shape index: {}, may-alias: {2,6,8,12}]
  %s9 = inlined_call_operand.vmem [shape: f32[2,32,128], index: 9, kind: input, shape index: {}]
  %s10 = inlined_call_operand.vmem [shape: f32[2,1,128], index: 10, kind: input, shape index: {}]
  %s11 = inlined_call_operand.hbm [shape: f32[2,128,32], index: 11, kind: input, shape index: {}]
  %s12 = inlined_call_operand.vmem [shape: f32[2,1,32], index: 12, kind: input, shape index: {}, may-alias: {2,6,8,12}]
  %s13 = inlined_call_operand.vmem [shape: f32[1,32], index: 13, kind: input, shape index: {}]
  %s14 = inlined_call_operand.vmem [shape: f32[1,32], index: 14, kind: input, shape index: {}]
  %s15 = inlined_call_operand.vmem [shape: f32[32,64], index: 15, kind: input, shape index: {}]
  %s16 = inlined_call_operand.hbm [shape: f32[16,64], index: 16, kind: output, shape index: {0}]
  %s17 = inlined_call_operand.vmem [shape: f32[2,2,16,32], index: 17, kind: output, shape index: {1}]
  %18 = xla_tuple %s16, %s17
  %s19 = sld [smem:[#allocation0]]
  $region86: #{encoder.1} parent=0
    _
  %s21 = ssub.s32 1, %s19
  %s22 = scalar_select 0, %s21, %s19
  $region1: #{encoder.1} parent=0
    #allocation2 [shape = 'u8[131072]{0}', space=vmem, size = 0x20000, scoped, tag = 'input window, operand 11, single buffered']
    #allocation3 [shape = 's32[1]{0}', space=sflag, size = 0x4, scoped, tag = 'scoped memory for encoder.1']
    #allocation4 [shape = 's32[1]{0}', space=sflag, size = 0x4, scoped, tag = 'scoped memory for encoder.1']
    #allocation5 [shape = 'u8[8192]{0}', space=vmem, size = 0x2000, scoped, tag = 'output window, operand 0, single buffered']
    %23 = vsyncpa [#allocation3], 0
    %24 = vsyncpa [#allocation4], 0
    // Predicated region
    $region2: #{encoder.1} parent=1 // pred_check
      _
    $region3: #{encoder.1} parent=1 // pred_check_branch
      %26 = sbr.rel (0) target = $region5
    $region4: #{encoder.1} parent=1 // pred_region
      _
    $region5: #{encoder.1} parent=1 // pred_fallthru
      _
    // Predicated region
    $region6: #{encoder.1} parent=1 // pred_check
      _
    $region7: #{encoder.1} parent=1 // pred_check_branch
      %28 = sbr.rel (0) target = $region9
    $region8: #{encoder.1} parent=1 // pred_region
      _
    $region9: #{encoder.1} parent=1 // pred_fallthru
      _
    // Predicated region
    $region10: #{encoder.1} parent=1 // pred_check
      _
    $region11: #{encoder.1} parent=1 // pred_check_branch
      %30 = sbr.rel (0) target = $region13
    $region12: #{encoder.1} parent=1 // pred_region
      _
    $region13: #{encoder.1} parent=1 // pred_fallthru
      _
    // Predicated region
    $region14: #{encoder.1} parent=1 // pred_check
      _
    $region15: #{encoder.1} parent=1 // pred_check_branch
      %32 = sbr.rel (0) target = $region17
    $region16: #{encoder.1} parent=1 // pred_region
      _
    $region17: #{encoder.1} parent=1 // pred_fallthru
      _
    // Predicated region
    $region18: #{encoder.1} parent=1 // pred_check
      _
    $region19: #{encoder.1} parent=1 // pred_check_branch
      %34 = sbr.rel (0) target = $region21
    $region20: #{encoder.1} parent=1 // pred_region
      _
    $region21: #{encoder.1} parent=1 // pred_fallthru
      _
    // Predicated region
    $region22: #{encoder.1} parent=1 // pred_check
      _
    $region23: #{encoder.1} parent=1 // pred_check_branch
      %36 = sbr.rel (0) target = $region25
    $region24: #{encoder.1} parent=1 // pred_region
      _
    $region25: #{encoder.1} parent=1 // pred_fallthru
      _
    // Predicated region
    $region26: #{encoder.1} parent=1 // pred_check
      _
    $region27: #{encoder.1} parent=1 // pred_check_branch
      %38 = sbr.rel (0) target = $region29
    $region28: #{encoder.1} parent=1 // pred_region
      _
    $region29: #{encoder.1} parent=1 // pred_fallthru
      _
    // Predicated region
    $region30: #{encoder.1} parent=1 // pred_check
      _
    $region31: #{encoder.1} parent=1 // pred_check_branch
      %40 = sbr.rel (0) target = $region33
    $region32: #{encoder.1} parent=1 // pred_region
      _
    $region33: #{encoder.1} parent=1 // pred_fallthru
      _
    // Predicated region
    $region34: #{encoder.1} parent=1 // pred_check
      _
    $region35: #{encoder.1} parent=1 // pred_check_branch
      %42 = sbr.rel (0) target = $region37
    $region36: #{encoder.1} parent=1 // pred_region
      _
    $region37: #{encoder.1} parent=1 // pred_fallthru
      _
    // Predicated region
    $region38: #{encoder.1} parent=1 // pred_check
      _
    $region39: #{encoder.1} parent=1 // pred_check_branch
      %44 = sbr.rel (0) target = $region41
    $region40: #{encoder.1} parent=1 // pred_region
      _
    $region41: #{encoder.1} parent=1 // pred_fallthru
      _
    // Predicated region
    $region42: #{encoder.1} parent=1 // pred_check
      _
    $region43: #{encoder.1} parent=1 // pred_check_branch
      %46 = sbr.rel (0) target = $region45
    $region44: #{encoder.1} parent=1 // pred_region
      _
    $region45: #{encoder.1} parent=1 // pred_fallthru
      _
    // Predicated region
    $region46: #{encoder.1} parent=1 // pred_check
      _
    $region47: #{encoder.1} parent=1 // pred_check_branch
      %48 = sbr.rel (0) target = $region49
    $region48: #{encoder.1} parent=1 // pred_region
      %s50 = ssub.s32 4096, 4096
      %51 = vsyncadd [#allocation3], %s50
      %s52 = sshll.u32 [#allocation2], 4
      %s53 = int_to_ptr.vmem [resolvable:$true] %s52
      %58 = dma.hbm_to_vmem [thread:$0]  %s11, 4096, %s53, [#allocation3], 128, 128, 8
    $region49: #{encoder.1} parent=1 // pred_fallthru
      _
    // Predicated region
    $region50: #{encoder.1} parent=1 // pred_check
      _
    $region51: #{encoder.1} parent=1 // pred_check_branch
      %60 = sbr.rel (0) target = $region53
    $region52: #{encoder.1} parent=1 // pred_region
      _
    $region53: #{encoder.1} parent=1 // pred_fallthru
      _
    // Predicated region
    $region54: #{encoder.1} parent=1 // pred_check
      _
    $region55: #{encoder.1} parent=1 // pred_check_branch
      %62 = sbr.rel (0) target = $region57
    $region56: #{encoder.1} parent=1 // pred_region
      _
    $region57: #{encoder.1} parent=1 // pred_fallthru
      _
    // Predicated region
    $region58: #{encoder.1} parent=1 // pred_check
      _
    $region59: #{encoder.1} parent=1 // pred_check_branch
      %64 = sbr.rel (0) target = $region61
    $region60: #{encoder.1} parent=1 // pred_region
      _
    $region61: #{encoder.1} parent=1 // pred_fallthru
      _
    // Predicated region
    $region62: #{encoder.1} parent=1 // pred_check
      _
    $region63: #{encoder.1} parent=1 // pred_check_branch
      %66 = sbr.rel (0) target = $region65
    $region64: #{encoder.1} parent=1 // pred_region
      _
    $region65: #{encoder.1} parent=1 // pred_fallthru
      _
    // Predicated region
    $region66: #{encoder.1} parent=1 // pred_check
      _
    $region67: #{encoder.1} parent=1 // pred_check_branch
      %68 = sbr.rel (0) target = $region69
    $region68: #{encoder.1} parent=1 // pred_region
      %69 = dma.done [#allocation3], 4096
    $region69: #{encoder.1} parent=1 // pred_fallthru
      _
    %v70 = vlaneseq
    %v71 = vshrl.u32 %v70, 7
    %v72 = vlaneseq
    %v73 = vand.u32 %v72, 127
    %vm74 = vcmp.le.s32.totalorder %v73, %v71
    %v75 = vld [vmem:[%s0] sm:$0xff]
    %v76 = vld [vmem:[%s0 + $0x8] sm:$0xff]
    %v77 = vld [vmem:[%s1] sm:$0x1]
    %v78 = vld [vmem:[%s2] sm:$0x1]
    %vm79 = vcmask 261120
    %v80 = vsel %vm79, %v75, 0.0
    %81 = vadd.xlane.f32.xlu0 %v80
    %v82 = vpop.xlane.xlu0 %81
    %v83 = vsel %vm79, %v76, 0.0
    %84 = vadd.xlane.f32.xlu0 %v83
    %v85 = vpop.xlane.xlu0 %84
    %v86 = vrcp.pop 32.0
    %v87 = vmul.f32 %v82, %v86
    %v88 = vmul.f32 %v85, %v86
    %v89 = vsub.f32 %v75, %v87
    %v90 = vsub.f32 %v76, %v88
    %v91 = vmul.f32 %v89, %v89
    %v92 = vmul.f32 %v90, %v90
    %v93 = vsel %vm79, %v91, 0.0
    %94 = vadd.xlane.f32.xlu0 %v93
    %v95 = vpop.xlane.xlu0 %94
    %v96 = vsel %vm79, %v92, 0.0
    %97 = vadd.xlane.f32.xlu0 %v96
    %v98 = vpop.xlane.xlu0 %97
    %v99 = vmul.f32 %v95, %v86
    %v100 = vmul.f32 %v98, %v86
    %v101 = vadd.f32 %v99, 1e-05
    %v102 = vadd.f32 %v100, 1e-05
    %v103 = vrsqrt.pop %v101
    %v104 = vrsqrt.pop %v102
    %v105 = vmul.f32 %v89, %v103
    %v106 = vmul.f32 %v90, %v104
    %v108 = vlaneseq
    %v109 = vshrl.u32 %v108, 7
    %v110 = vsub.s32 0, %v109
    %v111 = vrot.slane %v77, %v110
    %v113 = vmul.f32 %v105, %v111
    %v114 = vmul.f32 %v106, %v111
    %v116 = vlaneseq
    %v117 = vshrl.u32 %v116, 7
    %v118 = vsub.s32 0, %v117
    %v119 = vrot.slane %v78, %v118
    %v121 = vadd.f32 %v113, %v119
    %v122 = vadd.f32 %v114, %v119
    %v123 = vld [vmem:[%s3] sm:$0xff]
    %v124 = vld [vmem:[%s3 + $0x8] sm:$0xff]
    %v125 = vld [vmem:[%s3 + $0x10] sm:$0xff]
    %v126 = vld [vmem:[%s3 + $0x18] sm:$0xff]
    %v127 = vld [vmem:[%s4] sm:$0x1]
    %v129 = vlaneseq
    %v130 = vshrl.u32 %v129, 7
    %v131 = vsub.s32 0, %v130
    %v132 = vrot.slane %v127, %v131
    %v135 = vsel %vm79, %v121, 0
    %v138 = vsel %vm79, %v122, 0
    %140 = vmatprep.subr.mxu0 0.0
    %141 = vmatpush1.msra.mxu0 0.0
    %142 = vmatprep.subr.mxu0 0.0
    %143 = vmatpush1.msra.mxu0 0.0
    %144 = vmatprep.subr.mxu0 0.0
    %145 = vmatpush1.msra.mxu0 0.0
    %146 = vmatprep.subr.mxu0 0.0
    %147 = vmatpush1.msra.mxu0 0.0
    %148 = vmatprep.subr.mxu0 0.0
    %149 = vmatpush1.msra.mxu0 0.0
    %150 = vmatprep.subr.mxu0 0.0
    %151 = vmatpush1.msra.mxu0 0.0
    %152 = vmatprep.subr.mxu0 0.0
    %153 = vmatpush1.msra.mxu0 0.0
    %154 = vmatprep.subr.mxu0 0.0
    %155 = vmatpush1.msra.mxu0 0.0
    %156 = vmatprep.subr.mxu0 0.0
    %157 = vmatpush1.msra.mxu0 0.0
    %158 = vmatprep.subr.mxu0 0.0
    %159 = vmatpush1.msra.mxu0 0.0
    %160 = vmatprep.subr.mxu0 0.0
    %161 = vmatpush1.msra.mxu0 0.0
    %162 = vmatprep.subr.mxu0 0.0
    %163 = vmatpush1.msra.mxu0 0.0
    %164 = vmatprep.subr.mxu0 0.0
    %165 = vmatpush1.msra.mxu0 %v126
    %166 = vmatprep.subr.mxu0 0.0
    %167 = vmatpush1.msra.mxu0 %v125
    %168 = vmatprep.subr.mxu0 0.0
    %169 = vmatpush1.msra.mxu0 %v124
    %170 = vmatprep.subr.mxu0 0.0
    %171 = vmatpush1.msra.mxu0 %v123
    %172 = vmatprep.subr.mxu0 0.0
    %173 = vmatpush2.msra.mxu0 0.0
    %174 = vmatprep.subr.mxu0 0.0
    %175 = vmatpush2.msra.mxu0 0.0
    %176 = vmatprep.subr.mxu0 0.0
    %177 = vmatpush2.msra.mxu0 0.0
    %178 = vmatprep.subr.mxu0 0.0
    %179 = vmatpush2.msra.mxu0 0.0
    %180 = vmatprep.subr.mxu0 0.0
    %181 = vmatpush2.msra.mxu0 0.0
    %182 = vmatprep.subr.mxu0 0.0
    %183 = vmatpush2.msra.mxu0 0.0
    %184 = vmatprep.subr.mxu0 0.0
    %185 = vmatpush2.msra.mxu0 0.0
    %186 = vmatprep.subr.mxu0 0.0
    %187 = vmatpush2.msra.mxu0 0.0
    %188 = vmatprep.subr.mxu0 0.0
    %189 = vmatpush2.msra.mxu0 0.0
    %190 = vmatprep.subr.mxu0 0.0
    %191 = vmatpush2.msra.mxu0 0.0
    %192 = vmatprep.subr.mxu0 0.0
    %193 = vmatpush2.msra.mxu0 0.0
    %194 = vmatprep.subr.mxu0 0.0
    %195 = vmatpush2.msra.mxu0 0.0
    %196 = vmatprep.subr.mxu0 0.0
    %197 = vmatpush2.msra.mxu0 0.0
    %198 = vmatprep.subr.mxu0 0.0
    %199 = vmatpush2.msra.mxu0 0.0
    %200 = vmatprep.subr.mxu0 0.0
    %201 = vmatpush2.msra.mxu0 0.0
    %202 = vmatprep.subr.mxu0 0.0
    %203 = vmatpush2.msra.mxu0 0.0
    %204 = vmatprep.mubr.f32.mxu0 0.0
    %205 = vmatmul.mubr.f32.gmra.mxu0 %v135
    %v206 = vpop.f32.mrf.mxu0
    %v207 = vadd.f32 %v132, %v206
    %v208 = vpop.f32.mrf.mxu0
    %209 = vmatprep.mubr.f32.mxu0 0.0
    %210 = vmatmul.mubr.f32.gmra.mxu0 %v138
    %v211 = vpop.f32.mrf.mxu0
    %v212 = vadd.f32 %v132, %v211
    %v213 = vpop.f32.mrf.mxu0
    %214 = vdwg.mxu0
    %217 = vrot.lane.b32.xlu0 %v207, 96
    %v218 = vpop.permute.xlu0 %217
    %219 = vrot.lane.b32.xlu0 %v212, 96
    %v220 = vpop.permute.xlu0 %219
    %223 = vst.msk [vmem:[%s17] sm:$0xff] %vm79, %v218
    %224 = vst.msk [vmem:[%s17 + $0x8] sm:$0xff] %vm79, %v220
    %225 = vrot.lane.b32.xlu0 %v207, 64
    %v226 = vpop.permute.xlu0 %225
    %227 = vrot.lane.b32.xlu0 %v212, 64
    %v228 = vpop.permute.xlu0 %227
    %s231 = scalar_lea.vmem %s17, 16
    %232 = vst.msk [vmem:[%s231] sm:$0xff] %vm79, %v226
    %233 = vst.msk [vmem:[%s231 + $0x8] sm:$0xff] %vm79, %v228
    %vm234 = vcmask 64512
    %v235 = vsel %vm234, %v207, 0
    %v237 = vsel %vm234, %v218, 0
    %239 = vmatprep.subr.mxu0 0.0
    %240 = vmatpush1.xpose.msra.mxu0 0.0
    %241 = vmatprep.subr.mxu0 0.0
    %242 = vmatpush1.xpose.msra.mxu0 0.0
    %243 = vmatprep.subr.mxu0 0.0
    %244 = vmatpush1.xpose.msra.mxu0 0.0
    %245 = vmatprep.subr.mxu0 0.0
    %246 = vmatpush1.xpose.msra.mxu0 0.0
    %247 = vmatprep.subr.mxu0 0.0
    %248 = vmatpush1.xpose.msra.mxu0 0.0
    %249 = vmatprep.subr.mxu0 0.0
    %250 = vmatpush1.xpose.msra.mxu0 0.0
    %251 = vmatprep.subr.mxu0 0.0
    %252 = vmatpush1.xpose.msra.mxu0 0.0
    %253 = vmatprep.subr.mxu0 0.0
    %254 = vmatpush1.xpose.msra.mxu0 0.0
    %255 = vmatprep.subr.mxu0 0.0
    %256 = vmatpush1.xpose.msra.mxu0 0.0
    %257 = vmatprep.subr.mxu0 0.0
    %258 = vmatpush1.xpose.msra.mxu0 0.0
    %259 = vmatprep.subr.mxu0 0.0
    %260 = vmatpush1.xpose.msra.mxu0 0.0
    %261 = vmatprep.subr.mxu0 0.0
    %262 = vmatpush1.xpose.msra.mxu0 0.0
    %263 = vmatprep.subr.mxu0 0.0
    %264 = vmatpush1.xpose.msra.mxu0 0.0
    %265 = vmatprep.subr.mxu0 0.0
    %266 = vmatpush1.xpose.msra.mxu0 0.0
    %267 = vmatprep.subr.mxu0 0.0
    %268 = vmatpush1.xpose.msra.mxu0 0.0
    %269 = vmatprep.subr.mxu0 0.0
    %270 = vmatpush1.xpose.msra.mxu0 %v237
    %271 = vmatprep.subr.mxu0 0.0
    %272 = vmatpush2.xpose.msra.mxu0 0.0
    %273 = vmatprep.subr.mxu0 0.0
    %274 = vmatpush2.xpose.msra.mxu0 0.0
    %275 = vmatprep.subr.mxu0 0.0
    %276 = vmatpush2.xpose.msra.mxu0 0.0
    %277 = vmatprep.subr.mxu0 0.0
    %278 = vmatpush2.xpose.msra.mxu0 0.0
    %279 = vmatprep.subr.mxu0 0.0
    %280 = vmatpush2.xpose.msra.mxu0 0.0
    %281 = vmatprep.subr.mxu0 0.0
    %282 = vmatpush2.xpose.msra.mxu0 0.0
    %283 = vmatprep.subr.mxu0 0.0
    %284 = vmatpush2.xpose.msra.mxu0 0.0
    %285 = vmatprep.subr.mxu0 0.0
    %286 = vmatpush2.xpose.msra.mxu0 0.0
    %287 = vmatprep.subr.mxu0 0.0
    %288 = vmatpush2.xpose.msra.mxu0 0.0
    %289 = vmatprep.subr.mxu0 0.0
    %290 = vmatpush2.xpose.msra.mxu0 0.0
    %291 = vmatprep.subr.mxu0 0.0
    %292 = vmatpush2.xpose.msra.mxu0 0.0
    %293 = vmatprep.subr.mxu0 0.0
    %294 = vmatpush2.xpose.msra.mxu0 0.0
    %295 = vmatprep.subr.mxu0 0.0
    %296 = vmatpush2.xpose.msra.mxu0 0.0
    %297 = vmatprep.subr.mxu0 0.0
    %298 = vmatpush2.xpose.msra.mxu0 0.0
    %299 = vmatprep.subr.mxu0 0.0
    %300 = vmatpush2.xpose.msra.mxu0 0.0
    %301 = vmatprep.subr.mxu0 0.0
    %302 = vmatpush2.xpose.msra.mxu0 0.0
    %303 = vmatprep.mubr.f32.mxu0 0.0
    %304 = vmatmul.mubr.f32.gmra.mxu0 %v235
    %v305 = vpop.f32.mrf.mxu0
    %v306 = vadd.f32 0.0, %v305
    %v307 = vpop.f32.mrf.mxu0
    %308 = vdwg.mxu0
    %v309 = vsel %vm234, %v212, 0
    %v311 = vsel %vm234, %v220, 0
    %313 = vmatprep.subr.mxu0 0.0
    %314 = vmatpush1.xpose.msra.mxu0 0.0
    %315 = vmatprep.subr.mxu0 0.0
    %316 = vmatpush1.xpose.msra.mxu0 0.0
    %317 = vmatprep.subr.mxu0 0.0
    %318 = vmatpush1.xpose.msra.mxu0 0.0
    %319 = vmatprep.subr.mxu0 0.0
    %320 = vmatpush1.xpose.msra.mxu0 0.0
    %321 = vmatprep.subr.mxu0 0.0
    %322 = vmatpush1.xpose.msra.mxu0 0.0
    %323 = vmatprep.subr.mxu0 0.0
    %324 = vmatpush1.xpose.msra.mxu0 0.0
    %325 = vmatprep.subr.mxu0 0.0
    %326 = vmatpush1.xpose.msra.mxu0 0.0
    %327 = vmatprep.subr.mxu0 0.0
    %328 = vmatpush1.xpose.msra.mxu0 0.0
    %329 = vmatprep.subr.mxu0 0.0
    %330 = vmatpush1.xpose.msra.mxu0 0.0
    %331 = vmatprep.subr.mxu0 0.0
    %332 = vmatpush1.xpose.msra.mxu0 0.0
    %333 = vmatprep.subr.mxu0 0.0
    %334 = vmatpush1.xpose.msra.mxu0 0.0
    %335 = vmatprep.subr.mxu0 0.0
    %336 = vmatpush1.xpose.msra.mxu0 0.0
    %337 = vmatprep.subr.mxu0 0.0
    %338 = vmatpush1.xpose.msra.mxu0 0.0
    %339 = vmatprep.subr.mxu0 0.0
    %340 = vmatpush1.xpose.msra.mxu0 0.0
    %341 = vmatprep.subr.mxu0 0.0
    %342 = vmatpush1.xpose.msra.mxu0 0.0
    %343 = vmatprep.subr.mxu0 0.0
    %344 = vmatpush1.xpose.msra.mxu0 %v311
    %345 = vmatprep.subr.mxu0 0.0
    %346 = vmatpush2.xpose.msra.mxu0 0.0
    %347 = vmatprep.subr.mxu0 0.0
    %348 = vmatpush2.xpose.msra.mxu0 0.0
    %349 = vmatprep.subr.mxu0 0.0
    %350 = vmatpush2.xpose.msra.mxu0 0.0
    %351 = vmatprep.subr.mxu0 0.0
    %352 = vmatpush2.xpose.msra.mxu0 0.0
    %353 = vmatprep.subr.mxu0 0.0
    %354 = vmatpush2.xpose.msra.mxu0 0.0
    %355 = vmatprep.subr.mxu0 0.0
    %356 = vmatpush2.xpose.msra.mxu0 0.0
    %357 = vmatprep.subr.mxu0 0.0
    %358 = vmatpush2.xpose.msra.mxu0 0.0
    %359 = vmatprep.subr.mxu0 0.0
    %360 = vmatpush2.xpose.msra.mxu0 0.0
    %361 = vmatprep.subr.mxu0 0.0
    %362 = vmatpush2.xpose.msra.mxu0 0.0
    %363 = vmatprep.subr.mxu0 0.0
    %364 = vmatpush2.xpose.msra.mxu0 0.0
    %365 = vmatprep.subr.mxu0 0.0
    %366 = vmatpush2.xpose.msra.mxu0 0.0
    %367 = vmatprep.subr.mxu0 0.0
    %368 = vmatpush2.xpose.msra.mxu0 0.0
    %369 = vmatprep.subr.mxu0 0.0
    %370 = vmatpush2.xpose.msra.mxu0 0.0
    %371 = vmatprep.subr.mxu0 0.0
    %372 = vmatpush2.xpose.msra.mxu0 0.0
    %373 = vmatprep.subr.mxu0 0.0
    %374 = vmatpush2.xpose.msra.mxu0 0.0
    %375 = vmatprep.subr.mxu0 0.0
    %376 = vmatpush2.xpose.msra.mxu0 0.0
    %377 = vmatprep.mubr.f32.mxu0 0.0
    %378 = vmatmul.mubr.f32.gmra.mxu0 %v309
    %v379 = vpop.f32.mrf.mxu0
    %v380 = vadd.f32 0.0, %v379
    %v381 = vpop.f32.mrf.mxu0
    %382 = vdwg.mxu0
    %v383 = vmul.f32 %v306, 0.35355338
    %v384 = vmul.f32 %v380, 0.35355338
    %v385 = vsel %vm74, %v383, -1e+30
    %v386 = vsel %vm74, %v384, -1e+30
    %v387 = vsel %vm234, %v385, -inf
    %388 = vmax.xlane.f32.xlu0 %v387
    %v389 = vpop.xlane.xlu0 %388
    %v390 = vsel %vm234, %v386, -inf
    %391 = vmax.xlane.f32.xlu0 %v390
    %v392 = vpop.xlane.xlu0 %391
    %v393 = vsub.f32 %v385, %v389
    %v394 = vsub.f32 %v386, %v392
    %v395 = vmul.f32 %v393, 1.442695
    %v396 = vpow.pop %v395
    %v397 = vmul.f32 %v394, 1.442695
    %v398 = vpow.pop %v397
    %v399 = vsel %vm234, %v396, 0.0
    %400 = vadd.xlane.f32.xlu0 %v399
    %v401 = vpop.xlane.xlu0 %400
    %v402 = vsel %vm234, %v398, 0.0
    %403 = vadd.xlane.f32.xlu0 %v402
    %v404 = vpop.xlane.xlu0 %403
    %v405 = vrcp.pop %v401
    %v406 = vrcp.pop %v404
    %v407 = vmul.f32 %v396, %v405
    %v408 = vmul.f32 %v398, %v406
    %v410 = vsel %vm234, %v407, 0
    %412 = vmatprep.subr.mxu0 0.0
    %413 = vmatpush1.msra.mxu0 0.0
    %414 = vmatprep.subr.mxu0 0.0
    %415 = vmatpush1.msra.mxu0 0.0
    %416 = vmatprep.subr.mxu0 0.0
    %417 = vmatpush1.msra.mxu0 0.0
    %418 = vmatprep.subr.mxu0 0.0
    %419 = vmatpush1.msra.mxu0 0.0
    %420 = vmatprep.subr.mxu0 0.0
    %421 = vmatpush1.msra.mxu0 0.0
    %422 = vmatprep.subr.mxu0 0.0
    %423 = vmatpush1.msra.mxu0 0.0
    %424 = vmatprep.subr.mxu0 0.0
    %425 = vmatpush1.msra.mxu0 0.0
    %426 = vmatprep.subr.mxu0 0.0
    %427 = vmatpush1.msra.mxu0 0.0
    %428 = vmatprep.subr.mxu0 0.0
    %429 = vmatpush1.msra.mxu0 0.0
    %430 = vmatprep.subr.mxu0 0.0
    %431 = vmatpush1.msra.mxu0 0.0
    %432 = vmatprep.subr.mxu0 0.0
    %433 = vmatpush1.msra.mxu0 0.0
    %434 = vmatprep.subr.mxu0 0.0
    %435 = vmatpush1.msra.mxu0 0.0
    %436 = vmatprep.subr.mxu0 0.0
    %437 = vmatpush1.msra.mxu0 0.0
    %438 = vmatprep.subr.mxu0 0.0
    %439 = vmatpush1.msra.mxu0 0.0
    %440 = vmatprep.subr.mxu0 0.0
    %441 = vmatpush1.msra.mxu0 0.0
    %442 = vmatprep.subr.mxu0 0.0
    %443 = vmatpush1.msra.mxu0 %v226
    %444 = vmatprep.subr.mxu0 0.0
    %445 = vmatpush2.msra.mxu0 0.0
    %446 = vmatprep.subr.mxu0 0.0
    %447 = vmatpush2.msra.mxu0 0.0
    %448 = vmatprep.subr.mxu0 0.0
    %449 = vmatpush2.msra.mxu0 0.0
    %450 = vmatprep.subr.mxu0 0.0
    %451 = vmatpush2.msra.mxu0 0.0
    %452 = vmatprep.subr.mxu0 0.0
    %453 = vmatpush2.msra.mxu0 0.0
    %454 = vmatprep.subr.mxu0 0.0
    %455 = vmatpush2.msra.mxu0 0.0
    %456 = vmatprep.subr.mxu0 0.0
    %457 = vmatpush2.msra.mxu0 0.0
    %458 = vmatprep.subr.mxu0 0.0
    %459 = vmatpush2.msra.mxu0 0.0
    %460 = vmatprep.subr.mxu0 0.0
    %461 = vmatpush2.msra.mxu0 0.0
    %462 = vmatprep.subr.mxu0 0.0
    %463 = vmatpush2.msra.mxu0 0.0
    %464 = vmatprep.subr.mxu0 0.0
    %465 = vmatpush2.msra.mxu0 0.0
    %466 = vmatprep.subr.mxu0 0.0
    %467 = vmatpush2.msra.mxu0 0.0
    %468 = vmatprep.subr.mxu0 0.0
    %469 = vmatpush2.msra.mxu0 0.0
    %470 = vmatprep.subr.mxu0 0.0
    %471 = vmatpush2.msra.mxu0 0.0
    %472 = vmatprep.subr.mxu0 0.0
    %473 = vmatpush2.msra.mxu0 0.0
    %474 = vmatprep.subr.mxu0 0.0
    %475 = vmatpush2.msra.mxu0 0.0
    %476 = vmatprep.mubr.f32.mxu0 0.0
    %477 = vmatmul.mubr.f32.gmra.mxu0 %v410
    %v478 = vpop.f32.mrf.mxu0
    %v479 = vadd.f32 0.0, %v478
    %v480 = vpop.f32.mrf.mxu0
    %481 = vdwg.mxu0
    %v483 = vsel %vm234, %v408, 0
    %485 = vmatprep.subr.mxu0 0.0
    %486 = vmatpush1.msra.mxu0 0.0
    %487 = vmatprep.subr.mxu0 0.0
    %488 = vmatpush1.msra.mxu0 0.0
    %489 = vmatprep.subr.mxu0 0.0
    %490 = vmatpush1.msra.mxu0 0.0
    %491 = vmatprep.subr.mxu0 0.0
    %492 = vmatpush1.msra.mxu0 0.0
    %493 = vmatprep.subr.mxu0 0.0
    %494 = vmatpush1.msra.mxu0 0.0
    %495 = vmatprep.subr.mxu0 0.0
    %496 = vmatpush1.msra.mxu0 0.0
    %497 = vmatprep.subr.mxu0 0.0
    %498 = vmatpush1.msra.mxu0 0.0
    %499 = vmatprep.subr.mxu0 0.0
    %500 = vmatpush1.msra.mxu0 0.0
    %501 = vmatprep.subr.mxu0 0.0
    %502 = vmatpush1.msra.mxu0 0.0
    %503 = vmatprep.subr.mxu0 0.0
    %504 = vmatpush1.msra.mxu0 0.0
    %505 = vmatprep.subr.mxu0 0.0
    %506 = vmatpush1.msra.mxu0 0.0
    %507 = vmatprep.subr.mxu0 0.0
    %508 = vmatpush1.msra.mxu0 0.0
    %509 = vmatprep.subr.mxu0 0.0
    %510 = vmatpush1.msra.mxu0 0.0
    %511 = vmatprep.subr.mxu0 0.0
    %512 = vmatpush1.msra.mxu0 0.0
    %513 = vmatprep.subr.mxu0 0.0
    %514 = vmatpush1.msra.mxu0 0.0
    %515 = vmatprep.subr.mxu0 0.0
    %516 = vmatpush1.msra.mxu0 %v228
    %517 = vmatprep.subr.mxu0 0.0
    %518 = vmatpush2.msra.mxu0 0.0
    %519 = vmatprep.subr.mxu0 0.0
    %520 = vmatpush2.msra.mxu0 0.0
    %521 = vmatprep.subr.mxu0 0.0
    %522 = vmatpush2.msra.mxu0 0.0
    %523 = vmatprep.subr.mxu0 0.0
    %524 = vmatpush2.msra.mxu0 0.0
    %525 = vmatprep.subr.mxu0 0.0
    %526 = vmatpush2.msra.mxu0 0.0
    %527 = vmatprep.subr.mxu0 0.0
    %528 = vmatpush2.msra.mxu0 0.0
    %529 = vmatprep.subr.mxu0 0.0
    %530 = vmatpush2.msra.mxu0 0.0
    %531 = vmatprep.subr.mxu0 0.0
    %532 = vmatpush2.msra.mxu0 0.0
    %533 = vmatprep.subr.mxu0 0.0
    %534 = vmatpush2.msra.mxu0 0.0
    %535 = vmatprep.subr.mxu0 0.0
    %536 = vmatpush2.msra.mxu0 0.0
    %537 = vmatprep.subr.mxu0 0.0
    %538 = vmatpush2.msra.mxu0 0.0
    %539 = vmatprep.subr.mxu0 0.0
    %540 = vmatpush2.msra.mxu0 0.0
    %541 = vmatprep.subr.mxu0 0.0
    %542 = vmatpush2.msra.mxu0 0.0
    %543 = vmatprep.subr.mxu0 0.0
    %544 = vmatpush2.msra.mxu0 0.0
    %545 = vmatprep.subr.mxu0 0.0
    %546 = vmatpush2.msra.mxu0 0.0
    %547 = vmatprep.subr.mxu0 0.0
    %548 = vmatpush2.msra.mxu0 0.0
    %549 = vmatprep.mubr.f32.mxu0 0.0
    %550 = vmatmul.mubr.f32.gmra.mxu0 %v483
    %v551 = vpop.f32.mrf.mxu0
    %v552 = vadd.f32 0.0, %v551
    %v553 = vpop.f32.mrf.mxu0
    %554 = vdwg.mxu0
    %555 = vrot.lane.b32.xlu0 %v207, 120
    %v556 = vpop.permute.xlu0 %555
    %557 = vrot.lane.b32.xlu0 %v207, 88
    %v558 = vpop.permute.xlu0 %557
    %v559 = vsel %vm234, %v556, 0
    %v561 = vsel %vm234, %v558, 0
    %563 = vmatprep.subr.mxu0 0.0
    %564 = vmatpush1.xpose.msra.mxu0 0.0
    %565 = vmatprep.subr.mxu0 0.0
    %566 = vmatpush1.xpose.msra.mxu0 0.0
    %567 = vmatprep.subr.mxu0 0.0
    %568 = vmatpush1.xpose.msra.mxu0 0.0
    %569 = vmatprep.subr.mxu0 0.0
    %570 = vmatpush1.xpose.msra.mxu0 0.0
    %571 = vmatprep.subr.mxu0 0.0
    %572 = vmatpush1.xpose.msra.mxu0 0.0
    %573 = vmatprep.subr.mxu0 0.0
    %574 = vmatpush1.xpose.msra.mxu0 0.0
    %575 = vmatprep.subr.mxu0 0.0
    %576 = vmatpush1.xpose.msra.mxu0 0.0
    %577 = vmatprep.subr.mxu0 0.0
    %578 = vmatpush1.xpose.msra.mxu0 0.0
    %579 = vmatprep.subr.mxu0 0.0
    %580 = vmatpush1.xpose.msra.mxu0 0.0
    %581 = vmatprep.subr.mxu0 0.0
    %582 = vmatpush1.xpose.msra.mxu0 0.0
    %583 = vmatprep.subr.mxu0 0.0
    %584 = vmatpush1.xpose.msra.mxu0 0.0
    %585 = vmatprep.subr.mxu0 0.0
    %586 = vmatpush1.xpose.msra.mxu0 0.0
    %587 = vmatprep.subr.mxu0 0.0
    %588 = vmatpush1.xpose.msra.mxu0 0.0
    %589 = vmatprep.subr.mxu0 0.0
    %590 = vmatpush1.xpose.msra.mxu0 0.0
    %591 = vmatprep.subr.mxu0 0.0
    %592 = vmatpush1.xpose.msra.mxu0 0.0
    %593 = vmatprep.subr.mxu0 0.0
    %594 = vmatpush1.xpose.msra.mxu0 %v561
    %595 = vmatprep.subr.mxu0 0.0
    %596 = vmatpush2.xpose.msra.mxu0 0.0
    %597 = vmatprep.subr.mxu0 0.0
    %598 = vmatpush2.xpose.msra.mxu0 0.0
    %599 = vmatprep.subr.mxu0 0.0
    %600 = vmatpush2.xpose.msra.mxu0 0.0
    %601 = vmatprep.subr.mxu0 0.0
    %602 = vmatpush2.xpose.msra.mxu0 0.0
    %603 = vmatprep.subr.mxu0 0.0
    %604 = vmatpush2.xpose.msra.mxu0 0.0
    %605 = vmatprep.subr.mxu0 0.0
    %606 = vmatpush2.xpose.msra.mxu0 0.0
    %607 = vmatprep.subr.mxu0 0.0
    %608 = vmatpush2.xpose.msra.mxu0 0.0
    %609 = vmatprep.subr.mxu0 0.0
    %610 = vmatpush2.xpose.msra.mxu0 0.0
    %611 = vmatprep.subr.mxu0 0.0
    %612 = vmatpush2.xpose.msra.mxu0 0.0
    %613 = vmatprep.subr.mxu0 0.0
    %614 = vmatpush2.xpose.msra.mxu0 0.0
    %615 = vmatprep.subr.mxu0 0.0
    %616 = vmatpush2.xpose.msra.mxu0 0.0
    %617 = vmatprep.subr.mxu0 0.0
    %618 = vmatpush2.xpose.msra.mxu0 0.0
    %619 = vmatprep.subr.mxu0 0.0
    %620 = vmatpush2.xpose.msra.mxu0 0.0
    %621 = vmatprep.subr.mxu0 0.0
    %622 = vmatpush2.xpose.msra.mxu0 0.0
    %623 = vmatprep.subr.mxu0 0.0
    %624 = vmatpush2.xpose.msra.mxu0 0.0
    %625 = vmatprep.subr.mxu0 0.0
    %626 = vmatpush2.xpose.msra.mxu0 0.0
    %627 = vmatprep.mubr.f32.mxu0 0.0
    %628 = vmatmul.mubr.f32.gmra.mxu0 %v559
    %v629 = vpop.f32.mrf.mxu0
    %v630 = vadd.f32 0.0, %v629
    %v631 = vpop.f32.mrf.mxu0
    %632 = vdwg.mxu0
    %633 = vrot.lane.b32.xlu0 %v212, 120
    %v634 = vpop.permute.xlu0 %633
    %635 = vrot.lane.b32.xlu0 %v212, 88
    %v636 = vpop.permute.xlu0 %635
    %v637 = vsel %vm234, %v634, 0
    %v639 = vsel %vm234, %v636, 0
    %641 = vmatprep.subr.mxu0 0.0
    %642 = vmatpush1.xpose.msra.mxu0 0.0
    %643 = vmatprep.subr.mxu0 0.0
    %644 = vmatpush1.xpose.msra.mxu0 0.0
    %645 = vmatprep.subr.mxu0 0.0
    %646 = vmatpush1.xpose.msra.mxu0 0.0
    %647 = vmatprep.subr.mxu0 0.0
    %648 = vmatpush1.xpose.msra.mxu0 0.0
    %649 = vmatprep.subr.mxu0 0.0
    %650 = vmatpush1.xpose.msra.mxu0 0.0
    %651 = vmatprep.subr.mxu0 0.0
    %652 = vmatpush1.xpose.msra.mxu0 0.0
    %653 = vmatprep.subr.mxu0 0.0
    %654 = vmatpush1.xpose.msra.mxu0 0.0
    %655 = vmatprep.subr.mxu0 0.0
    %656 = vmatpush1.xpose.msra.mxu0 0.0
    %657 = vmatprep.subr.mxu0 0.0
    %658 = vmatpush1.xpose.msra.mxu0 0.0
    %659 = vmatprep.subr.mxu0 0.0
    %660 = vmatpush1.xpose.msra.mxu0 0.0
    %661 = vmatprep.subr.mxu0 0.0
    %662 = vmatpush1.xpose.msra.mxu0 0.0
    %663 = vmatprep.subr.mxu0 0.0
    %664 = vmatpush1.xpose.msra.mxu0 0.0
    %665 = vmatprep.subr.mxu0 0.0
    %666 = vmatpush1.xpose.msra.mxu0 0.0
    %667 = vmatprep.subr.mxu0 0.0
    %668 = vmatpush1.xpose.msra.mxu0 0.0
    %669 = vmatprep.subr.mxu0 0.0
    %670 = vmatpush1.xpose.msra.mxu0 0.0
    %671 = vmatprep.subr.mxu0 0.0
    %672 = vmatpush1.xpose.msra.mxu0 %v639
    %673 = vmatprep.subr.mxu0 0.0
    %674 = vmatpush2.xpose.msra.mxu0 0.0
    %675 = vmatprep.subr.mxu0 0.0
    %676 = vmatpush2.xpose.msra.mxu0 0.0
    %677 = vmatprep.subr.mxu0 0.0
    %678 = vmatpush2.xpose.msra.mxu0 0.0
    %679 = vmatprep.subr.mxu0 0.0
    %680 = vmatpush2.xpose.msra.mxu0 0.0
    %681 = vmatprep.subr.mxu0 0.0
    %682 = vmatpush2.xpose.msra.mxu0 0.0
    %683 = vmatprep.subr.mxu0 0.0
    %684 = vmatpush2.xpose.msra.mxu0 0.0
    %685 = vmatprep.subr.mxu0 0.0
    %686 = vmatpush2.xpose.msra.mxu0 0.0
    %687 = vmatprep.subr.mxu0 0.0
    %688 = vmatpush2.xpose.msra.mxu0 0.0
    %689 = vmatprep.subr.mxu0 0.0
    %690 = vmatpush2.xpose.msra.mxu0 0.0
    %691 = vmatprep.subr.mxu0 0.0
    %692 = vmatpush2.xpose.msra.mxu0 0.0
    %693 = vmatprep.subr.mxu0 0.0
    %694 = vmatpush2.xpose.msra.mxu0 0.0
    %695 = vmatprep.subr.mxu0 0.0
    %696 = vmatpush2.xpose.msra.mxu0 0.0
    %697 = vmatprep.subr.mxu0 0.0
    %698 = vmatpush2.xpose.msra.mxu0 0.0
    %699 = vmatprep.subr.mxu0 0.0
    %700 = vmatpush2.xpose.msra.mxu0 0.0
    %701 = vmatprep.subr.mxu0 0.0
    %702 = vmatpush2.xpose.msra.mxu0 0.0
    %703 = vmatprep.subr.mxu0 0.0
    %704 = vmatpush2.xpose.msra.mxu0 0.0
    %705 = vmatprep.mubr.f32.mxu0 0.0
    %706 = vmatmul.mubr.f32.gmra.mxu0 %v637
    %v707 = vpop.f32.mrf.mxu0
    %v708 = vadd.f32 0.0, %v707
    %v709 = vpop.f32.mrf.mxu0
    %710 = vdwg.mxu0
    %v711 = vmul.f32 %v630, 0.35355338
    %v712 = vmul.f32 %v708, 0.35355338
    %v713 = vsel %vm74, %v711, -1e+30
    %v714 = vsel %vm74, %v712, -1e+30
    %v715 = vsel %vm234, %v713, -inf
    %716 = vmax.xlane.f32.xlu0 %v715
    %v717 = vpop.xlane.xlu0 %716
    %v718 = vsel %vm234, %v714, -inf
    %719 = vmax.xlane.f32.xlu0 %v718
    %v720 = vpop.xlane.xlu0 %719
    %v721 = vsub.f32 %v713, %v717
    %v722 = vsub.f32 %v714, %v720
    %v723 = vmul.f32 %v721, 1.442695
    %v724 = vpow.pop %v723
    %v725 = vmul.f32 %v722, 1.442695
    %v726 = vpow.pop %v725
    %v727 = vsel %vm234, %v724, 0.0
    %728 = vadd.xlane.f32.xlu0 %v727
    %v729 = vpop.xlane.xlu0 %728
    %v730 = vsel %vm234, %v726, 0.0
    %731 = vadd.xlane.f32.xlu0 %v730
    %v732 = vpop.xlane.xlu0 %731
    %v733 = vrcp.pop %v729
    %v734 = vrcp.pop %v732
    %v735 = vmul.f32 %v724, %v733
    %v736 = vmul.f32 %v726, %v734
    %737 = vrot.lane.b32.xlu0 %v207, 56
    %v738 = vpop.permute.xlu0 %737
    %v741 = vsel %vm234, %v735, 0
    %743 = vmatprep.subr.mxu0 0.0
    %744 = vmatpush1.msra.mxu0 0.0
    %745 = vmatprep.subr.mxu0 0.0
    %746 = vmatpush1.msra.mxu0 0.0
    %747 = vmatprep.subr.mxu0 0.0
    %748 = vmatpush1.msra.mxu0 0.0
    %749 = vmatprep.subr.mxu0 0.0
    %750 = vmatpush1.msra.mxu0 0.0
    %751 = vmatprep.subr.mxu0 0.0
    %752 = vmatpush1.msra.mxu0 0.0
    %753 = vmatprep.subr.mxu0 0.0
    %754 = vmatpush1.msra.mxu0 0.0
    %755 = vmatprep.subr.mxu0 0.0
    %756 = vmatpush1.msra.mxu0 0.0
    %757 = vmatprep.subr.mxu0 0.0
    %758 = vmatpush1.msra.mxu0 0.0
    %759 = vmatprep.subr.mxu0 0.0
    %760 = vmatpush1.msra.mxu0 0.0
    %761 = vmatprep.subr.mxu0 0.0
    %762 = vmatpush1.msra.mxu0 0.0
    %763 = vmatprep.subr.mxu0 0.0
    %764 = vmatpush1.msra.mxu0 0.0
    %765 = vmatprep.subr.mxu0 0.0
    %766 = vmatpush1.msra.mxu0 0.0
    %767 = vmatprep.subr.mxu0 0.0
    %768 = vmatpush1.msra.mxu0 0.0
    %769 = vmatprep.subr.mxu0 0.0
    %770 = vmatpush1.msra.mxu0 0.0
    %771 = vmatprep.subr.mxu0 0.0
    %772 = vmatpush1.msra.mxu0 0.0
    %773 = vmatprep.subr.mxu0 0.0
    %774 = vmatpush1.msra.mxu0 %v738
    %775 = vmatprep.subr.mxu0 0.0
    %776 = vmatpush2.msra.mxu0 0.0
    %777 = vmatprep.subr.mxu0 0.0
    %778 = vmatpush2.msra.mxu0 0.0
    %779 = vmatprep.subr.mxu0 0.0
    %780 = vmatpush2.msra.mxu0 0.0
    %781 = vmatprep.subr.mxu0 0.0
    %782 = vmatpush2.msra.mxu0 0.0
    %783 = vmatprep.subr.mxu0 0.0
    %784 = vmatpush2.msra.mxu0 0.0
    %785 = vmatprep.subr.mxu0 0.0
    %786 = vmatpush2.msra.mxu0 0.0
    %787 = vmatprep.subr.mxu0 0.0
    %788 = vmatpush2.msra.mxu0 0.0
    %789 = vmatprep.subr.mxu0 0.0
    %790 = vmatpush2.msra.mxu0 0.0
    %791 = vmatprep.subr.mxu0 0.0
    %792 = vmatpush2.msra.mxu0 0.0
    %793 = vmatprep.subr.mxu0 0.0
    %794 = vmatpush2.msra.mxu0 0.0
    %795 = vmatprep.subr.mxu0 0.0
    %796 = vmatpush2.msra.mxu0 0.0
    %797 = vmatprep.subr.mxu0 0.0
    %798 = vmatpush2.msra.mxu0 0.0
    %799 = vmatprep.subr.mxu0 0.0
    %800 = vmatpush2.msra.mxu0 0.0
    %801 = vmatprep.subr.mxu0 0.0
    %802 = vmatpush2.msra.mxu0 0.0
    %803 = vmatprep.subr.mxu0 0.0
    %804 = vmatpush2.msra.mxu0 0.0
    %805 = vmatprep.subr.mxu0 0.0
    %806 = vmatpush2.msra.mxu0 0.0
    %807 = vmatprep.mubr.f32.mxu0 0.0
    %808 = vmatmul.mubr.f32.gmra.mxu0 %v741
    %v809 = vpop.f32.mrf.mxu0
    %v810 = vadd.f32 0.0, %v809
    %v811 = vpop.f32.mrf.mxu0
    %812 = vdwg.mxu0
    %813 = vrot.lane.b32.xlu0 %v212, 56
    %v814 = vpop.permute.xlu0 %813
    %v817 = vsel %vm234, %v736, 0
    %819 = vmatprep.subr.mxu0 0.0
    %820 = vmatpush1.msra.mxu0 0.0
    %821 = vmatprep.subr.mxu0 0.0
    %822 = vmatpush1.msra.mxu0 0.0
    %823 = vmatprep.subr.mxu0 0.0
    %824 = vmatpush1.msra.mxu0 0.0
    %825 = vmatprep.subr.mxu0 0.0
    %826 = vmatpush1.msra.mxu0 0.0
    %827 = vmatprep.subr.mxu0 0.0
    %828 = vmatpush1.msra.mxu0 0.0
    %829 = vmatprep.subr.mxu0 0.0
    %830 = vmatpush1.msra.mxu0 0.0
    %831 = vmatprep.subr.mxu0 0.0
    %832 = vmatpush1.msra.mxu0 0.0
    %833 = vmatprep.subr.mxu0 0.0
    %834 = vmatpush1.msra.mxu0 0.0
    %835 = vmatprep.subr.mxu0 0.0
    %836 = vmatpush1.msra.mxu0 0.0
    %837 = vmatprep.subr.mxu0 0.0
    %838 = vmatpush1.msra.mxu0 0.0
    %839 = vmatprep.subr.mxu0 0.0
    %840 = vmatpush1.msra.mxu0 0.0
    %841 = vmatprep.subr.mxu0 0.0
    %842 = vmatpush1.msra.mxu0 0.0
    %843 = vmatprep.subr.mxu0 0.0
    %844 = vmatpush1.msra.mxu0 0.0
    %845 = vmatprep.subr.mxu0 0.0
    %846 = vmatpush1.msra.mxu0 0.0
    %847 = vmatprep.subr.mxu0 0.0
    %848 = vmatpush1.msra.mxu0 0.0
    %849 = vmatprep.subr.mxu0 0.0
    %850 = vmatpush1.msra.mxu0 %v814
    %851 = vmatprep.subr.mxu0 0.0
    %852 = vmatpush2.msra.mxu0 0.0
    %853 = vmatprep.subr.mxu0 0.0
    %854 = vmatpush2.msra.mxu0 0.0
    %855 = vmatprep.subr.mxu0 0.0
    %856 = vmatpush2.msra.mxu0 0.0
    %857 = vmatprep.subr.mxu0 0.0
    %858 = vmatpush2.msra.mxu0 0.0
    %859 = vmatprep.subr.mxu0 0.0
    %860 = vmatpush2.msra.mxu0 0.0
    %861 = vmatprep.subr.mxu0 0.0
    %862 = vmatpush2.msra.mxu0 0.0
    %863 = vmatprep.subr.mxu0 0.0
    %864 = vmatpush2.msra.mxu0 0.0
    %865 = vmatprep.subr.mxu0 0.0
    %866 = vmatpush2.msra.mxu0 0.0
    %867 = vmatprep.subr.mxu0 0.0
    %868 = vmatpush2.msra.mxu0 0.0
    %869 = vmatprep.subr.mxu0 0.0
    %870 = vmatpush2.msra.mxu0 0.0
    %871 = vmatprep.subr.mxu0 0.0
    %872 = vmatpush2.msra.mxu0 0.0
    %873 = vmatprep.subr.mxu0 0.0
    %874 = vmatpush2.msra.mxu0 0.0
    %875 = vmatprep.subr.mxu0 0.0
    %876 = vmatpush2.msra.mxu0 0.0
    %877 = vmatprep.subr.mxu0 0.0
    %878 = vmatpush2.msra.mxu0 0.0
    %879 = vmatprep.subr.mxu0 0.0
    %880 = vmatpush2.msra.mxu0 0.0
    %881 = vmatprep.subr.mxu0 0.0
    %882 = vmatpush2.msra.mxu0 0.0
    %883 = vmatprep.mubr.f32.mxu0 0.0
    %884 = vmatmul.mubr.f32.gmra.mxu0 %v817
    %v885 = vpop.f32.mrf.mxu0
    %v886 = vadd.f32 0.0, %v885
    %v887 = vpop.f32.mrf.mxu0
    %888 = vdwg.mxu0
    %889 = vrot.lane.b32.xlu0 %v207, 112
    %v890 = vpop.permute.xlu0 %889
    %891 = vrot.lane.b32.xlu0 %v207, 80
    %v892 = vpop.permute.xlu0 %891
    %v893 = vsel %vm234, %v890, 0
    %v895 = vsel %vm234, %v892, 0
    %897 = vmatprep.subr.mxu0 0.0
    %898 = vmatpush1.xpose.msra.mxu0 0.0
    %899 = vmatprep.subr.mxu0 0.0
    %900 = vmatpush1.xpose.msra.mxu0 0.0
    %901 = vmatprep.subr.mxu0 0.0
    %902 = vmatpush1.xpose.msra.mxu0 0.0
    %903 = vmatprep.subr.mxu0 0.0
    %904 = vmatpush1.xpose.msra.mxu0 0.0
    %905 = vmatprep.subr.mxu0 0.0
    %906 = vmatpush1.xpose.msra.mxu0 0.0
    %907 = vmatprep.subr.mxu0 0.0
    %908 = vmatpush1.xpose.msra.mxu0 0.0
    %909 = vmatprep.subr.mxu0 0.0
    %910 = vmatpush1.xpose.msra.mxu0 0.0
    %911 = vmatprep.subr.mxu0 0.0
    %912 = vmatpush1.xpose.msra.mxu0 0.0
    %913 = vmatprep.subr.mxu0 0.0
    %914 = vmatpush1.xpose.msra.mxu0 0.0
    %915 = vmatprep.subr.mxu0 0.0
    %916 = vmatpush1.xpose.msra.mxu0 0.0
    %917 = vmatprep.subr.mxu0 0.0
    %918 = vmatpush1.xpose.msra.mxu0 0.0
    %919 = vmatprep.subr.mxu0 0.0
    %920 = vmatpush1.xpose.msra.mxu0 0.0
    %921 = vmatprep.subr.mxu0 0.0
    %922 = vmatpush1.xpose.msra.mxu0 0.0
    %923 = vmatprep.subr.mxu0 0.0
    %924 = vmatpush1.xpose.msra.mxu0 0.0
    %925 = vmatprep.subr.mxu0 0.0
    %926 = vmatpush1.xpose.msra.mxu0 0.0
    %927 = vmatprep.subr.mxu0 0.0
    %928 = vmatpush1.xpose.msra.mxu0 %v895
    %929 = vmatprep.subr.mxu0 0.0
    %930 = vmatpush2.xpose.msra.mxu0 0.0
    %931 = vmatprep.subr.mxu0 0.0
    %932 = vmatpush2.xpose.msra.mxu0 0.0
    %933 = vmatprep.subr.mxu0 0.0
    %934 = vmatpush2.xpose.msra.mxu0 0.0
    %935 = vmatprep.subr.mxu0 0.0
    %936 = vmatpush2.xpose.msra.mxu0 0.0
    %937 = vmatprep.subr.mxu0 0.0
    %938 = vmatpush2.xpose.msra.mxu0 0.0
    %939 = vmatprep.subr.mxu0 0.0
    %940 = vmatpush2.xpose.msra.mxu0 0.0
    %941 = vmatprep.subr.mxu0 0.0
    %942 = vmatpush2.xpose.msra.mxu0 0.0
    %943 = vmatprep.subr.mxu0 0.0
    %944 = vmatpush2.xpose.msra.mxu0 0.0
    %945 = vmatprep.subr.mxu0 0.0
    %946 = vmatpush2.xpose.msra.mxu0 0.0
    %947 = vmatprep.subr.mxu0 0.0
    %948 = vmatpush2.xpose.msra.mxu0 0.0
    %949 = vmatprep.subr.mxu0 0.0
    %950 = vmatpush2.xpose.msra.mxu0 0.0
    %951 = vmatprep.subr.mxu0 0.0
    %952 = vmatpush2.xpose.msra.mxu0 0.0
    %953 = vmatprep.subr.mxu0 0.0
    %954 = vmatpush2.xpose.msra.mxu0 0.0
    %955 = vmatprep.subr.mxu0 0.0
    %956 = vmatpush2.xpose.msra.mxu0 0.0
    %957 = vmatprep.subr.mxu0 0.0
    %958 = vmatpush2.xpose.msra.mxu0 0.0
    %959 = vmatprep.subr.mxu0 0.0
    %960 = vmatpush2.xpose.msra.mxu0 0.0
    %961 = vmatprep.mubr.f32.mxu0 0.0
    %962 = vmatmul.mubr.f32.gmra.mxu0 %v893
    %v963 = vpop.f32.mrf.mxu0
    %v964 = vadd.f32 0.0, %v963
    %v965 = vpop.f32.mrf.mxu0
    %966 = vdwg.mxu0
    %967 = vrot.lane.b32.xlu0 %v212, 112
    %v968 = vpop.permute.xlu0 %967
    %969 = vrot.lane.b32.xlu0 %v212, 80
    %v970 = vpop.permute.xlu0 %969
    %v971 = vsel %vm234, %v968, 0
    %v973 = vsel %vm234, %v970, 0
    %975 = vmatprep.subr.mxu0 0.0
    %976 = vmatpush1.xpose.msra.mxu0 0.0
    %977 = vmatprep.subr.mxu0 0.0
    %978 = vmatpush1.xpose.msra.mxu0 0.0
    %979 = vmatprep.subr.mxu0 0.0
    %980 = vmatpush1.xpose.msra.mxu0 0.0
    %981 = vmatprep.subr.mxu0 0.0
    %982 = vmatpush1.xpose.msra.mxu0 0.0
    %983 = vmatprep.subr.mxu0 0.0
    %984 = vmatpush1.xpose.msra.mxu0 0.0
    %985 = vmatprep.subr.mxu0 0.0
    %986 = vmatpush1.xpose.msra.mxu0 0.0
    %987 = vmatprep.subr.mxu0 0.0
    %988 = vmatpush1.xpose.msra.mxu0 0.0
    %989 = vmatprep.subr.mxu0 0.0
    %990 = vmatpush1.xpose.msra.mxu0 0.0
    %991 = vmatprep.subr.mxu0 0.0
    %992 = vmatpush1.xpose.msra.mxu0 0.0
    %993 = vmatprep.subr.mxu0 0.0
    %994 = vmatpush1.xpose.msra.mxu0 0.0
    %995 = vmatprep.subr.mxu0 0.0
    %996 = vmatpush1.xpose.msra.mxu0 0.0
    %997 = vmatprep.subr.mxu0 0.0
    %998 = vmatpush1.xpose.msra.mxu0 0.0
    %999 = vmatprep.subr.mxu0 0.0
    %1000 = vmatpush1.xpose.msra.mxu0 0.0
    %1001 = vmatprep.subr.mxu0 0.0
    %1002 = vmatpush1.xpose.msra.mxu0 0.0
    %1003 = vmatprep.subr.mxu0 0.0
    %1004 = vmatpush1.xpose.msra.mxu0 0.0
    %1005 = vmatprep.subr.mxu0 0.0
    %1006 = vmatpush1.xpose.msra.mxu0 %v973
    %1007 = vmatprep.subr.mxu0 0.0
    %1008 = vmatpush2.xpose.msra.mxu0 0.0
    %1009 = vmatprep.subr.mxu0 0.0
    %1010 = vmatpush2.xpose.msra.mxu0 0.0
    %1011 = vmatprep.subr.mxu0 0.0
    %1012 = vmatpush2.xpose.msra.mxu0 0.0
    %1013 = vmatprep.subr.mxu0 0.0
    %1014 = vmatpush2.xpose.msra.mxu0 0.0
    %1015 = vmatprep.subr.mxu0 0.0
    %1016 = vmatpush2.xpose.msra.mxu0 0.0
    %1017 = vmatprep.subr.mxu0 0.0
    %1018 = vmatpush2.xpose.msra.mxu0 0.0
    %1019 = vmatprep.subr.mxu0 0.0
    %1020 = vmatpush2.xpose.msra.mxu0 0.0
    %1021 = vmatprep.subr.mxu0 0.0
    %1022 = vmatpush2.xpose.msra.mxu0 0.0
    %1023 = vmatprep.subr.mxu0 0.0
    %1024 = vmatpush2.xpose.msra.mxu0 0.0
    %1025 = vmatprep.subr.mxu0 0.0
    %1026 = vmatpush2.xpose.msra.mxu0 0.0
    %1027 = vmatprep.subr.mxu0 0.0
    %1028 = vmatpush2.xpose.msra.mxu0 0.0
    %1029 = vmatprep.subr.mxu0 0.0
    %1030 = vmatpush2.xpose.msra.mxu0 0.0
    %1031 = vmatprep.subr.mxu0 0.0
    %1032 = vmatpush2.xpose.msra.mxu0 0.0
    %1033 = vmatprep.subr.mxu0 0.0
    %1034 = vmatpush2.xpose.msra.mxu0 0.0
    %1035 = vmatprep.subr.mxu0 0.0
    %1036 = vmatpush2.xpose.msra.mxu0 0.0
    %1037 = vmatprep.subr.mxu0 0.0
    %1038 = vmatpush2.xpose.msra.mxu0 0.0
    %1039 = vmatprep.mubr.f32.mxu0 0.0
    %1040 = vmatmul.mubr.f32.gmra.mxu0 %v971
    %v1041 = vpop.f32.mrf.mxu0
    %v1042 = vadd.f32 0.0, %v1041
    %v1043 = vpop.f32.mrf.mxu0
    %1044 = vdwg.mxu0
    %v1045 = vmul.f32 %v964, 0.35355338
    %v1046 = vmul.f32 %v1042, 0.35355338
    %v1047 = vsel %vm74, %v1045, -1e+30
    %v1048 = vsel %vm74, %v1046, -1e+30
    %v1049 = vsel %vm234, %v1047, -inf
    %1050 = vmax.xlane.f32.xlu0 %v1049
    %v1051 = vpop.xlane.xlu0 %1050
    %v1052 = vsel %vm234, %v1048, -inf
    %1053 = vmax.xlane.f32.xlu0 %v1052
    %v1054 = vpop.xlane.xlu0 %1053
    %v1055 = vsub.f32 %v1047, %v1051
    %v1056 = vsub.f32 %v1048, %v1054
    %v1057 = vmul.f32 %v1055, 1.442695
    %v1058 = vpow.pop %v1057
    %v1059 = vmul.f32 %v1056, 1.442695
    %v1060 = vpow.pop %v1059
    %v1061 = vsel %vm234, %v1058, 0.0
    %1062 = vadd.xlane.f32.xlu0 %v1061
    %v1063 = vpop.xlane.xlu0 %1062
    %v1064 = vsel %vm234, %v1060, 0.0
    %1065 = vadd.xlane.f32.xlu0 %v1064
    %v1066 = vpop.xlane.xlu0 %1065
    %v1067 = vrcp.pop %v1063
    %v1068 = vrcp.pop %v1066
    %v1069 = vmul.f32 %v1058, %v1067
    %v1070 = vmul.f32 %v1060, %v1068
    %1071 = vrot.lane.b32.xlu0 %v207, 48
    %v1072 = vpop.permute.xlu0 %1071
    %v1075 = vsel %vm234, %v1069, 0
    %1077 = vmatprep.subr.mxu0 0.0
    %1078 = vmatpush1.msra.mxu0 0.0
    %1079 = vmatprep.subr.mxu0 0.0
    %1080 = vmatpush1.msra.mxu0 0.0
    %1081 = vmatprep.subr.mxu0 0.0
    %1082 = vmatpush1.msra.mxu0 0.0
    %1083 = vmatprep.subr.mxu0 0.0
    %1084 = vmatpush1.msra.mxu0 0.0
    %1085 = vmatprep.subr.mxu0 0.0
    %1086 = vmatpush1.msra.mxu0 0.0
    %1087 = vmatprep.subr.mxu0 0.0
    %1088 = vmatpush1.msra.mxu0 0.0
    %1089 = vmatprep.subr.mxu0 0.0
    %1090 = vmatpush1.msra.mxu0 0.0
    %1091 = vmatprep.subr.mxu0 0.0
    %1092 = vmatpush1.msra.mxu0 0.0
    %1093 = vmatprep.subr.mxu0 0.0
    %1094 = vmatpush1.msra.mxu0 0.0
    %1095 = vmatprep.subr.mxu0 0.0
    %1096 = vmatpush1.msra.mxu0 0.0
    %1097 = vmatprep.subr.mxu0 0.0
    %1098 = vmatpush1.msra.mxu0 0.0
    %1099 = vmatprep.subr.mxu0 0.0
    %1100 = vmatpush1.msra.mxu0 0.0
    %1101 = vmatprep.subr.mxu0 0.0
    %1102 = vmatpush1.msra.mxu0 0.0
    %1103 = vmatprep.subr.mxu0 0.0
    %1104 = vmatpush1.msra.mxu0 0.0
    %1105 = vmatprep.subr.mxu0 0.0
    %1106 = vmatpush1.msra.mxu0 0.0
    %1107 = vmatprep.subr.mxu0 0.0
    %1108 = vmatpush1.msra.mxu0 %v1072
    %1109 = vmatprep.subr.mxu0 0.0
    %1110 = vmatpush2.msra.mxu0 0.0
    %1111 = vmatprep.subr.mxu0 0.0
    %1112 = vmatpush2.msra.mxu0 0.0
    %1113 = vmatprep.subr.mxu0 0.0
    %1114 = vmatpush2.msra.mxu0 0.0
    %1115 = vmatprep.subr.mxu0 0.0
    %1116 = vmatpush2.msra.mxu0 0.0
    %1117 = vmatprep.subr.mxu0 0.0
    %1118 = vmatpush2.msra.mxu0 0.0
    %1119 = vmatprep.subr.mxu0 0.0
    %1120 = vmatpush2.msra.mxu0 0.0
    %1121 = vmatprep.subr.mxu0 0.0
    %1122 = vmatpush2.msra.mxu0 0.0
    %1123 = vmatprep.subr.mxu0 0.0
    %1124 = vmatpush2.msra.mxu0 0.0
    %1125 = vmatprep.subr.mxu0 0.0
    %1126 = vmatpush2.msra.mxu0 0.0
    %1127 = vmatprep.subr.mxu0 0.0
    %1128 = vmatpush2.msra.mxu0 0.0
    %1129 = vmatprep.subr.mxu0 0.0
    %1130 = vmatpush2.msra.mxu0 0.0
    %1131 = vmatprep.subr.mxu0 0.0
    %1132 = vmatpush2.msra.mxu0 0.0
    %1133 = vmatprep.subr.mxu0 0.0
    %1134 = vmatpush2.msra.mxu0 0.0
    %1135 = vmatprep.subr.mxu0 0.0
    %1136 = vmatpush2.msra.mxu0 0.0
    %1137 = vmatprep.subr.mxu0 0.0
    %1138 = vmatpush2.msra.mxu0 0.0
    %1139 = vmatprep.subr.mxu0 0.0
    %1140 = vmatpush2.msra.mxu0 0.0
    %1141 = vmatprep.mubr.f32.mxu0 0.0
    %1142 = vmatmul.mubr.f32.gmra.mxu0 %v1075
    %v1143 = vpop.f32.mrf.mxu0
    %v1144 = vadd.f32 0.0, %v1143
    %v1145 = vpop.f32.mrf.mxu0
    %1146 = vdwg.mxu0
    %1147 = vrot.lane.b32.xlu0 %v212, 48
    %v1148 = vpop.permute.xlu0 %1147
    %v1151 = vsel %vm234, %v1070, 0
    %1153 = vmatprep.subr.mxu0 0.0
    %1154 = vmatpush1.msra.mxu0 0.0
    %1155 = vmatprep.subr.mxu0 0.0
    %1156 = vmatpush1.msra.mxu0 0.0
    %1157 = vmatprep.subr.mxu0 0.0
    %1158 = vmatpush1.msra.mxu0 0.0
    %1159 = vmatprep.subr.mxu0 0.0
    %1160 = vmatpush1.msra.mxu0 0.0
    %1161 = vmatprep.subr.mxu0 0.0
    %1162 = vmatpush1.msra.mxu0 0.0
    %1163 = vmatprep.subr.mxu0 0.0
    %1164 = vmatpush1.msra.mxu0 0.0
    %1165 = vmatprep.subr.mxu0 0.0
    %1166 = vmatpush1.msra.mxu0 0.0
    %1167 = vmatprep.subr.mxu0 0.0
    %1168 = vmatpush1.msra.mxu0 0.0
    %1169 = vmatprep.subr.mxu0 0.0
    %1170 = vmatpush1.msra.mxu0 0.0
    %1171 = vmatprep.subr.mxu0 0.0
    %1172 = vmatpush1.msra.mxu0 0.0
    %1173 = vmatprep.subr.mxu0 0.0
    %1174 = vmatpush1.msra.mxu0 0.0
    %1175 = vmatprep.subr.mxu0 0.0
    %1176 = vmatpush1.msra.mxu0 0.0
    %1177 = vmatprep.subr.mxu0 0.0
    %1178 = vmatpush1.msra.mxu0 0.0
    %1179 = vmatprep.subr.mxu0 0.0
    %1180 = vmatpush1.msra.mxu0 0.0
    %1181 = vmatprep.subr.mxu0 0.0
    %1182 = vmatpush1.msra.mxu0 0.0
    %1183 = vmatprep.subr.mxu0 0.0
    %1184 = vmatpush1.msra.mxu0 %v1148
    %1185 = vmatprep.subr.mxu0 0.0
    %1186 = vmatpush2.msra.mxu0 0.0
    %1187 = vmatprep.subr.mxu0 0.0
    %1188 = vmatpush2.msra.mxu0 0.0
    %1189 = vmatprep.subr.mxu0 0.0
    %1190 = vmatpush2.msra.mxu0 0.0
    %1191 = vmatprep.subr.mxu0 0.0
    %1192 = vmatpush2.msra.mxu0 0.0
    %1193 = vmatprep.subr.mxu0 0.0
    %1194 = vmatpush2.msra.mxu0 0.0
    %1195 = vmatprep.subr.mxu0 0.0
    %1196 = vmatpush2.msra.mxu0 0.0
    %1197 = vmatprep.subr.mxu0 0.0
    %1198 = vmatpush2.msra.mxu0 0.0
    %1199 = vmatprep.subr.mxu0 0.0
    %1200 = vmatpush2.msra.mxu0 0.0
    %1201 = vmatprep.subr.mxu0 0.0
    %1202 = vmatpush2.msra.mxu0 0.0
    %1203 = vmatprep.subr.mxu0 0.0
    %1204 = vmatpush2.msra.mxu0 0.0
    %1205 = vmatprep.subr.mxu0 0.0
    %1206 = vmatpush2.msra.mxu0 0.0
    %1207 = vmatprep.subr.mxu0 0.0
    %1208 = vmatpush2.msra.mxu0 0.0
    %1209 = vmatprep.subr.mxu0 0.0
    %1210 = vmatpush2.msra.mxu0 0.0
    %1211 = vmatprep.subr.mxu0 0.0
    %1212 = vmatpush2.msra.mxu0 0.0
    %1213 = vmatprep.subr.mxu0 0.0
    %1214 = vmatpush2.msra.mxu0 0.0
    %1215 = vmatprep.subr.mxu0 0.0
    %1216 = vmatpush2.msra.mxu0 0.0
    %1217 = vmatprep.mubr.f32.mxu0 0.0
    %1218 = vmatmul.mubr.f32.gmra.mxu0 %v1151
    %v1219 = vpop.f32.mrf.mxu0
    %v1220 = vadd.f32 0.0, %v1219
    %v1221 = vpop.f32.mrf.mxu0
    %1222 = vdwg.mxu0
    %1223 = vrot.lane.b32.xlu0 %v207, 104
    %v1224 = vpop.permute.xlu0 %1223
    %1225 = vrot.lane.b32.xlu0 %v207, 72
    %v1226 = vpop.permute.xlu0 %1225
    %v1227 = vsel %vm234, %v1224, 0
    %v1229 = vsel %vm234, %v1226, 0
    %1231 = vmatprep.subr.mxu0 0.0
    %1232 = vmatpush1.xpose.msra.mxu0 0.0
    %1233 = vmatprep.subr.mxu0 0.0
    %1234 = vmatpush1.xpose.msra.mxu0 0.0
    %1235 = vmatprep.subr.mxu0 0.0
    %1236 = vmatpush1.xpose.msra.mxu0 0.0
    %1237 = vmatprep.subr.mxu0 0.0
    %1238 = vmatpush1.xpose.msra.mxu0 0.0
    %1239 = vmatprep.subr.mxu0 0.0
    %1240 = vmatpush1.xpose.msra.mxu0 0.0
    %1241 = vmatprep.subr.mxu0 0.0
    %1242 = vmatpush1.xpose.msra.mxu0 0.0
    %1243 = vmatprep.subr.mxu0 0.0
    %1244 = vmatpush1.xpose.msra.mxu0 0.0
    %1245 = vmatprep.subr.mxu0 0.0
    %1246 = vmatpush1.xpose.msra.mxu0 0.0
    %1247 = vmatprep.subr.mxu0 0.0
    %1248 = vmatpush1.xpose.msra.mxu0 0.0
    %1249 = vmatprep.subr.mxu0 0.0
    %1250 = vmatpush1.xpose.msra.mxu0 0.0
    %1251 = vmatprep.subr.mxu0 0.0
    %1252 = vmatpush1.xpose.msra.mxu0 0.0
    %1253 = vmatprep.subr.mxu0 0.0
    %1254 = vmatpush1.xpose.msra.mxu0 0.0
    %1255 = vmatprep.subr.mxu0 0.0
    %1256 = vmatpush1.xpose.msra.mxu0 0.0
    %1257 = vmatprep.subr.mxu0 0.0
    %1258 = vmatpush1.xpose.msra.mxu0 0.0
    %1259 = vmatprep.subr.mxu0 0.0
    %1260 = vmatpush1.xpose.msra.mxu0 0.0
    %1261 = vmatprep.subr.mxu0 0.0
    %1262 = vmatpush1.xpose.msra.mxu0 %v1229
    %1263 = vmatprep.subr.mxu0 0.0
    %1264 = vmatpush2.xpose.msra.mxu0 0.0
    %1265 = vmatprep.subr.mxu0 0.0
    %1266 = vmatpush2.xpose.msra.mxu0 0.0
    %1267 = vmatprep.subr.mxu0 0.0
    %1268 = vmatpush2.xpose.msra.mxu0 0.0
    %1269 = vmatprep.subr.mxu0 0.0
    %1270 = vmatpush2.xpose.msra.mxu0 0.0
    %1271 = vmatprep.subr.mxu0 0.0
    %1272 = vmatpush2.xpose.msra.mxu0 0.0
    %1273 = vmatprep.subr.mxu0 0.0
    %1274 = vmatpush2.xpose.msra.mxu0 0.0
    %1275 = vmatprep.subr.mxu0 0.0
    %1276 = vmatpush2.xpose.msra.mxu0 0.0
    %1277 = vmatprep.subr.mxu0 0.0
    %1278 = vmatpush2.xpose.msra.mxu0 0.0
    %1279 = vmatprep.subr.mxu0 0.0
    %1280 = vmatpush2.xpose.msra.mxu0 0.0
    %1281 = vmatprep.subr.mxu0 0.0
    %1282 = vmatpush2.xpose.msra.mxu0 0.0
    %1283 = vmatprep.subr.mxu0 0.0
    %1284 = vmatpush2.xpose.msra.mxu0 0.0
    %1285 = vmatprep.subr.mxu0 0.0
    %1286 = vmatpush2.xpose.msra.mxu0 0.0
    %1287 = vmatprep.subr.mxu0 0.0
    %1288 = vmatpush2.xpose.msra.mxu0 0.0
    %1289 = vmatprep.subr.mxu0 0.0
    %1290 = vmatpush2.xpose.msra.mxu0 0.0
    %1291 = vmatprep.subr.mxu0 0.0
    %1292 = vmatpush2.xpose.msra.mxu0 0.0
    %1293 = vmatprep.subr.mxu0 0.0
    %1294 = vmatpush2.xpose.msra.mxu0 0.0
    %1295 = vmatprep.mubr.f32.mxu0 0.0
    %1296 = vmatmul.mubr.f32.gmra.mxu0 %v1227
    %v1297 = vpop.f32.mrf.mxu0
    %v1298 = vadd.f32 0.0, %v1297
    %v1299 = vpop.f32.mrf.mxu0
    %1300 = vdwg.mxu0
    %1301 = vrot.lane.b32.xlu0 %v212, 104
    %v1302 = vpop.permute.xlu0 %1301
    %1303 = vrot.lane.b32.xlu0 %v212, 72
    %v1304 = vpop.permute.xlu0 %1303
    %v1305 = vsel %vm234, %v1302, 0
    %v1307 = vsel %vm234, %v1304, 0
    %1309 = vmatprep.subr.mxu0 0.0
    %1310 = vmatpush1.xpose.msra.mxu0 0.0
    %1311 = vmatprep.subr.mxu0 0.0
    %1312 = vmatpush1.xpose.msra.mxu0 0.0
    %1313 = vmatprep.subr.mxu0 0.0
    %1314 = vmatpush1.xpose.msra.mxu0 0.0
    %1315 = vmatprep.subr.mxu0 0.0
    %1316 = vmatpush1.xpose.msra.mxu0 0.0
    %1317 = vmatprep.subr.mxu0 0.0
    %1318 = vmatpush1.xpose.msra.mxu0 0.0
    %1319 = vmatprep.subr.mxu0 0.0
    %1320 = vmatpush1.xpose.msra.mxu0 0.0
    %1321 = vmatprep.subr.mxu0 0.0
    %1322 = vmatpush1.xpose.msra.mxu0 0.0
    %1323 = vmatprep.subr.mxu0 0.0
    %1324 = vmatpush1.xpose.msra.mxu0 0.0
    %1325 = vmatprep.subr.mxu0 0.0
    %1326 = vmatpush1.xpose.msra.mxu0 0.0
    %1327 = vmatprep.subr.mxu0 0.0
    %1328 = vmatpush1.xpose.msra.mxu0 0.0
    %1329 = vmatprep.subr.mxu0 0.0
    %1330 = vmatpush1.xpose.msra.mxu0 0.0
    %1331 = vmatprep.subr.mxu0 0.0
    %1332 = vmatpush1.xpose.msra.mxu0 0.0
    %1333 = vmatprep.subr.mxu0 0.0
    %1334 = vmatpush1.xpose.msra.mxu0 0.0
    %1335 = vmatprep.subr.mxu0 0.0
    %1336 = vmatpush1.xpose.msra.mxu0 0.0
    %1337 = vmatprep.subr.mxu0 0.0
    %1338 = vmatpush1.xpose.msra.mxu0 0.0
    %1339 = vmatprep.subr.mxu0 0.0
    %1340 = vmatpush1.xpose.msra.mxu0 %v1307
    %1341 = vmatprep.subr.mxu0 0.0
    %1342 = vmatpush2.xpose.msra.mxu0 0.0
    %1343 = vmatprep.subr.mxu0 0.0
    %1344 = vmatpush2.xpose.msra.mxu0 0.0
    %1345 = vmatprep.subr.mxu0 0.0
    %1346 = vmatpush2.xpose.msra.mxu0 0.0
    %1347 = vmatprep.subr.mxu0 0.0
    %1348 = vmatpush2.xpose.msra.mxu0 0.0
    %1349 = vmatprep.subr.mxu0 0.0
    %1350 = vmatpush2.xpose.msra.mxu0 0.0
    %1351 = vmatprep.subr.mxu0 0.0
    %1352 = vmatpush2.xpose.msra.mxu0 0.0
    %1353 = vmatprep.subr.mxu0 0.0
    %1354 = vmatpush2.xpose.msra.mxu0 0.0
    %1355 = vmatprep.subr.mxu0 0.0
    %1356 = vmatpush2.xpose.msra.mxu0 0.0
    %1357 = vmatprep.subr.mxu0 0.0
    %1358 = vmatpush2.xpose.msra.mxu0 0.0
    %1359 = vmatprep.subr.mxu0 0.0
    %1360 = vmatpush2.xpose.msra.mxu0 0.0
    %1361 = vmatprep.subr.mxu0 0.0
    %1362 = vmatpush2.xpose.msra.mxu0 0.0
    %1363 = vmatprep.subr.mxu0 0.0
    %1364 = vmatpush2.xpose.msra.mxu0 0.0
    %1365 = vmatprep.subr.mxu0 0.0
    %1366 = vmatpush2.xpose.msra.mxu0 0.0
    %1367 = vmatprep.subr.mxu0 0.0
    %1368 = vmatpush2.xpose.msra.mxu0 0.0
    %1369 = vmatprep.subr.mxu0 0.0
    %1370 = vmatpush2.xpose.msra.mxu0 0.0
    %1371 = vmatprep.subr.mxu0 0.0
    %1372 = vmatpush2.xpose.msra.mxu0 0.0
    %1373 = vmatprep.mubr.f32.mxu0 0.0
    %1374 = vmatmul.mubr.f32.gmra.mxu0 %v1305
    %v1375 = vpop.f32.mrf.mxu0
    %v1376 = vadd.f32 0.0, %v1375
    %v1377 = vpop.f32.mrf.mxu0
    %1378 = vdwg.mxu0
    %v1379 = vmul.f32 %v1298, 0.35355338
    %v1380 = vmul.f32 %v1376, 0.35355338
    %v1381 = vsel %vm74, %v1379, -1e+30
    %v1382 = vsel %vm74, %v1380, -1e+30
    %v1383 = vsel %vm234, %v1381, -inf
    %1384 = vmax.xlane.f32.xlu0 %v1383
    %v1385 = vpop.xlane.xlu0 %1384
    %v1386 = vsel %vm234, %v1382, -inf
    %1387 = vmax.xlane.f32.xlu0 %v1386
    %v1388 = vpop.xlane.xlu0 %1387
    %v1389 = vsub.f32 %v1381, %v1385
    %v1390 = vsub.f32 %v1382, %v1388
    %v1391 = vmul.f32 %v1389, 1.442695
    %v1392 = vpow.pop %v1391
    %v1393 = vmul.f32 %v1390, 1.442695
    %v1394 = vpow.pop %v1393
    %v1395 = vsel %vm234, %v1392, 0.0
    %1396 = vadd.xlane.f32.xlu0 %v1395
    %v1397 = vpop.xlane.xlu0 %1396
    %v1398 = vsel %vm234, %v1394, 0.0
    %1399 = vadd.xlane.f32.xlu0 %v1398
    %v1400 = vpop.xlane.xlu0 %1399
    %v1401 = vrcp.pop %v1397
    %v1402 = vrcp.pop %v1400
    %v1403 = vmul.f32 %v1392, %v1401
    %v1404 = vmul.f32 %v1394, %v1402
    %1405 = vrot.lane.b32.xlu0 %v207, 40
    %v1406 = vpop.permute.xlu0 %1405
    %v1409 = vsel %vm234, %v1403, 0
    %1411 = vmatprep.subr.mxu0 0.0
    %1412 = vmatpush1.msra.mxu0 0.0
    %1413 = vmatprep.subr.mxu0 0.0
    %1414 = vmatpush1.msra.mxu0 0.0
    %1415 = vmatprep.subr.mxu0 0.0
    %1416 = vmatpush1.msra.mxu0 0.0
    %1417 = vmatprep.subr.mxu0 0.0
    %1418 = vmatpush1.msra.mxu0 0.0
    %1419 = vmatprep.subr.mxu0 0.0
    %1420 = vmatpush1.msra.mxu0 0.0
    %1421 = vmatprep.subr.mxu0 0.0
    %1422 = vmatpush1.msra.mxu0 0.0
    %1423 = vmatprep.subr.mxu0 0.0
    %1424 = vmatpush1.msra.mxu0 0.0
    %1425 = vmatprep.subr.mxu0 0.0
    %1426 = vmatpush1.msra.mxu0 0.0
    %1427 = vmatprep.subr.mxu0 0.0
    %1428 = vmatpush1.msra.mxu0 0.0
    %1429 = vmatprep.subr.mxu0 0.0
    %1430 = vmatpush1.msra.mxu0 0.0
    %1431 = vmatprep.subr.mxu0 0.0
    %1432 = vmatpush1.msra.mxu0 0.0
    %1433 = vmatprep.subr.mxu0 0.0
    %1434 = vmatpush1.msra.mxu0 0.0
    %1435 = vmatprep.subr.mxu0 0.0
    %1436 = vmatpush1.msra.mxu0 0.0
    %1437 = vmatprep.subr.mxu0 0.0
    %1438 = vmatpush1.msra.mxu0 0.0
    %1439 = vmatprep.subr.mxu0 0.0
    %1440 = vmatpush1.msra.mxu0 0.0
    %1441 = vmatprep.subr.mxu0 0.0
    %1442 = vmatpush1.msra.mxu0 %v1406
    %1443 = vmatprep.subr.mxu0 0.0
    %1444 = vmatpush2.msra.mxu0 0.0
    %1445 = vmatprep.subr.mxu0 0.0
    %1446 = vmatpush2.msra.mxu0 0.0
    %1447 = vmatprep.subr.mxu0 0.0
    %1448 = vmatpush2.msra.mxu0 0.0
    %1449 = vmatprep.subr.mxu0 0.0
    %1450 = vmatpush2.msra.mxu0 0.0
    %1451 = vmatprep.subr.mxu0 0.0
    %1452 = vmatpush2.msra.mxu0 0.0
    %1453 = vmatprep.subr.mxu0 0.0
    %1454 = vmatpush2.msra.mxu0 0.0
    %1455 = vmatprep.subr.mxu0 0.0
    %1456 = vmatpush2.msra.mxu0 0.0
    %1457 = vmatprep.subr.mxu0 0.0
    %1458 = vmatpush2.msra.mxu0 0.0
    %1459 = vmatprep.subr.mxu0 0.0
    %1460 = vmatpush2.msra.mxu0 0.0
    %1461 = vmatprep.subr.mxu0 0.0
    %1462 = vmatpush2.msra.mxu0 0.0
    %1463 = vmatprep.subr.mxu0 0.0
    %1464 = vmatpush2.msra.mxu0 0.0
    %1465 = vmatprep.subr.mxu0 0.0
    %1466 = vmatpush2.msra.mxu0 0.0
    %1467 = vmatprep.subr.mxu0 0.0
    %1468 = vmatpush2.msra.mxu0 0.0
    %1469 = vmatprep.subr.mxu0 0.0
    %1470 = vmatpush2.msra.mxu0 0.0
    %1471 = vmatprep.subr.mxu0 0.0
    %1472 = vmatpush2.msra.mxu0 0.0
    %1473 = vmatprep.subr.mxu0 0.0
    %1474 = vmatpush2.msra.mxu0 0.0
    %1475 = vmatprep.mubr.f32.mxu0 0.0
    %1476 = vmatmul.mubr.f32.gmra.mxu0 %v1409
    %v1477 = vpop.f32.mrf.mxu0
    %v1478 = vadd.f32 0.0, %v1477
    %v1479 = vpop.f32.mrf.mxu0
    %1480 = vdwg.mxu0
    %1481 = vrot.lane.b32.xlu0 %v212, 40
    %v1482 = vpop.permute.xlu0 %1481
    %v1485 = vsel %vm234, %v1404, 0
    %1487 = vmatprep.subr.mxu0 0.0
    %1488 = vmatpush1.msra.mxu0 0.0
    %1489 = vmatprep.subr.mxu0 0.0
    %1490 = vmatpush1.msra.mxu0 0.0
    %1491 = vmatprep.subr.mxu0 0.0
    %1492 = vmatpush1.msra.mxu0 0.0
    %1493 = vmatprep.subr.mxu0 0.0
    %1494 = vmatpush1.msra.mxu0 0.0
    %1495 = vmatprep.subr.mxu0 0.0
    %1496 = vmatpush1.msra.mxu0 0.0
    %1497 = vmatprep.subr.mxu0 0.0
    %1498 = vmatpush1.msra.mxu0 0.0
    %1499 = vmatprep.subr.mxu0 0.0
    %1500 = vmatpush1.msra.mxu0 0.0
    %1501 = vmatprep.subr.mxu0 0.0
    %1502 = vmatpush1.msra.mxu0 0.0
    %1503 = vmatprep.subr.mxu0 0.0
    %1504 = vmatpush1.msra.mxu0 0.0
    %1505 = vmatprep.subr.mxu0 0.0
    %1506 = vmatpush1.msra.mxu0 0.0
    %1507 = vmatprep.subr.mxu0 0.0
    %1508 = vmatpush1.msra.mxu0 0.0
    %1509 = vmatprep.subr.mxu0 0.0
    %1510 = vmatpush1.msra.mxu0 0.0
    %1511 = vmatprep.subr.mxu0 0.0
    %1512 = vmatpush1.msra.mxu0 0.0
    %1513 = vmatprep.subr.mxu0 0.0
    %1514 = vmatpush1.msra.mxu0 0.0
    %1515 = vmatprep.subr.mxu0 0.0
    %1516 = vmatpush1.msra.mxu0 0.0
    %1517 = vmatprep.subr.mxu0 0.0
    %1518 = vmatpush1.msra.mxu0 %v1482
    %1519 = vmatprep.subr.mxu0 0.0
    %1520 = vmatpush2.msra.mxu0 0.0
    %1521 = vmatprep.subr.mxu0 0.0
    %1522 = vmatpush2.msra.mxu0 0.0
    %1523 = vmatprep.subr.mxu0 0.0
    %1524 = vmatpush2.msra.mxu0 0.0
    %1525 = vmatprep.subr.mxu0 0.0
    %1526 = vmatpush2.msra.mxu0 0.0
    %1527 = vmatprep.subr.mxu0 0.0
    %1528 = vmatpush2.msra.mxu0 0.0
    %1529 = vmatprep.subr.mxu0 0.0
    %1530 = vmatpush2.msra.mxu0 0.0
    %1531 = vmatprep.subr.mxu0 0.0
    %1532 = vmatpush2.msra.mxu0 0.0
    %1533 = vmatprep.subr.mxu0 0.0
    %1534 = vmatpush2.msra.mxu0 0.0
    %1535 = vmatprep.subr.mxu0 0.0
    %1536 = vmatpush2.msra.mxu0 0.0
    %1537 = vmatprep.subr.mxu0 0.0
    %1538 = vmatpush2.msra.mxu0 0.0
    %1539 = vmatprep.subr.mxu0 0.0
    %1540 = vmatpush2.msra.mxu0 0.0
    %1541 = vmatprep.subr.mxu0 0.0
    %1542 = vmatpush2.msra.mxu0 0.0
    %1543 = vmatprep.subr.mxu0 0.0
    %1544 = vmatpush2.msra.mxu0 0.0
    %1545 = vmatprep.subr.mxu0 0.0
    %1546 = vmatpush2.msra.mxu0 0.0
    %1547 = vmatprep.subr.mxu0 0.0
    %1548 = vmatpush2.msra.mxu0 0.0
    %1549 = vmatprep.subr.mxu0 0.0
    %1550 = vmatpush2.msra.mxu0 0.0
    %1551 = vmatprep.mubr.f32.mxu0 0.0
    %1552 = vmatmul.mubr.f32.gmra.mxu0 %v1485
    %v1553 = vpop.f32.mrf.mxu0
    %v1554 = vadd.f32 0.0, %v1553
    %v1555 = vpop.f32.mrf.mxu0
    %1556 = vdwg.mxu0
    %1559 = vrot.lane.b32.xlu0 %v810, 8
    %v1560 = vpop.permute.xlu0 %1559
    %1561 = vrot.lane.b32.xlu0 %v886, 8
    %v1562 = vpop.permute.xlu0 %1561
    %1567 = vrot.lane.b32.xlu0 %v1144, 16
    %v1568 = vpop.permute.xlu0 %1567
    %1569 = vrot.lane.b32.xlu0 %v1220, 16
    %v1570 = vpop.permute.xlu0 %1569
    %1575 = vrot.lane.b32.xlu0 %v1478, 24
    %v1576 = vpop.permute.xlu0 %1575
    %1577 = vrot.lane.b32.xlu0 %v1554, 24
    %v1578 = vpop.permute.xlu0 %1577
    %v1581 = vsel %vm234, %v479, %v1560
    %v1582 = vsel %vm234, %v552, %v1562
    %vm1583 = vcmask 130048
    %v1584 = vsel %vm1583, %v1581, %v1568
    %v1585 = vsel %vm1583, %v1582, %v1570
    %vm1586 = vcmask 195584
    %v1587 = vsel %vm1586, %v1584, %v1576
    %v1588 = vsel %vm1586, %v1585, %v1578
    %v1589 = vld [vmem:[%s5] sm:$0xff]
    %v1590 = vld [vmem:[%s5 + $0x8] sm:$0xff]
    %v1591 = vld [vmem:[%s5 + $0x10] sm:$0xff]
    %v1592 = vld [vmem:[%s5 + $0x18] sm:$0xff]
    %v1593 = vld [vmem:[%s6] sm:$0x1]
    %v1595 = vlaneseq
    %v1596 = vshrl.u32 %v1595, 7
    %v1597 = vsub.s32 0, %v1596
    %v1598 = vrot.slane %v1593, %v1597
    %v1601 = vsel %vm79, %v1587, 0
    %v1604 = vsel %vm79, %v1588, 0
    %1606 = vmatprep.subr.mxu0 0.0
    %1607 = vmatpush1.msra.mxu0 0.0
    %1608 = vmatprep.subr.mxu0 0.0
    %1609 = vmatpush1.msra.mxu0 0.0
    %1610 = vmatprep.subr.mxu0 0.0
    %1611 = vmatpush1.msra.mxu0 0.0
    %1612 = vmatprep.subr.mxu0 0.0
    %1613 = vmatpush1.msra.mxu0 0.0
    %1614 = vmatprep.subr.mxu0 0.0
    %1615 = vmatpush1.msra.mxu0 0.0
    %1616 = vmatprep.subr.mxu0 0.0
    %1617 = vmatpush1.msra.mxu0 0.0
    %1618 = vmatprep.subr.mxu0 0.0
    %1619 = vmatpush1.msra.mxu0 0.0
    %1620 = vmatprep.subr.mxu0 0.0
    %1621 = vmatpush1.msra.mxu0 0.0
    %1622 = vmatprep.subr.mxu0 0.0
    %1623 = vmatpush1.msra.mxu0 0.0
    %1624 = vmatprep.subr.mxu0 0.0
    %1625 = vmatpush1.msra.mxu0 0.0
    %1626 = vmatprep.subr.mxu0 0.0
    %1627 = vmatpush1.msra.mxu0 0.0
    %1628 = vmatprep.subr.mxu0 0.0
    %1629 = vmatpush1.msra.mxu0 0.0
    %1630 = vmatprep.subr.mxu0 0.0
    %1631 = vmatpush1.msra.mxu0 %v1592
    %1632 = vmatprep.subr.mxu0 0.0
    %1633 = vmatpush1.msra.mxu0 %v1591
    %1634 = vmatprep.subr.mxu0 0.0
    %1635 = vmatpush1.msra.mxu0 %v1590
    %1636 = vmatprep.subr.mxu0 0.0
    %1637 = vmatpush1.msra.mxu0 %v1589
    %1638 = vmatprep.subr.mxu0 0.0
    %1639 = vmatpush2.msra.mxu0 0.0
    %1640 = vmatprep.subr.mxu0 0.0
    %1641 = vmatpush2.msra.mxu0 0.0
    %1642 = vmatprep.subr.mxu0 0.0
    %1643 = vmatpush2.msra.mxu0 0.0
    %1644 = vmatprep.subr.mxu0 0.0
    %1645 = vmatpush2.msra.mxu0 0.0
    %1646 = vmatprep.subr.mxu0 0.0
    %1647 = vmatpush2.msra.mxu0 0.0
    %1648 = vmatprep.subr.mxu0 0.0
    %1649 = vmatpush2.msra.mxu0 0.0
    %1650 = vmatprep.subr.mxu0 0.0
    %1651 = vmatpush2.msra.mxu0 0.0
    %1652 = vmatprep.subr.mxu0 0.0
    %1653 = vmatpush2.msra.mxu0 0.0
    %1654 = vmatprep.subr.mxu0 0.0
    %1655 = vmatpush2.msra.mxu0 0.0
    %1656 = vmatprep.subr.mxu0 0.0
    %1657 = vmatpush2.msra.mxu0 0.0
    %1658 = vmatprep.subr.mxu0 0.0
    %1659 = vmatpush2.msra.mxu0 0.0
    %1660 = vmatprep.subr.mxu0 0.0
    %1661 = vmatpush2.msra.mxu0 0.0
    %1662 = vmatprep.subr.mxu0 0.0
    %1663 = vmatpush2.msra.mxu0 0.0
    %1664 = vmatprep.subr.mxu0 0.0
    %1665 = vmatpush2.msra.mxu0 0.0
    %1666 = vmatprep.subr.mxu0 0.0
    %1667 = vmatpush2.msra.mxu0 0.0
    %1668 = vmatprep.subr.mxu0 0.0
    %1669 = vmatpush2.msra.mxu0 0.0
    %1670 = vmatprep.mubr.f32.mxu0 0.0
    %1671 = vmatmul.mubr.f32.gmra.mxu0 %v1601
    %v1672 = vpop.f32.mrf.mxu0
    %v1673 = vadd.f32 %v1598, %v1672
    %v1674 = vpop.f32.mrf.mxu0
    %1675 = vmatprep.mubr.f32.mxu0 0.0
    %1676 = vmatmul.mubr.f32.gmra.mxu0 %v1604
    %v1677 = vpop.f32.mrf.mxu0
    %v1678 = vadd.f32 %v1598, %v1677
    %v1679 = vpop.f32.mrf.mxu0
    %1680 = vdwg.mxu0
    %v1681 = vadd.f32 %v75, %v1673
    %v1682 = vadd.f32 %v76, %v1678
    %v1683 = vld [vmem:[%s7] sm:$0x1]
    %v1684 = vld [vmem:[%s8] sm:$0x1]
    %v1685 = vsel %vm79, %v1681, 0.0
    %1686 = vadd.xlane.f32.xlu0 %v1685
    %v1687 = vpop.xlane.xlu0 %1686
    %v1688 = vsel %vm79, %v1682, 0.0
    %1689 = vadd.xlane.f32.xlu0 %v1688
    %v1690 = vpop.xlane.xlu0 %1689
    %v1691 = vmul.f32 %v1687, %v86
    %v1692 = vmul.f32 %v1690, %v86
    %v1693 = vsub.f32 %v1681, %v1691
    %v1694 = vsub.f32 %v1682, %v1692
    %v1695 = vmul.f32 %v1693, %v1693
    %v1696 = vmul.f32 %v1694, %v1694
    %v1697 = vsel %vm79, %v1695, 0.0
    %1698 = vadd.xlane.f32.xlu0 %v1697
    %v1699 = vpop.xlane.xlu0 %1698
    %v1700 = vsel %vm79, %v1696, 0.0
    %1701 = vadd.xlane.f32.xlu0 %v1700
    %v1702 = vpop.xlane.xlu0 %1701
    %v1703 = vmul.f32 %v1699, %v86
    %v1704 = vmul.f32 %v1702, %v86
    %v1705 = vadd.f32 %v1703, 1e-05
    %v1706 = vadd.f32 %v1704, 1e-05
    %v1707 = vrsqrt.pop %v1705
    %v1708 = vrsqrt.pop %v1706
    %v1709 = vmul.f32 %v1693, %v1707
    %v1710 = vmul.f32 %v1694, %v1708
    %v1712 = vlaneseq
    %v1713 = vshrl.u32 %v1712, 7
    %v1714 = vsub.s32 0, %v1713
    %v1715 = vrot.slane %v1683, %v1714
    %v1717 = vmul.f32 %v1709, %v1715
    %v1718 = vmul.f32 %v1710, %v1715
    %v1720 = vlaneseq
    %v1721 = vshrl.u32 %v1720, 7
    %v1722 = vsub.s32 0, %v1721
    %v1723 = vrot.slane %v1684, %v1722
    %v1725 = vadd.f32 %v1717, %v1723
    %v1726 = vadd.f32 %v1718, %v1723
    %v1727 = vld [vmem:[%s9] sm:$0xff]
    %v1728 = vld [vmem:[%s9 + $0x8] sm:$0xff]
    %v1729 = vld [vmem:[%s9 + $0x10] sm:$0xff]
    %v1730 = vld [vmem:[%s9 + $0x18] sm:$0xff]
    %v1731 = vld [vmem:[%s10] sm:$0x1]
    %v1733 = vlaneseq
    %v1734 = vshrl.u32 %v1733, 7
    %v1735 = vsub.s32 0, %v1734
    %v1736 = vrot.slane %v1731, %v1735
    %v1739 = vsel %vm79, %v1725, 0
    %v1742 = vsel %vm79, %v1726, 0
    %1744 = vmatprep.subr.mxu0 0.0
    %1745 = vmatpush1.msra.mxu0 0.0
    %1746 = vmatprep.subr.mxu0 0.0
    %1747 = vmatpush1.msra.mxu0 0.0
    %1748 = vmatprep.subr.mxu0 0.0
    %1749 = vmatpush1.msra.mxu0 0.0
    %1750 = vmatprep.subr.mxu0 0.0
    %1751 = vmatpush1.msra.mxu0 0.0
    %1752 = vmatprep.subr.mxu0 0.0
    %1753 = vmatpush1.msra.mxu0 0.0
    %1754 = vmatprep.subr.mxu0 0.0
    %1755 = vmatpush1.msra.mxu0 0.0
    %1756 = vmatprep.subr.mxu0 0.0
    %1757 = vmatpush1.msra.mxu0 0.0
    %1758 = vmatprep.subr.mxu0 0.0
    %1759 = vmatpush1.msra.mxu0 0.0
    %1760 = vmatprep.subr.mxu0 0.0
    %1761 = vmatpush1.msra.mxu0 0.0
    %1762 = vmatprep.subr.mxu0 0.0
    %1763 = vmatpush1.msra.mxu0 0.0
    %1764 = vmatprep.subr.mxu0 0.0
    %1765 = vmatpush1.msra.mxu0 0.0
    %1766 = vmatprep.subr.mxu0 0.0
    %1767 = vmatpush1.msra.mxu0 0.0
    %1768 = vmatprep.subr.mxu0 0.0
    %1769 = vmatpush1.msra.mxu0 %v1730
    %1770 = vmatprep.subr.mxu0 0.0
    %1771 = vmatpush1.msra.mxu0 %v1729
    %1772 = vmatprep.subr.mxu0 0.0
    %1773 = vmatpush1.msra.mxu0 %v1728
    %1774 = vmatprep.subr.mxu0 0.0
    %1775 = vmatpush1.msra.mxu0 %v1727
    %1776 = vmatprep.subr.mxu0 0.0
    %1777 = vmatpush2.msra.mxu0 0.0
    %1778 = vmatprep.subr.mxu0 0.0
    %1779 = vmatpush2.msra.mxu0 0.0
    %1780 = vmatprep.subr.mxu0 0.0
    %1781 = vmatpush2.msra.mxu0 0.0
    %1782 = vmatprep.subr.mxu0 0.0
    %1783 = vmatpush2.msra.mxu0 0.0
    %1784 = vmatprep.subr.mxu0 0.0
    %1785 = vmatpush2.msra.mxu0 0.0
    %1786 = vmatprep.subr.mxu0 0.0
    %1787 = vmatpush2.msra.mxu0 0.0
    %1788 = vmatprep.subr.mxu0 0.0
    %1789 = vmatpush2.msra.mxu0 0.0
    %1790 = vmatprep.subr.mxu0 0.0
    %1791 = vmatpush2.msra.mxu0 0.0
    %1792 = vmatprep.subr.mxu0 0.0
    %1793 = vmatpush2.msra.mxu0 0.0
    %1794 = vmatprep.subr.mxu0 0.0
    %1795 = vmatpush2.msra.mxu0 0.0
    %1796 = vmatprep.subr.mxu0 0.0
    %1797 = vmatpush2.msra.mxu0 0.0
    %1798 = vmatprep.subr.mxu0 0.0
    %1799 = vmatpush2.msra.mxu0 0.0
    %1800 = vmatprep.subr.mxu0 0.0
    %1801 = vmatpush2.msra.mxu0 0.0
    %1802 = vmatprep.subr.mxu0 0.0
    %1803 = vmatpush2.msra.mxu0 0.0
    %1804 = vmatprep.subr.mxu0 0.0
    %1805 = vmatpush2.msra.mxu0 0.0
    %1806 = vmatprep.subr.mxu0 0.0
    %1807 = vmatpush2.msra.mxu0 0.0
    %1808 = vmatprep.mubr.f32.mxu0 0.0
    %1809 = vmatmul.mubr.f32.gmra.mxu0 %v1739
    %v1810 = vpop.f32.mrf.mxu0
    %v1811 = vadd.f32 %v1736, %v1810
    %v1812 = vpop.f32.mrf.mxu0
    %1813 = vmatprep.mubr.f32.mxu0 0.0
    %1814 = vmatmul.mubr.f32.gmra.mxu0 %v1742
    %v1815 = vpop.f32.mrf.mxu0
    %v1816 = vadd.f32 %v1736, %v1815
    %v1817 = vpop.f32.mrf.mxu0
    %1818 = vdwg.mxu0
    %v1819 = vmul.f32 %v1811, 0.5
    %v1820 = vmul.f32 %v1816, 0.5
    %v1821 = vmul.f32 %v1811, 0.044715
    %v1822 = vmul.f32 %v1816, 0.044715
    %v1823 = vmul.f32 %v1821, %v1811
    %v1824 = vmul.f32 %v1822, %v1816
    %v1825 = vmul.f32 %v1823, %v1811
    %v1826 = vmul.f32 %v1824, %v1816
    %v1827 = vadd.f32 %v1811, %v1825
    %v1828 = vadd.f32 %v1816, %v1826
    %v1829 = vmul.f32 %v1827, 0.7978846
    %v1830 = vmul.f32 %v1828, 0.7978846
    %v1831 = vtanh.pop %v1829
    %v1832 = vtanh.pop %v1830
    %v1833 = vadd.f32 %v1831, 1.0
    %v1834 = vadd.f32 %v1832, 1.0
    %v1835 = vmul.f32 %v1819, %v1833
    %v1836 = vmul.f32 %v1820, %v1834
    %v1837 = vld [vmem:[#allocation2] sm:$0xff]
    %v1838 = vld [vmem:[#allocation2 + $0x8] sm:$0xff]
    %v1839 = vld [vmem:[#allocation2 + $0x10] sm:$0xff]
    %v1840 = vld [vmem:[#allocation2 + $0x18] sm:$0xff]
    %v1841 = vld [vmem:[#allocation2 + $0x20] sm:$0xff]
    %v1842 = vld [vmem:[#allocation2 + $0x28] sm:$0xff]
    %v1843 = vld [vmem:[#allocation2 + $0x30] sm:$0xff]
    %v1844 = vld [vmem:[#allocation2 + $0x38] sm:$0xff]
    %v1845 = vld [vmem:[#allocation2 + $0x40] sm:$0xff]
    %v1846 = vld [vmem:[#allocation2 + $0x48] sm:$0xff]
    %v1847 = vld [vmem:[#allocation2 + $0x50] sm:$0xff]
    %v1848 = vld [vmem:[#allocation2 + $0x58] sm:$0xff]
    %v1849 = vld [vmem:[#allocation2 + $0x60] sm:$0xff]
    %v1850 = vld [vmem:[#allocation2 + $0x68] sm:$0xff]
    %v1851 = vld [vmem:[#allocation2 + $0x70] sm:$0xff]
    %v1852 = vld [vmem:[#allocation2 + $0x78] sm:$0xff]
    %v1853 = vld [vmem:[%s12] sm:$0x1]
    %v1855 = vlaneseq
    %v1856 = vshrl.u32 %v1855, 7
    %v1857 = vsub.s32 0, %v1856
    %v1858 = vrot.slane %v1853, %v1857
    %1860 = vmatprep.subr.mxu0 0.0
    %1861 = vmatpush1.msra.mxu0 %v1852
    %1862 = vmatprep.subr.mxu0 0.0
    %1863 = vmatpush1.msra.mxu0 %v1851
    %1864 = vmatprep.subr.mxu0 0.0
    %1865 = vmatpush1.msra.mxu0 %v1850
    %1866 = vmatprep.subr.mxu0 0.0
    %1867 = vmatpush1.msra.mxu0 %v1849
    %1868 = vmatprep.subr.mxu0 0.0
    %1869 = vmatpush1.msra.mxu0 %v1848
    %1870 = vmatprep.subr.mxu0 0.0
    %1871 = vmatpush1.msra.mxu0 %v1847
    %1872 = vmatprep.subr.mxu0 0.0
    %1873 = vmatpush1.msra.mxu0 %v1846
    %1874 = vmatprep.subr.mxu0 0.0
    %1875 = vmatpush1.msra.mxu0 %v1845
    %1876 = vmatprep.subr.mxu0 0.0
    %1877 = vmatpush1.msra.mxu0 %v1844
    %1878 = vmatprep.subr.mxu0 0.0
    %1879 = vmatpush1.msra.mxu0 %v1843
    %1880 = vmatprep.subr.mxu0 0.0
    %1881 = vmatpush1.msra.mxu0 %v1842
    %1882 = vmatprep.subr.mxu0 0.0
    %1883 = vmatpush1.msra.mxu0 %v1841
    %1884 = vmatprep.subr.mxu0 0.0
    %1885 = vmatpush1.msra.mxu0 %v1840
    %1886 = vmatprep.subr.mxu0 0.0
    %1887 = vmatpush1.msra.mxu0 %v1839
    %1888 = vmatprep.subr.mxu0 0.0
    %1889 = vmatpush1.msra.mxu0 %v1838
    %1890 = vmatprep.subr.mxu0 0.0
    %1891 = vmatpush1.msra.mxu0 %v1837
    %1892 = vmatprep.subr.mxu0 0.0
    %1893 = vmatpush2.msra.mxu0 0.0
    %1894 = vmatprep.subr.mxu0 0.0
    %1895 = vmatpush2.msra.mxu0 0.0
    %1896 = vmatprep.subr.mxu0 0.0
    %1897 = vmatpush2.msra.mxu0 0.0
    %1898 = vmatprep.subr.mxu0 0.0
    %1899 = vmatpush2.msra.mxu0 0.0
    %1900 = vmatprep.subr.mxu0 0.0
    %1901 = vmatpush2.msra.mxu0 0.0
    %1902 = vmatprep.subr.mxu0 0.0
    %1903 = vmatpush2.msra.mxu0 0.0
    %1904 = vmatprep.subr.mxu0 0.0
    %1905 = vmatpush2.msra.mxu0 0.0
    %1906 = vmatprep.subr.mxu0 0.0
    %1907 = vmatpush2.msra.mxu0 0.0
    %1908 = vmatprep.subr.mxu0 0.0
    %1909 = vmatpush2.msra.mxu0 0.0
    %1910 = vmatprep.subr.mxu0 0.0
    %1911 = vmatpush2.msra.mxu0 0.0
    %1912 = vmatprep.subr.mxu0 0.0
    %1913 = vmatpush2.msra.mxu0 0.0
    %1914 = vmatprep.subr.mxu0 0.0
    %1915 = vmatpush2.msra.mxu0 0.0
    %1916 = vmatprep.subr.mxu0 0.0
    %1917 = vmatpush2.msra.mxu0 0.0
    %1918 = vmatprep.subr.mxu0 0.0
    %1919 = vmatpush2.msra.mxu0 0.0
    %1920 = vmatprep.subr.mxu0 0.0
    %1921 = vmatpush2.msra.mxu0 0.0
    %1922 = vmatprep.subr.mxu0 0.0
    %1923 = vmatpush2.msra.mxu0 0.0
    %1924 = vmatprep.mubr.f32.mxu0 0.0
    %1925 = vmatmul.mubr.f32.gmra.mxu0 %v1835
    %v1926 = vpop.f32.mrf.mxu0
    %v1927 = vadd.f32 %v1858, %v1926
    %v1928 = vpop.f32.mrf.mxu0
    %1929 = vmatprep.mubr.f32.mxu0 0.0
    %1930 = vmatmul.mubr.f32.gmra.mxu0 %v1836
    %v1931 = vpop.f32.mrf.mxu0
    %v1932 = vadd.f32 %v1858, %v1931
    %v1933 = vpop.f32.mrf.mxu0
    %1934 = vdwg.mxu0
    %v1935 = vadd.f32 %v1681, %v1927
    %v1936 = vadd.f32 %v1682, %v1932
    %s1937 = scalar_lea.vmem %s1, 1
    %v1938 = vld [vmem:[%s1937] sm:$0x1]
    %s1939 = scalar_lea.vmem %s2, 1
    %v1940 = vld [vmem:[%s1939] sm:$0x1]
    %v1941 = vsel %vm79, %v1935, 0.0
    %1942 = vadd.xlane.f32.xlu0 %v1941
    %v1943 = vpop.xlane.xlu0 %1942
    %v1944 = vsel %vm79, %v1936, 0.0
    %1945 = vadd.xlane.f32.xlu0 %v1944
    %v1946 = vpop.xlane.xlu0 %1945
    %v1947 = vmul.f32 %v1943, %v86
    %v1948 = vmul.f32 %v1946, %v86
    %v1949 = vsub.f32 %v1935, %v1947
    %v1950 = vsub.f32 %v1936, %v1948
    %v1951 = vmul.f32 %v1949, %v1949
    %v1952 = vmul.f32 %v1950, %v1950
    %v1953 = vsel %vm79, %v1951, 0.0
    %1954 = vadd.xlane.f32.xlu0 %v1953
    %v1955 = vpop.xlane.xlu0 %1954
    %v1956 = vsel %vm79, %v1952, 0.0
    %1957 = vadd.xlane.f32.xlu0 %v1956
    %v1958 = vpop.xlane.xlu0 %1957
    %v1959 = vmul.f32 %v1955, %v86
    %v1960 = vmul.f32 %v1958, %v86
    %v1961 = vadd.f32 %v1959, 1e-05
    %v1962 = vadd.f32 %v1960, 1e-05
    %v1963 = vrsqrt.pop %v1961
    %v1964 = vrsqrt.pop %v1962
    %v1965 = vmul.f32 %v1949, %v1963
    %v1966 = vmul.f32 %v1950, %v1964
    %v1968 = vlaneseq
    %v1969 = vshrl.u32 %v1968, 7
    %v1970 = vsub.s32 0, %v1969
    %v1971 = vrot.slane %v1938, %v1970
    %v1973 = vmul.f32 %v1965, %v1971
    %v1974 = vmul.f32 %v1966, %v1971
    %v1976 = vlaneseq
    %v1977 = vshrl.u32 %v1976, 7
    %v1978 = vsub.s32 0, %v1977
    %v1979 = vrot.slane %v1940, %v1978
    %v1981 = vadd.f32 %v1973, %v1979
    %v1982 = vadd.f32 %v1974, %v1979
    %s1983 = scalar_lea.vmem %s3, 32
    %v1984 = vld [vmem:[%s1983] sm:$0xff]
    %v1985 = vld [vmem:[%s1983 + $0x8] sm:$0xff]
    %v1986 = vld [vmem:[%s1983 + $0x10] sm:$0xff]
    %v1987 = vld [vmem:[%s1983 + $0x18] sm:$0xff]
    %s1988 = scalar_lea.vmem %s4, 1
    %v1989 = vld [vmem:[%s1988] sm:$0x1]
    %v1991 = vlaneseq
    %v1992 = vshrl.u32 %v1991, 7
    %v1993 = vsub.s32 0, %v1992
    %v1994 = vrot.slane %v1989, %v1993
    %v1997 = vsel %vm79, %v1981, 0
    %v2000 = vsel %vm79, %v1982, 0
    %2002 = vmatprep.subr.mxu0 0.0
    %2003 = vmatpush1.msra.mxu0 0.0
    %2004 = vmatprep.subr.mxu0 0.0
    %2005 = vmatpush1.msra.mxu0 0.0
    %2006 = vmatprep.subr.mxu0 0.0
    %2007 = vmatpush1.msra.mxu0 0.0
    %2008 = vmatprep.subr.mxu0 0.0
    %2009 = vmatpush1.msra.mxu0 0.0
    %2010 = vmatprep.subr.mxu0 0.0
    %2011 = vmatpush1.msra.mxu0 0.0
    %2012 = vmatprep.subr.mxu0 0.0
    %2013 = vmatpush1.msra.mxu0 0.0
    %2014 = vmatprep.subr.mxu0 0.0
    %2015 = vmatpush1.msra.mxu0 0.0
    %2016 = vmatprep.subr.mxu0 0.0
    %2017 = vmatpush1.msra.mxu0 0.0
    %2018 = vmatprep.subr.mxu0 0.0
    %2019 = vmatpush1.msra.mxu0 0.0
    %2020 = vmatprep.subr.mxu0 0.0
    %2021 = vmatpush1.msra.mxu0 0.0
    %2022 = vmatprep.subr.mxu0 0.0
    %2023 = vmatpush1.msra.mxu0 0.0
    %2024 = vmatprep.subr.mxu0 0.0
    %2025 = vmatpush1.msra.mxu0 0.0
    %2026 = vmatprep.subr.mxu0 0.0
    %2027 = vmatpush1.msra.mxu0 %v1987
    %2028 = vmatprep.subr.mxu0 0.0
    %2029 = vmatpush1.msra.mxu0 %v1986
    %2030 = vmatprep.subr.mxu0 0.0
    %2031 = vmatpush1.msra.mxu0 %v1985
    %2032 = vmatprep.subr.mxu0 0.0
    %2033 = vmatpush1.msra.mxu0 %v1984
    %2034 = vmatprep.subr.mxu0 0.0
    %2035 = vmatpush2.msra.mxu0 0.0
    %2036 = vmatprep.subr.mxu0 0.0
    %2037 = vmatpush2.msra.mxu0 0.0
    %2038 = vmatprep.subr.mxu0 0.0
    %2039 = vmatpush2.msra.mxu0 0.0
    %2040 = vmatprep.subr.mxu0 0.0
    %2041 = vmatpush2.msra.mxu0 0.0
    %2042 = vmatprep.subr.mxu0 0.0
    %2043 = vmatpush2.msra.mxu0 0.0
    %2044 = vmatprep.subr.mxu0 0.0
    %2045 = vmatpush2.msra.mxu0 0.0
    %2046 = vmatprep.subr.mxu0 0.0
    %2047 = vmatpush2.msra.mxu0 0.0
    %2048 = vmatprep.subr.mxu0 0.0
    %2049 = vmatpush2.msra.mxu0 0.0
    %2050 = vmatprep.subr.mxu0 0.0
    %2051 = vmatpush2.msra.mxu0 0.0
    %2052 = vmatprep.subr.mxu0 0.0
    %2053 = vmatpush2.msra.mxu0 0.0
    %2054 = vmatprep.subr.mxu0 0.0
    %2055 = vmatpush2.msra.mxu0 0.0
    %2056 = vmatprep.subr.mxu0 0.0
    %2057 = vmatpush2.msra.mxu0 0.0
    %2058 = vmatprep.subr.mxu0 0.0
    %2059 = vmatpush2.msra.mxu0 0.0
    %2060 = vmatprep.subr.mxu0 0.0
    %2061 = vmatpush2.msra.mxu0 0.0
    %2062 = vmatprep.subr.mxu0 0.0
    %2063 = vmatpush2.msra.mxu0 0.0
    %2064 = vmatprep.subr.mxu0 0.0
    %2065 = vmatpush2.msra.mxu0 0.0
    %2066 = vmatprep.mubr.f32.mxu0 0.0
    %2067 = vmatmul.mubr.f32.gmra.mxu0 %v1997
    %v2068 = vpop.f32.mrf.mxu0
    %v2069 = vadd.f32 %v1994, %v2068
    %v2070 = vpop.f32.mrf.mxu0
    %2071 = vmatprep.mubr.f32.mxu0 0.0
    %2072 = vmatmul.mubr.f32.gmra.mxu0 %v2000
    %v2073 = vpop.f32.mrf.mxu0
    %v2074 = vadd.f32 %v1994, %v2073
    %v2075 = vpop.f32.mrf.mxu0
    %2076 = vdwg.mxu0
    %2079 = vrot.lane.b32.xlu0 %v2069, 96
    %v2080 = vpop.permute.xlu0 %2079
    %2081 = vrot.lane.b32.xlu0 %v2074, 96
    %v2082 = vpop.permute.xlu0 %2081
    %s2085 = scalar_lea.vmem %s17, 32
    %2086 = vst.msk [vmem:[%s2085] sm:$0xff] %vm79, %v2080
    %2087 = vst.msk [vmem:[%s2085 + $0x8] sm:$0xff] %vm79, %v2082
    %2088 = vrot.lane.b32.xlu0 %v2069, 64
    %v2089 = vpop.permute.xlu0 %2088
    %2090 = vrot.lane.b32.xlu0 %v2074, 64
    %v2091 = vpop.permute.xlu0 %2090
    %s2094 = scalar_lea.vmem %s17, 48
    %2095 = vst.msk [vmem:[%s2094] sm:$0xff] %vm79, %v2089
    %2096 = vst.msk [vmem:[%s2094 + $0x8] sm:$0xff] %vm79, %v2091
    %v2097 = vsel %vm234, %v2069, 0
    %v2099 = vsel %vm234, %v2080, 0
    %2101 = vmatprep.subr.mxu0 0.0
    %2102 = vmatpush1.xpose.msra.mxu0 0.0
    %2103 = vmatprep.subr.mxu0 0.0
    %2104 = vmatpush1.xpose.msra.mxu0 0.0
    %2105 = vmatprep.subr.mxu0 0.0
    %2106 = vmatpush1.xpose.msra.mxu0 0.0
    %2107 = vmatprep.subr.mxu0 0.0
    %2108 = vmatpush1.xpose.msra.mxu0 0.0
    %2109 = vmatprep.subr.mxu0 0.0
    %2110 = vmatpush1.xpose.msra.mxu0 0.0
    %2111 = vmatprep.subr.mxu0 0.0
    %2112 = vmatpush1.xpose.msra.mxu0 0.0
    %2113 = vmatprep.subr.mxu0 0.0
    %2114 = vmatpush1.xpose.msra.mxu0 0.0
    %2115 = vmatprep.subr.mxu0 0.0
    %2116 = vmatpush1.xpose.msra.mxu0 0.0
    %2117 = vmatprep.subr.mxu0 0.0
    %2118 = vmatpush1.xpose.msra.mxu0 0.0
    %2119 = vmatprep.subr.mxu0 0.0
    %2120 = vmatpush1.xpose.msra.mxu0 0.0
    %2121 = vmatprep.subr.mxu0 0.0
    %2122 = vmatpush1.xpose.msra.mxu0 0.0
    %2123 = vmatprep.subr.mxu0 0.0
    %2124 = vmatpush1.xpose.msra.mxu0 0.0
    %2125 = vmatprep.subr.mxu0 0.0
    %2126 = vmatpush1.xpose.msra.mxu0 0.0
    %2127 = vmatprep.subr.mxu0 0.0
    %2128 = vmatpush1.xpose.msra.mxu0 0.0
    %2129 = vmatprep.subr.mxu0 0.0
    %2130 = vmatpush1.xpose.msra.mxu0 0.0
    %2131 = vmatprep.subr.mxu0 0.0
    %2132 = vmatpush1.xpose.msra.mxu0 %v2099
    %2133 = vmatprep.subr.mxu0 0.0
    %2134 = vmatpush2.xpose.msra.mxu0 0.0
    %2135 = vmatprep.subr.mxu0 0.0
    %2136 = vmatpush2.xpose.msra.mxu0 0.0
    %2137 = vmatprep.subr.mxu0 0.0
    %2138 = vmatpush2.xpose.msra.mxu0 0.0
    %2139 = vmatprep.subr.mxu0 0.0
    %2140 = vmatpush2.xpose.msra.mxu0 0.0
    %2141 = vmatprep.subr.mxu0 0.0
    %2142 = vmatpush2.xpose.msra.mxu0 0.0
    %2143 = vmatprep.subr.mxu0 0.0
    %2144 = vmatpush2.xpose.msra.mxu0 0.0
    %2145 = vmatprep.subr.mxu0 0.0
    %2146 = vmatpush2.xpose.msra.mxu0 0.0
    %2147 = vmatprep.subr.mxu0 0.0
    %2148 = vmatpush2.xpose.msra.mxu0 0.0
    %2149 = vmatprep.subr.mxu0 0.0
    %2150 = vmatpush2.xpose.msra.mxu0 0.0
    %2151 = vmatprep.subr.mxu0 0.0
    %2152 = vmatpush2.xpose.msra.mxu0 0.0
    %2153 = vmatprep.subr.mxu0 0.0
    %2154 = vmatpush2.xpose.msra.mxu0 0.0
    %2155 = vmatprep.subr.mxu0 0.0
    %2156 = vmatpush2.xpose.msra.mxu0 0.0
    %2157 = vmatprep.subr.mxu0 0.0
    %2158 = vmatpush2.xpose.msra.mxu0 0.0
    %2159 = vmatprep.subr.mxu0 0.0
    %2160 = vmatpush2.xpose.msra.mxu0 0.0
    %2161 = vmatprep.subr.mxu0 0.0
    %2162 = vmatpush2.xpose.msra.mxu0 0.0
    %2163 = vmatprep.subr.mxu0 0.0
    %2164 = vmatpush2.xpose.msra.mxu0 0.0
    %2165 = vmatprep.mubr.f32.mxu0 0.0
    %2166 = vmatmul.mubr.f32.gmra.mxu0 %v2097
    %v2167 = vpop.f32.mrf.mxu0
    %v2168 = vadd.f32 0.0, %v2167
    %v2169 = vpop.f32.mrf.mxu0
    %2170 = vdwg.mxu0
    %v2171 = vsel %vm234, %v2074, 0
    %v2173 = vsel %vm234, %v2082, 0
    %2175 = vmatprep.subr.mxu0 0.0
    %2176 = vmatpush1.xpose.msra.mxu0 0.0
    %2177 = vmatprep.subr.mxu0 0.0
    %2178 = vmatpush1.xpose.msra.mxu0 0.0
    %2179 = vmatprep.subr.mxu0 0.0
    %2180 = vmatpush1.xpose.msra.mxu0 0.0
    %2181 = vmatprep.subr.mxu0 0.0
    %2182 = vmatpush1.xpose.msra.mxu0 0.0
    %2183 = vmatprep.subr.mxu0 0.0
    %2184 = vmatpush1.xpose.msra.mxu0 0.0
    %2185 = vmatprep.subr.mxu0 0.0
    %2186 = vmatpush1.xpose.msra.mxu0 0.0
    %2187 = vmatprep.subr.mxu0 0.0
    %2188 = vmatpush1.xpose.msra.mxu0 0.0
    %2189 = vmatprep.subr.mxu0 0.0
    %2190 = vmatpush1.xpose.msra.mxu0 0.0
    %2191 = vmatprep.subr.mxu0 0.0
    %2192 = vmatpush1.xpose.msra.mxu0 0.0
    %2193 = vmatprep.subr.mxu0 0.0
    %2194 = vmatpush1.xpose.msra.mxu0 0.0
    %2195 = vmatprep.subr.mxu0 0.0
    %2196 = vmatpush1.xpose.msra.mxu0 0.0
    %2197 = vmatprep.subr.mxu0 0.0
    %2198 = vmatpush1.xpose.msra.mxu0 0.0
    %2199 = vmatprep.subr.mxu0 0.0
    %2200 = vmatpush1.xpose.msra.mxu0 0.0
    %2201 = vmatprep.subr.mxu0 0.0
    %2202 = vmatpush1.xpose.msra.mxu0 0.0
    %2203 = vmatprep.subr.mxu0 0.0
    %2204 = vmatpush1.xpose.msra.mxu0 0.0
    %2205 = vmatprep.subr.mxu0 0.0
    %2206 = vmatpush1.xpose.msra.mxu0 %v2173
    %2207 = vmatprep.subr.mxu0 0.0
    %2208 = vmatpush2.xpose.msra.mxu0 0.0
    %2209 = vmatprep.subr.mxu0 0.0
    %2210 = vmatpush2.xpose.msra.mxu0 0.0
    %2211 = vmatprep.subr.mxu0 0.0
    %2212 = vmatpush2.xpose.msra.mxu0 0.0
    %2213 = vmatprep.subr.mxu0 0.0
    %2214 = vmatpush2.xpose.msra.mxu0 0.0
    %2215 = vmatprep.subr.mxu0 0.0
    %2216 = vmatpush2.xpose.msra.mxu0 0.0
    %2217 = vmatprep.subr.mxu0 0.0
    %2218 = vmatpush2.xpose.msra.mxu0 0.0
    %2219 = vmatprep.subr.mxu0 0.0
    %2220 = vmatpush2.xpose.msra.mxu0 0.0
    %2221 = vmatprep.subr.mxu0 0.0
    %2222 = vmatpush2.xpose.msra.mxu0 0.0
    %2223 = vmatprep.subr.mxu0 0.0
    %2224 = vmatpush2.xpose.msra.mxu0 0.0
    %2225 = vmatprep.subr.mxu0 0.0
    %2226 = vmatpush2.xpose.msra.mxu0 0.0
    %2227 = vmatprep.subr.mxu0 0.0
    %2228 = vmatpush2.xpose.msra.mxu0 0.0
    %2229 = vmatprep.subr.mxu0 0.0
    %2230 = vmatpush2.xpose.msra.mxu0 0.0
    %2231 = vmatprep.subr.mxu0 0.0
    %2232 = vmatpush2.xpose.msra.mxu0 0.0
    %2233 = vmatprep.subr.mxu0 0.0
    %2234 = vmatpush2.xpose.msra.mxu0 0.0
    %2235 = vmatprep.subr.mxu0 0.0
    %2236 = vmatpush2.xpose.msra.mxu0 0.0
    %2237 = vmatprep.subr.mxu0 0.0
    %2238 = vmatpush2.xpose.msra.mxu0 0.0
    %2239 = vmatprep.mubr.f32.mxu0 0.0
    %2240 = vmatmul.mubr.f32.gmra.mxu0 %v2171
    %v2241 = vpop.f32.mrf.mxu0
    %v2242 = vadd.f32 0.0, %v2241
    %v2243 = vpop.f32.mrf.mxu0
    %2244 = vdwg.mxu0
    %v2245 = vmul.f32 %v2168, 0.35355338
    %v2246 = vmul.f32 %v2242, 0.35355338
    %v2247 = vsel %vm74, %v2245, -1e+30
    %v2248 = vsel %vm74, %v2246, -1e+30
    %v2249 = vsel %vm234, %v2247, -inf
    %2250 = vmax.xlane.f32.xlu0 %v2249
    %v2251 = vpop.xlane.xlu0 %2250
    %v2252 = vsel %vm234, %v2248, -inf
    %2253 = vmax.xlane.f32.xlu0 %v2252
    %v2254 = vpop.xlane.xlu0 %2253
    %v2255 = vsub.f32 %v2247, %v2251
    %v2256 = vsub.f32 %v2248, %v2254
    %v2257 = vmul.f32 %v2255, 1.442695
    %v2258 = vpow.pop %v2257
    %v2259 = vmul.f32 %v2256, 1.442695
    %v2260 = vpow.pop %v2259
    %v2261 = vsel %vm234, %v2258, 0.0
    %2262 = vadd.xlane.f32.xlu0 %v2261
    %v2263 = vpop.xlane.xlu0 %2262
    %v2264 = vsel %vm234, %v2260, 0.0
    %2265 = vadd.xlane.f32.xlu0 %v2264
    %v2266 = vpop.xlane.xlu0 %2265
    %v2267 = vrcp.pop %v2263
    %v2268 = vrcp.pop %v2266
    %v2269 = vmul.f32 %v2258, %v2267
    %v2270 = vmul.f32 %v2260, %v2268
    %v2272 = vsel %vm234, %v2269, 0
    %2274 = vmatprep.subr.mxu0 0.0
    %2275 = vmatpush1.msra.mxu0 0.0
    %2276 = vmatprep.subr.mxu0 0.0
    %2277 = vmatpush1.msra.mxu0 0.0
    %2278 = vmatprep.subr.mxu0 0.0
    %2279 = vmatpush1.msra.mxu0 0.0
    %2280 = vmatprep.subr.mxu0 0.0
    %2281 = vmatpush1.msra.mxu0 0.0
    %2282 = vmatprep.subr.mxu0 0.0
    %2283 = vmatpush1.msra.mxu0 0.0
    %2284 = vmatprep.subr.mxu0 0.0
    %2285 = vmatpush1.msra.mxu0 0.0
    %2286 = vmatprep.subr.mxu0 0.0
    %2287 = vmatpush1.msra.mxu0 0.0
    %2288 = vmatprep.subr.mxu0 0.0
    %2289 = vmatpush1.msra.mxu0 0.0
    %2290 = vmatprep.subr.mxu0 0.0
    %2291 = vmatpush1.msra.mxu0 0.0
    %2292 = vmatprep.subr.mxu0 0.0
    %2293 = vmatpush1.msra.mxu0 0.0
    %2294 = vmatprep.subr.mxu0 0.0
    %2295 = vmatpush1.msra.mxu0 0.0
    %2296 = vmatprep.subr.mxu0 0.0
    %2297 = vmatpush1.msra.mxu0 0.0
    %2298 = vmatprep.subr.mxu0 0.0
    %2299 = vmatpush1.msra.mxu0 0.0
    %2300 = vmatprep.subr.mxu0 0.0
    %2301 = vmatpush1.msra.mxu0 0.0
    %2302 = vmatprep.subr.mxu0 0.0
    %2303 = vmatpush1.msra.mxu0 0.0
    %2304 = vmatprep.subr.mxu0 0.0
    %2305 = vmatpush1.msra.mxu0 %v2089
    %2306 = vmatprep.subr.mxu0 0.0
    %2307 = vmatpush2.msra.mxu0 0.0
    %2308 = vmatprep.subr.mxu0 0.0
    %2309 = vmatpush2.msra.mxu0 0.0
    %2310 = vmatprep.subr.mxu0 0.0
    %2311 = vmatpush2.msra.mxu0 0.0
    %2312 = vmatprep.subr.mxu0 0.0
    %2313 = vmatpush2.msra.mxu0 0.0
    %2314 = vmatprep.subr.mxu0 0.0
    %2315 = vmatpush2.msra.mxu0 0.0
    %2316 = vmatprep.subr.mxu0 0.0
    %2317 = vmatpush2.msra.mxu0 0.0
    %2318 = vmatprep.subr.mxu0 0.0
    %2319 = vmatpush2.msra.mxu0 0.0
    %2320 = vmatprep.subr.mxu0 0.0
    %2321 = vmatpush2.msra.mxu0 0.0
    %2322 = vmatprep.subr.mxu0 0.0
    %2323 = vmatpush2.msra.mxu0 0.0
    %2324 = vmatprep.subr.mxu0 0.0
    %2325 = vmatpush2.msra.mxu0 0.0
    %2326 = vmatprep.subr.mxu0 0.0
    %2327 = vmatpush2.msra.mxu0 0.0
    %2328 = vmatprep.subr.mxu0 0.0
    %2329 = vmatpush2.msra.mxu0 0.0
    %2330 = vmatprep.subr.mxu0 0.0
    %2331 = vmatpush2.msra.mxu0 0.0
    %2332 = vmatprep.subr.mxu0 0.0
    %2333 = vmatpush2.msra.mxu0 0.0
    %2334 = vmatprep.subr.mxu0 0.0
    %2335 = vmatpush2.msra.mxu0 0.0
    %2336 = vmatprep.subr.mxu0 0.0
    %2337 = vmatpush2.msra.mxu0 0.0
    %2338 = vmatprep.mubr.f32.mxu0 0.0
    %2339 = vmatmul.mubr.f32.gmra.mxu0 %v2272
    %v2340 = vpop.f32.mrf.mxu0
    %v2341 = vadd.f32 0.0, %v2340
    %v2342 = vpop.f32.mrf.mxu0
    %2343 = vdwg.mxu0
    %v2345 = vsel %vm234, %v2270, 0
    %2347 = vmatprep.subr.mxu0 0.0
    %2348 = vmatpush1.msra.mxu0 0.0
    %2349 = vmatprep.subr.mxu0 0.0
    %2350 = vmatpush1.msra.mxu0 0.0
    %2351 = vmatprep.subr.mxu0 0.0
    %2352 = vmatpush1.msra.mxu0 0.0
    %2353 = vmatprep.subr.mxu0 0.0
    %2354 = vmatpush1.msra.mxu0 0.0
    %2355 = vmatprep.subr.mxu0 0.0
    %2356 = vmatpush1.msra.mxu0 0.0
    %2357 = vmatprep.subr.mxu0 0.0
    %2358 = vmatpush1.msra.mxu0 0.0
    %2359 = vmatprep.subr.mxu0 0.0
    %2360 = vmatpush1.msra.mxu0 0.0
    %2361 = vmatprep.subr.mxu0 0.0
    %2362 = vmatpush1.msra.mxu0 0.0
    %2363 = vmatprep.subr.mxu0 0.0
    %2364 = vmatpush1.msra.mxu0 0.0
    %2365 = vmatprep.subr.mxu0 0.0
    %2366 = vmatpush1.msra.mxu0 0.0
    %2367 = vmatprep.subr.mxu0 0.0
    %2368 = vmatpush1.msra.mxu0 0.0
    %2369 = vmatprep.subr.mxu0 0.0
    %2370 = vmatpush1.msra.mxu0 0.0
    %2371 = vmatprep.subr.mxu0 0.0
    %2372 = vmatpush1.msra.mxu0 0.0
    %2373 = vmatprep.subr.mxu0 0.0
    %2374 = vmatpush1.msra.mxu0 0.0
    %2375 = vmatprep.subr.mxu0 0.0
    %2376 = vmatpush1.msra.mxu0 0.0
    %2377 = vmatprep.subr.mxu0 0.0
    %2378 = vmatpush1.msra.mxu0 %v2091
    %2379 = vmatprep.subr.mxu0 0.0
    %2380 = vmatpush2.msra.mxu0 0.0
    %2381 = vmatprep.subr.mxu0 0.0
    %2382 = vmatpush2.msra.mxu0 0.0
    %2383 = vmatprep.subr.mxu0 0.0
    %2384 = vmatpush2.msra.mxu0 0.0
    %2385 = vmatprep.subr.mxu0 0.0
    %2386 = vmatpush2.msra.mxu0 0.0
    %2387 = vmatprep.subr.mxu0 0.0
    %2388 = vmatpush2.msra.mxu0 0.0
    %2389 = vmatprep.subr.mxu0 0.0
    %2390 = vmatpush2.msra.mxu0 0.0
    %2391 = vmatprep.subr.mxu0 0.0
    %2392 = vmatpush2.msra.mxu0 0.0
    %2393 = vmatprep.subr.mxu0 0.0
    %2394 = vmatpush2.msra.mxu0 0.0
    %2395 = vmatprep.subr.mxu0 0.0
    %2396 = vmatpush2.msra.mxu0 0.0
    %2397 = vmatprep.subr.mxu0 0.0
    %2398 = vmatpush2.msra.mxu0 0.0
    %2399 = vmatprep.subr.mxu0 0.0
    %2400 = vmatpush2.msra.mxu0 0.0
    %2401 = vmatprep.subr.mxu0 0.0
    %2402 = vmatpush2.msra.mxu0 0.0
    %2403 = vmatprep.subr.mxu0 0.0
    %2404 = vmatpush2.msra.mxu0 0.0
    %2405 = vmatprep.subr.mxu0 0.0
    %2406 = vmatpush2.msra.mxu0 0.0
    %2407 = vmatprep.subr.mxu0 0.0
    %2408 = vmatpush2.msra.mxu0 0.0
    %2409 = vmatprep.subr.mxu0 0.0
    %2410 = vmatpush2.msra.mxu0 0.0
    %2411 = vmatprep.mubr.f32.mxu0 0.0
    %2412 = vmatmul.mubr.f32.gmra.mxu0 %v2345
    %v2413 = vpop.f32.mrf.mxu0
    %v2414 = vadd.f32 0.0, %v2413
    %v2415 = vpop.f32.mrf.mxu0
    %2416 = vdwg.mxu0
    %2417 = vrot.lane.b32.xlu0 %v2069, 120
    %v2418 = vpop.permute.xlu0 %2417
    %2419 = vrot.lane.b32.xlu0 %v2069, 88
    %v2420 = vpop.permute.xlu0 %2419
    %v2421 = vsel %vm234, %v2418, 0
    %v2423 = vsel %vm234, %v2420, 0
    %2425 = vmatprep.subr.mxu0 0.0
    %2426 = vmatpush1.xpose.msra.mxu0 0.0
    %2427 = vmatprep.subr.mxu0 0.0
    %2428 = vmatpush1.xpose.msra.mxu0 0.0
    %2429 = vmatprep.subr.mxu0 0.0
    %2430 = vmatpush1.xpose.msra.mxu0 0.0
    %2431 = vmatprep.subr.mxu0 0.0
    %2432 = vmatpush1.xpose.msra.mxu0 0.0
    %2433 = vmatprep.subr.mxu0 0.0
    %2434 = vmatpush1.xpose.msra.mxu0 0.0
    %2435 = vmatprep.subr.mxu0 0.0
    %2436 = vmatpush1.xpose.msra.mxu0 0.0
    %2437 = vmatprep.subr.mxu0 0.0
    %2438 = vmatpush1.xpose.msra.mxu0 0.0
    %2439 = vmatprep.subr.mxu0 0.0
    %2440 = vmatpush1.xpose.msra.mxu0 0.0
    %2441 = vmatprep.subr.mxu0 0.0
    %2442 = vmatpush1.xpose.msra.mxu0 0.0
    %2443 = vmatprep.subr.mxu0 0.0
    %2444 = vmatpush1.xpose.msra.mxu0 0.0
    %2445 = vmatprep.subr.mxu0 0.0
    %2446 = vmatpush1.xpose.msra.mxu0 0.0
    %2447 = vmatprep.subr.mxu0 0.0
    %2448 = vmatpush1.xpose.msra.mxu0 0.0
    %2449 = vmatprep.subr.mxu0 0.0
    %2450 = vmatpush1.xpose.msra.mxu0 0.0
    %2451 = vmatprep.subr.mxu0 0.0
    %2452 = vmatpush1.xpose.msra.mxu0 0.0
    %2453 = vmatprep.subr.mxu0 0.0
    %2454 = vmatpush1.xpose.msra.mxu0 0.0
    %2455 = vmatprep.subr.mxu0 0.0
    %2456 = vmatpush1.xpose.msra.mxu0 %v2423
    %2457 = vmatprep.subr.mxu0 0.0
    %2458 = vmatpush2.xpose.msra.mxu0 0.0
    %2459 = vmatprep.subr.mxu0 0.0
    %2460 = vmatpush2.xpose.msra.mxu0 0.0
    %2461 = vmatprep.subr.mxu0 0.0
    %2462 = vmatpush2.xpose.msra.mxu0 0.0
    %2463 = vmatprep.subr.mxu0 0.0
    %2464 = vmatpush2.xpose.msra.mxu0 0.0
    %2465 = vmatprep.subr.mxu0 0.0
    %2466 = vmatpush2.xpose.msra.mxu0 0.0
    %2467 = vmatprep.subr.mxu0 0.0
    %2468 = vmatpush2.xpose.msra.mxu0 0.0
    %2469 = vmatprep.subr.mxu0 0.0
    %2470 = vmatpush2.xpose.msra.mxu0 0.0
    %2471 = vmatprep.subr.mxu0 0.0
    %2472 = vmatpush2.xpose.msra.mxu0 0.0
    %2473 = vmatprep.subr.mxu0 0.0
    %2474 = vmatpush2.xpose.msra.mxu0 0.0
    %2475 = vmatprep.subr.mxu0 0.0
    %2476 = vmatpush2.xpose.msra.mxu0 0.0
    %2477 = vmatprep.subr.mxu0 0.0
    %2478 = vmatpush2.xpose.msra.mxu0 0.0
    %2479 = vmatprep.subr.mxu0 0.0
    %2480 = vmatpush2.xpose.msra.mxu0 0.0
    %2481 = vmatprep.subr.mxu0 0.0
    %2482 = vmatpush2.xpose.msra.mxu0 0.0
    %2483 = vmatprep.subr.mxu0 0.0
    %2484 = vmatpush2.xpose.msra.mxu0 0.0
    %2485 = vmatprep.subr.mxu0 0.0
    %2486 = vmatpush2.xpose.msra.mxu0 0.0
    %2487 = vmatprep.subr.mxu0 0.0
    %2488 = vmatpush2.xpose.msra.mxu0 0.0
    %2489 = vmatprep.mubr.f32.mxu0 0.0
    %2490 = vmatmul.mubr.f32.gmra.mxu0 %v2421
    %v2491 = vpop.f32.mrf.mxu0
    %v2492 = vadd.f32 0.0, %v2491
    %v2493 = vpop.f32.mrf.mxu0
    %2494 = vdwg.mxu0
    %2495 = vrot.lane.b32.xlu0 %v2074, 120
    %v2496 = vpop.permute.xlu0 %2495
    %2497 = vrot.lane.b32.xlu0 %v2074, 88
    %v2498 = vpop.permute.xlu0 %2497
    %v2499 = vsel %vm234, %v2496, 0
    %v2501 = vsel %vm234, %v2498, 0
    %2503 = vmatprep.subr.mxu0 0.0
    %2504 = vmatpush1.xpose.msra.mxu0 0.0
    %2505 = vmatprep.subr.mxu0 0.0
    %2506 = vmatpush1.xpose.msra.mxu0 0.0
    %2507 = vmatprep.subr.mxu0 0.0
    %2508 = vmatpush1.xpose.msra.mxu0 0.0
    %2509 = vmatprep.subr.mxu0 0.0
    %2510 = vmatpush1.xpose.msra.mxu0 0.0
    %2511 = vmatprep.subr.mxu0 0.0
    %2512 = vmatpush1.xpose.msra.mxu0 0.0
    %2513 = vmatprep.subr.mxu0 0.0
    %2514 = vmatpush1.xpose.msra.mxu0 0.0
    %2515 = vmatprep.subr.mxu0 0.0
    %2516 = vmatpush1.xpose.msra.mxu0 0.0
    %2517 = vmatprep.subr.mxu0 0.0
    %2518 = vmatpush1.xpose.msra.mxu0 0.0
    %2519 = vmatprep.subr.mxu0 0.0
    %2520 = vmatpush1.xpose.msra.mxu0 0.0
    %2521 = vmatprep.subr.mxu0 0.0
    %2522 = vmatpush1.xpose.msra.mxu0 0.0
    %2523 = vmatprep.subr.mxu0 0.0
    %2524 = vmatpush1.xpose.msra.mxu0 0.0
    %2525 = vmatprep.subr.mxu0 0.0
    %2526 = vmatpush1.xpose.msra.mxu0 0.0
    %2527 = vmatprep.subr.mxu0 0.0
    %2528 = vmatpush1.xpose.msra.mxu0 0.0
    %2529 = vmatprep.subr.mxu0 0.0
    %2530 = vmatpush1.xpose.msra.mxu0 0.0
    %2531 = vmatprep.subr.mxu0 0.0
    %2532 = vmatpush1.xpose.msra.mxu0 0.0
    %2533 = vmatprep.subr.mxu0 0.0
    %2534 = vmatpush1.xpose.msra.mxu0 %v2501
    %2535 = vmatprep.subr.mxu0 0.0
    %2536 = vmatpush2.xpose.msra.mxu0 0.0
    %2537 = vmatprep.subr.mxu0 0.0
    %2538 = vmatpush2.xpose.msra.mxu0 0.0
    %2539 = vmatprep.subr.mxu0 0.0
    %2540 = vmatpush2.xpose.msra.mxu0 0.0
    %2541 = vmatprep.subr.mxu0 0.0
    %2542 = vmatpush2.xpose.msra.mxu0 0.0
    %2543 = vmatprep.subr.mxu0 0.0
    %2544 = vmatpush2.xpose.msra.mxu0 0.0
    %2545 = vmatprep.subr.mxu0 0.0
    %2546 = vmatpush2.xpose.msra.mxu0 0.0
    %2547 = vmatprep.subr.mxu0 0.0
    %2548 = vmatpush2.xpose.msra.mxu0 0.0
    %2549 = vmatprep.subr.mxu0 0.0
    %2550 = vmatpush2.xpose.msra.mxu0 0.0
    %2551 = vmatprep.subr.mxu0 0.0
    %2552 = vmatpush2.xpose.msra.mxu0 0.0
    %2553 = vmatprep.subr.mxu0 0.0
    %2554 = vmatpush2.xpose.msra.mxu0 0.0
    %2555 = vmatprep.subr.mxu0 0.0
    %2556 = vmatpush2.xpose.msra.mxu0 0.0
    %2557 = vmatprep.subr.mxu0 0.0
    %2558 = vmatpush2.xpose.msra.mxu0 0.0
    %2559 = vmatprep.subr.mxu0 0.0
    %2560 = vmatpush2.xpose.msra.mxu0 0.0
    %2561 = vmatprep.subr.mxu0 0.0
    %2562 = vmatpush2.xpose.msra.mxu0 0.0
    %2563 = vmatprep.subr.mxu0 0.0
    %2564 = vmatpush2.xpose.msra.mxu0 0.0
    %2565 = vmatprep.subr.mxu0 0.0
    %2566 = vmatpush2.xpose.msra.mxu0 0.0
    %2567 = vmatprep.mubr.f32.mxu0 0.0
    %2568 = vmatmul.mubr.f32.gmra.mxu0 %v2499
    %v2569 = vpop.f32.mrf.mxu0
    %v2570 = vadd.f32 0.0, %v2569
    %v2571 = vpop.f32.mrf.mxu0
    %2572 = vdwg.mxu0
    %v2573 = vmul.f32 %v2492, 0.35355338
    %v2574 = vmul.f32 %v2570, 0.35355338
    %v2575 = vsel %vm74, %v2573, -1e+30
    %v2576 = vsel %vm74, %v2574, -1e+30
    %v2577 = vsel %vm234, %v2575, -inf
    %2578 = vmax.xlane.f32.xlu0 %v2577
    %v2579 = vpop.xlane.xlu0 %2578
    %v2580 = vsel %vm234, %v2576, -inf
    %2581 = vmax.xlane.f32.xlu0 %v2580
    %v2582 = vpop.xlane.xlu0 %2581
    %v2583 = vsub.f32 %v2575, %v2579
    %v2584 = vsub.f32 %v2576, %v2582
    %v2585 = vmul.f32 %v2583, 1.442695
    %v2586 = vpow.pop %v2585
    %v2587 = vmul.f32 %v2584, 1.442695
    %v2588 = vpow.pop %v2587
    %v2589 = vsel %vm234, %v2586, 0.0
    %2590 = vadd.xlane.f32.xlu0 %v2589
    %v2591 = vpop.xlane.xlu0 %2590
    %v2592 = vsel %vm234, %v2588, 0.0
    %2593 = vadd.xlane.f32.xlu0 %v2592
    %v2594 = vpop.xlane.xlu0 %2593
    %v2595 = vrcp.pop %v2591
    %v2596 = vrcp.pop %v2594
    %v2597 = vmul.f32 %v2586, %v2595
    %v2598 = vmul.f32 %v2588, %v2596
    %2599 = vrot.lane.b32.xlu0 %v2069, 56
    %v2600 = vpop.permute.xlu0 %2599
    %v2603 = vsel %vm234, %v2597, 0
    %2605 = vmatprep.subr.mxu0 0.0
    %2606 = vmatpush1.msra.mxu0 0.0
    %2607 = vmatprep.subr.mxu0 0.0
    %2608 = vmatpush1.msra.mxu0 0.0
    %2609 = vmatprep.subr.mxu0 0.0
    %2610 = vmatpush1.msra.mxu0 0.0
    %2611 = vmatprep.subr.mxu0 0.0
    %2612 = vmatpush1.msra.mxu0 0.0
    %2613 = vmatprep.subr.mxu0 0.0
    %2614 = vmatpush1.msra.mxu0 0.0
    %2615 = vmatprep.subr.mxu0 0.0
    %2616 = vmatpush1.msra.mxu0 0.0
    %2617 = vmatprep.subr.mxu0 0.0
    %2618 = vmatpush1.msra.mxu0 0.0
    %2619 = vmatprep.subr.mxu0 0.0
    %2620 = vmatpush1.msra.mxu0 0.0
    %2621 = vmatprep.subr.mxu0 0.0
    %2622 = vmatpush1.msra.mxu0 0.0
    %2623 = vmatprep.subr.mxu0 0.0
    %2624 = vmatpush1.msra.mxu0 0.0
    %2625 = vmatprep.subr.mxu0 0.0
    %2626 = vmatpush1.msra.mxu0 0.0
    %2627 = vmatprep.subr.mxu0 0.0
    %2628 = vmatpush1.msra.mxu0 0.0
    %2629 = vmatprep.subr.mxu0 0.0
    %2630 = vmatpush1.msra.mxu0 0.0
    %2631 = vmatprep.subr.mxu0 0.0
    %2632 = vmatpush1.msra.mxu0 0.0
    %2633 = vmatprep.subr.mxu0 0.0
    %2634 = vmatpush1.msra.mxu0 0.0
    %2635 = vmatprep.subr.mxu0 0.0
    %2636 = vmatpush1.msra.mxu0 %v2600
    %2637 = vmatprep.subr.mxu0 0.0
    %2638 = vmatpush2.msra.mxu0 0.0
    %2639 = vmatprep.subr.mxu0 0.0
    %2640 = vmatpush2.msra.mxu0 0.0
    %2641 = vmatprep.subr.mxu0 0.0
    %2642 = vmatpush2.msra.mxu0 0.0
    %2643 = vmatprep.subr.mxu0 0.0
    %2644 = vmatpush2.msra.mxu0 0.0
    %2645 = vmatprep.subr.mxu0 0.0
    %2646 = vmatpush2.msra.mxu0 0.0
    %2647 = vmatprep.subr.mxu0 0.0
    %2648 = vmatpush2.msra.mxu0 0.0
    %2649 = vmatprep.subr.mxu0 0.0
    %2650 = vmatpush2.msra.mxu0 0.0
    %2651 = vmatprep.subr.mxu0 0.0
    %2652 = vmatpush2.msra.mxu0 0.0
    %2653 = vmatprep.subr.mxu0 0.0
    %2654 = vmatpush2.msra.mxu0 0.0
    %2655 = vmatprep.subr.mxu0 0.0
    %2656 = vmatpush2.msra.mxu0 0.0
    %2657 = vmatprep.subr.mxu0 0.0
    %2658 = vmatpush2.msra.mxu0 0.0
    %2659 = vmatprep.subr.mxu0 0.0
    %2660 = vmatpush2.msra.mxu0 0.0
    %2661 = vmatprep.subr.mxu0 0.0
    %2662 = vmatpush2.msra.mxu0 0.0
    %2663 = vmatprep.subr.mxu0 0.0
    %2664 = vmatpush2.msra.mxu0 0.0
    %2665 = vmatprep.subr.mxu0 0.0
    %2666 = vmatpush2.msra.mxu0 0.0
    %2667 = vmatprep.subr.mxu0 0.0
    %2668 = vmatpush2.msra.mxu0 0.0
    %2669 = vmatprep.mubr.f32.mxu0 0.0
    %2670 = vmatmul.mubr.f32.gmra.mxu0 %v2603
    %v2671 = vpop.f32.mrf.mxu0
    %v2672 = vadd.f32 0.0, %v2671
    %v2673 = vpop.f32.mrf.mxu0
    %2674 = vdwg.mxu0
    %2675 = vrot.lane.b32.xlu0 %v2074, 56
    %v2676 = vpop.permute.xlu0 %2675
    %v2679 = vsel %vm234, %v2598, 0
    %2681 = vmatprep.subr.mxu0 0.0
    %2682 = vmatpush1.msra.mxu0 0.0
    %2683 = vmatprep.subr.mxu0 0.0
    %2684 = vmatpush1.msra.mxu0 0.0
    %2685 = vmatprep.subr.mxu0 0.0
    %2686 = vmatpush1.msra.mxu0 0.0
    %2687 = vmatprep.subr.mxu0 0.0
    %2688 = vmatpush1.msra.mxu0 0.0
    %2689 = vmatprep.subr.mxu0 0.0
    %2690 = vmatpush1.msra.mxu0 0.0
    %2691 = vmatprep.subr.mxu0 0.0
    %2692 = vmatpush1.msra.mxu0 0.0
    %2693 = vmatprep.subr.mxu0 0.0
    %2694 = vmatpush1.msra.mxu0 0.0
    %2695 = vmatprep.subr.mxu0 0.0
    %2696 = vmatpush1.msra.mxu0 0.0
    %2697 = vmatprep.subr.mxu0 0.0
    %2698 = vmatpush1.msra.mxu0 0.0
    %2699 = vmatprep.subr.mxu0 0.0
    %2700 = vmatpush1.msra.mxu0 0.0
    %2701 = vmatprep.subr.mxu0 0.0
    %2702 = vmatpush1.msra.mxu0 0.0
    %2703 = vmatprep.subr.mxu0 0.0
    %2704 = vmatpush1.msra.mxu0 0.0
    %2705 = vmatprep.subr.mxu0 0.0
    %2706 = vmatpush1.msra.mxu0 0.0
    %2707 = vmatprep.subr.mxu0 0.0
    %2708 = vmatpush1.msra.mxu0 0.0
    %2709 = vmatprep.subr.mxu0 0.0
    %2710 = vmatpush1.msra.mxu0 0.0
    %2711 = vmatprep.subr.mxu0 0.0
    %2712 = vmatpush1.msra.mxu0 %v2676
    %2713 = vmatprep.subr.mxu0 0.0
    %2714 = vmatpush2.msra.mxu0 0.0
    %2715 = vmatprep.subr.mxu0 0.0
    %2716 = vmatpush2.msra.mxu0 0.0
    %2717 = vmatprep.subr.mxu0 0.0
    %2718 = vmatpush2.msra.mxu0 0.0
    %2719 = vmatprep.subr.mxu0 0.0
    %2720 = vmatpush2.msra.mxu0 0.0
    %2721 = vmatprep.subr.mxu0 0.0
    %2722 = vmatpush2.msra.mxu0 0.0
    %2723 = vmatprep.subr.mxu0 0.0
    %2724 = vmatpush2.msra.mxu0 0.0
    %2725 = vmatprep.subr.mxu0 0.0
    %2726 = vmatpush2.msra.mxu0 0.0
    %2727 = vmatprep.subr.mxu0 0.0
    %2728 = vmatpush2.msra.mxu0 0.0
    %2729 = vmatprep.subr.mxu0 0.0
    %2730 = vmatpush2.msra.mxu0 0.0
    %2731 = vmatprep.subr.mxu0 0.0
    %2732 = vmatpush2.msra.mxu0 0.0
    %2733 = vmatprep.subr.mxu0 0.0
    %2734 = vmatpush2.msra.mxu0 0.0
    %2735 = vmatprep.subr.mxu0 0.0
    %2736 = vmatpush2.msra.mxu0 0.0
    %2737 = vmatprep.subr.mxu0 0.0
    %2738 = vmatpush2.msra.mxu0 0.0
    %2739 = vmatprep.subr.mxu0 0.0
    %2740 = vmatpush2.msra.mxu0 0.0
    %2741 = vmatprep.subr.mxu0 0.0
    %2742 = vmatpush2.msra.mxu0 0.0
    %2743 = vmatprep.subr.mxu0 0.0
    %2744 = vmatpush2.msra.mxu0 0.0
    %2745 = vmatprep.mubr.f32.mxu0 0.0
    %2746 = vmatmul.mubr.f32.gmra.mxu0 %v2679
    %v2747 = vpop.f32.mrf.mxu0
    %v2748 = vadd.f32 0.0, %v2747
    %v2749 = vpop.f32.mrf.mxu0
    %2750 = vdwg.mxu0
    %2751 = vrot.lane.b32.xlu0 %v2069, 112
    %v2752 = vpop.permute.xlu0 %2751
    %2753 = vrot.lane.b32.xlu0 %v2069, 80
    %v2754 = vpop.permute.xlu0 %2753
    %v2755 = vsel %vm234, %v2752, 0
    %v2757 = vsel %vm234, %v2754, 0
    %2759 = vmatprep.subr.mxu0 0.0
    %2760 = vmatpush1.xpose.msra.mxu0 0.0
    %2761 = vmatprep.subr.mxu0 0.0
    %2762 = vmatpush1.xpose.msra.mxu0 0.0
    %2763 = vmatprep.subr.mxu0 0.0
    %2764 = vmatpush1.xpose.msra.mxu0 0.0
    %2765 = vmatprep.subr.mxu0 0.0
    %2766 = vmatpush1.xpose.msra.mxu0 0.0
    %2767 = vmatprep.subr.mxu0 0.0
    %2768 = vmatpush1.xpose.msra.mxu0 0.0
    %2769 = vmatprep.subr.mxu0 0.0
    %2770 = vmatpush1.xpose.msra.mxu0 0.0
    %2771 = vmatprep.subr.mxu0 0.0
    %2772 = vmatpush1.xpose.msra.mxu0 0.0
    %2773 = vmatprep.subr.mxu0 0.0
    %2774 = vmatpush1.xpose.msra.mxu0 0.0
    %2775 = vmatprep.subr.mxu0 0.0
    %2776 = vmatpush1.xpose.msra.mxu0 0.0
    %2777 = vmatprep.subr.mxu0 0.0
    %2778 = vmatpush1.xpose.msra.mxu0 0.0
    %2779 = vmatprep.subr.mxu0 0.0
    %2780 = vmatpush1.xpose.msra.mxu0 0.0
    %2781 = vmatprep.subr.mxu0 0.0
    %2782 = vmatpush1.xpose.msra.mxu0 0.0
    %2783 = vmatprep.subr.mxu0 0.0
    %2784 = vmatpush1.xpose.msra.mxu0 0.0
    %2785 = vmatprep.subr.mxu0 0.0
    %2786 = vmatpush1.xpose.msra.mxu0 0.0
    %2787 = vmatprep.subr.mxu0 0.0
    %2788 = vmatpush1.xpose.msra.mxu0 0.0
    %2789 = vmatprep.subr.mxu0 0.0
    %2790 = vmatpush1.xpose.msra.mxu0 %v2757
    %2791 = vmatprep.subr.mxu0 0.0
    %2792 = vmatpush2.xpose.msra.mxu0 0.0
    %2793 = vmatprep.subr.mxu0 0.0
    %2794 = vmatpush2.xpose.msra.mxu0 0.0
    %2795 = vmatprep.subr.mxu0 0.0
    %2796 = vmatpush2.xpose.msra.mxu0 0.0
    %2797 = vmatprep.subr.mxu0 0.0
    %2798 = vmatpush2.xpose.msra.mxu0 0.0
    %2799 = vmatprep.subr.mxu0 0.0
    %2800 = vmatpush2.xpose.msra.mxu0 0.0
    %2801 = vmatprep.subr.mxu0 0.0
    %2802 = vmatpush2.xpose.msra.mxu0 0.0
    %2803 = vmatprep.subr.mxu0 0.0
    %2804 = vmatpush2.xpose.msra.mxu0 0.0
    %2805 = vmatprep.subr.mxu0 0.0
    %2806 = vmatpush2.xpose.msra.mxu0 0.0
    %2807 = vmatprep.subr.mxu0 0.0
    %2808 = vmatpush2.xpose.msra.mxu0 0.0
    %2809 = vmatprep.subr.mxu0 0.0
    %2810 = vmatpush2.xpose.msra.mxu0 0.0
    %2811 = vmatprep.subr.mxu0 0.0
    %2812 = vmatpush2.xpose.msra.mxu0 0.0
    %2813 = vmatprep.subr.mxu0 0.0
    %2814 = vmatpush2.xpose.msra.mxu0 0.0
    %2815 = vmatprep.subr.mxu0 0.0
    %2816 = vmatpush2.xpose.msra.mxu0 0.0
    %2817 = vmatprep.subr.mxu0 0.0
    %2818 = vmatpush2.xpose.msra.mxu0 0.0
    %2819 = vmatprep.subr.mxu0 0.0
    %2820 = vmatpush2.xpose.msra.mxu0 0.0
    %2821 = vmatprep.subr.mxu0 0.0
    %2822 = vmatpush2.xpose.msra.mxu0 0.0
    %2823 = vmatprep.mubr.f32.mxu0 0.0
    %2824 = vmatmul.mubr.f32.gmra.mxu0 %v2755
    %v2825 = vpop.f32.mrf.mxu0
    %v2826 = vadd.f32 0.0, %v2825
    %v2827 = vpop.f32.mrf.mxu0
    %2828 = vdwg.mxu0
    %2829 = vrot.lane.b32.xlu0 %v2074, 112
    %v2830 = vpop.permute.xlu0 %2829
    %2831 = vrot.lane.b32.xlu0 %v2074, 80
    %v2832 = vpop.permute.xlu0 %2831
    %v2833 = vsel %vm234, %v2830, 0
    %v2835 = vsel %vm234, %v2832, 0
    %2837 = vmatprep.subr.mxu0 0.0
    %2838 = vmatpush1.xpose.msra.mxu0 0.0
    %2839 = vmatprep.subr.mxu0 0.0
    %2840 = vmatpush1.xpose.msra.mxu0 0.0
    %2841 = vmatprep.subr.mxu0 0.0
    %2842 = vmatpush1.xpose.msra.mxu0 0.0
    %2843 = vmatprep.subr.mxu0 0.0
    %2844 = vmatpush1.xpose.msra.mxu0 0.0
    %2845 = vmatprep.subr.mxu0 0.0
    %2846 = vmatpush1.xpose.msra.mxu0 0.0
    %2847 = vmatprep.subr.mxu0 0.0
    %2848 = vmatpush1.xpose.msra.mxu0 0.0
    %2849 = vmatprep.subr.mxu0 0.0
    %2850 = vmatpush1.xpose.msra.mxu0 0.0
    %2851 = vmatprep.subr.mxu0 0.0
    %2852 = vmatpush1.xpose.msra.mxu0 0.0
    %2853 = vmatprep.subr.mxu0 0.0
    %2854 = vmatpush1.xpose.msra.mxu0 0.0
    %2855 = vmatprep.subr.mxu0 0.0
    %2856 = vmatpush1.xpose.msra.mxu0 0.0
    %2857 = vmatprep.subr.mxu0 0.0
    %2858 = vmatpush1.xpose.msra.mxu0 0.0
    %2859 = vmatprep.subr.mxu0 0.0
    %2860 = vmatpush1.xpose.msra.mxu0 0.0
    %2861 = vmatprep.subr.mxu0 0.0
    %2862 = vmatpush1.xpose.msra.mxu0 0.0
    %2863 = vmatprep.subr.mxu0 0.0
    %2864 = vmatpush1.xpose.msra.mxu0 0.0
    %2865 = vmatprep.subr.mxu0 0.0
    %2866 = vmatpush1.xpose.msra.mxu0 0.0
    %2867 = vmatprep.subr.mxu0 0.0
    %2868 = vmatpush1.xpose.msra.mxu0 %v2835
    %2869 = vmatprep.subr.mxu0 0.0
    %2870 = vmatpush2.xpose.msra.mxu0 0.0
    %2871 = vmatprep.subr.mxu0 0.0
    %2872 = vmatpush2.xpose.msra.mxu0 0.0
    %2873 = vmatprep.subr.mxu0 0.0
    %2874 = vmatpush2.xpose.msra.mxu0 0.0
    %2875 = vmatprep.subr.mxu0 0.0
    %2876 = vmatpush2.xpose.msra.mxu0 0.0
    %2877 = vmatprep.subr.mxu0 0.0
    %2878 = vmatpush2.xpose.msra.mxu0 0.0
    %2879 = vmatprep.subr.mxu0 0.0
    %2880 = vmatpush2.xpose.msra.mxu0 0.0
    %2881 = vmatprep.subr.mxu0 0.0
    %2882 = vmatpush2.xpose.msra.mxu0 0.0
    %2883 = vmatprep.subr.mxu0 0.0
    %2884 = vmatpush2.xpose.msra.mxu0 0.0
    %2885 = vmatprep.subr.mxu0 0.0
    %2886 = vmatpush2.xpose.msra.mxu0 0.0
    %2887 = vmatprep.subr.mxu0 0.0
    %2888 = vmatpush2.xpose.msra.mxu0 0.0
    %2889 = vmatprep.subr.mxu0 0.0
    %2890 = vmatpush2.xpose.msra.mxu0 0.0
    %2891 = vmatprep.subr.mxu0 0.0
    %2892 = vmatpush2.xpose.msra.mxu0 0.0
    %2893 = vmatprep.subr.mxu0 0.0
    %2894 = vmatpush2.xpose.msra.mxu0 0.0
    %2895 = vmatprep.subr.mxu0 0.0
    %2896 = vmatpush2.xpose.msra.mxu0 0.0
    %2897 = vmatprep.subr.mxu0 0.0
    %2898 = vmatpush2.xpose.msra.mxu0 0.0
    %2899 = vmatprep.subr.mxu0 0.0
    %2900 = vmatpush2.xpose.msra.mxu0 0.0
    %2901 = vmatprep.mubr.f32.mxu0 0.0
    %2902 = vmatmul.mubr.f32.gmra.mxu0 %v2833
    %v2903 = vpop.f32.mrf.mxu0
    %v2904 = vadd.f32 0.0, %v2903
    %v2905 = vpop.f32.mrf.mxu0
    %2906 = vdwg.mxu0
    %v2907 = vmul.f32 %v2826, 0.35355338
    %v2908 = vmul.f32 %v2904, 0.35355338
    %v2909 = vsel %vm74, %v2907, -1e+30
    %v2910 = vsel %vm74, %v2908, -1e+30
    %v2911 = vsel %vm234, %v2909, -inf
    %2912 = vmax.xlane.f32.xlu0 %v2911
    %v2913 = vpop.xlane.xlu0 %2912
    %v2914 = vsel %vm234, %v2910, -inf
    %2915 = vmax.xlane.f32.xlu0 %v2914
    %v2916 = vpop.xlane.xlu0 %2915
    %v2917 = vsub.f32 %v2909, %v2913
    %v2918 = vsub.f32 %v2910, %v2916
    %v2919 = vmul.f32 %v2917, 1.442695
    %v2920 = vpow.pop %v2919
    %v2921 = vmul.f32 %v2918, 1.442695
    %v2922 = vpow.pop %v2921
    %v2923 = vsel %vm234, %v2920, 0.0
    %2924 = vadd.xlane.f32.xlu0 %v2923
    %v2925 = vpop.xlane.xlu0 %2924
    %v2926 = vsel %vm234, %v2922, 0.0
    %2927 = vadd.xlane.f32.xlu0 %v2926
    %v2928 = vpop.xlane.xlu0 %2927
    %v2929 = vrcp.pop %v2925
    %v2930 = vrcp.pop %v2928
    %v2931 = vmul.f32 %v2920, %v2929
    %v2932 = vmul.f32 %v2922, %v2930
    %2933 = vrot.lane.b32.xlu0 %v2069, 48
    %v2934 = vpop.permute.xlu0 %2933
    %v2937 = vsel %vm234, %v2931, 0
    %2939 = vmatprep.subr.mxu0 0.0
    %2940 = vmatpush1.msra.mxu0 0.0
    %2941 = vmatprep.subr.mxu0 0.0
    %2942 = vmatpush1.msra.mxu0 0.0
    %2943 = vmatprep.subr.mxu0 0.0
    %2944 = vmatpush1.msra.mxu0 0.0
    %2945 = vmatprep.subr.mxu0 0.0
    %2946 = vmatpush1.msra.mxu0 0.0
    %2947 = vmatprep.subr.mxu0 0.0
    %2948 = vmatpush1.msra.mxu0 0.0
    %2949 = vmatprep.subr.mxu0 0.0
    %2950 = vmatpush1.msra.mxu0 0.0
    %2951 = vmatprep.subr.mxu0 0.0
    %2952 = vmatpush1.msra.mxu0 0.0
    %2953 = vmatprep.subr.mxu0 0.0
    %2954 = vmatpush1.msra.mxu0 0.0
    %2955 = vmatprep.subr.mxu0 0.0
    %2956 = vmatpush1.msra.mxu0 0.0
    %2957 = vmatprep.subr.mxu0 0.0
    %2958 = vmatpush1.msra.mxu0 0.0
    %2959 = vmatprep.subr.mxu0 0.0
    %2960 = vmatpush1.msra.mxu0 0.0
    %2961 = vmatprep.subr.mxu0 0.0
    %2962 = vmatpush1.msra.mxu0 0.0
    %2963 = vmatprep.subr.mxu0 0.0
    %2964 = vmatpush1.msra.mxu0 0.0
    %2965 = vmatprep.subr.mxu0 0.0
    %2966 = vmatpush1.msra.mxu0 0.0
    %2967 = vmatprep.subr.mxu0 0.0
    %2968 = vmatpush1.msra.mxu0 0.0
    %2969 = vmatprep.subr.mxu0 0.0
    %2970 = vmatpush1.msra.mxu0 %v2934
    %2971 = vmatprep.subr.mxu0 0.0
    %2972 = vmatpush2.msra.mxu0 0.0
    %2973 = vmatprep.subr.mxu0 0.0
    %2974 = vmatpush2.msra.mxu0 0.0
    %2975 = vmatprep.subr.mxu0 0.0
    %2976 = vmatpush2.msra.mxu0 0.0
    %2977 = vmatprep.subr.mxu0 0.0
    %2978 = vmatpush2.msra.mxu0 0.0
    %2979 = vmatprep.subr.mxu0 0.0
    %2980 = vmatpush2.msra.mxu0 0.0
    %2981 = vmatprep.subr.mxu0 0.0
    %2982 = vmatpush2.msra.mxu0 0.0
    %2983 = vmatprep.subr.mxu0 0.0
    %2984 = vmatpush2.msra.mxu0 0.0
    %2985 = vmatprep.subr.mxu0 0.0
    %2986 = vmatpush2.msra.mxu0 0.0
    %2987 = vmatprep.subr.mxu0 0.0
    %2988 = vmatpush2.msra.mxu0 0.0
    %2989 = vmatprep.subr.mxu0 0.0
    %2990 = vmatpush2.msra.mxu0 0.0
    %2991 = vmatprep.subr.mxu0 0.0
    %2992 = vmatpush2.msra.mxu0 0.0
    %2993 = vmatprep.subr.mxu0 0.0
    %2994 = vmatpush2.msra.mxu0 0.0
    %2995 = vmatprep.subr.mxu0 0.0
    %2996 = vmatpush2.msra.mxu0 0.0
    %2997 = vmatprep.subr.mxu0 0.0
    %2998 = vmatpush2.msra.mxu0 0.0
    %2999 = vmatprep.subr.mxu0 0.0
    %3000 = vmatpush2.msra.mxu0 0.0
    %3001 = vmatprep.subr.mxu0 0.0
    %3002 = vmatpush2.msra.mxu0 0.0
    %3003 = vmatprep.mubr.f32.mxu0 0.0
    %3004 = vmatmul.mubr.f32.gmra.mxu0 %v2937
    %v3005 = vpop.f32.mrf.mxu0
    %v3006 = vadd.f32 0.0, %v3005
    %v3007 = vpop.f32.mrf.mxu0
    %3008 = vdwg.mxu0
    %3009 = vrot.lane.b32.xlu0 %v2074, 48
    %v3010 = vpop.permute.xlu0 %3009
    %v3013 = vsel %vm234, %v2932, 0
    %3015 = vmatprep.subr.mxu0 0.0
    %3016 = vmatpush1.msra.mxu0 0.0
    %3017 = vmatprep.subr.mxu0 0.0
    %3018 = vmatpush1.msra.mxu0 0.0
    %3019 = vmatprep.subr.mxu0 0.0
    %3020 = vmatpush1.msra.mxu0 0.0
    %3021 = vmatprep.subr.mxu0 0.0
    %3022 = vmatpush1.msra.mxu0 0.0
    %3023 = vmatprep.subr.mxu0 0.0
    %3024 = vmatpush1.msra.mxu0 0.0
    %3025 = vmatprep.subr.mxu0 0.0
    %3026 = vmatpush1.msra.mxu0 0.0
    %3027 = vmatprep.subr.mxu0 0.0
    %3028 = vmatpush1.msra.mxu0 0.0
    %3029 = vmatprep.subr.mxu0 0.0
    %3030 = vmatpush1.msra.mxu0 0.0
    %3031 = vmatprep.subr.mxu0 0.0
    %3032 = vmatpush1.msra.mxu0 0.0
    %3033 = vmatprep.subr.mxu0 0.0
    %3034 = vmatpush1.msra.mxu0 0.0
    %3035 = vmatprep.subr.mxu0 0.0
    %3036 = vmatpush1.msra.mxu0 0.0
    %3037 = vmatprep.subr.mxu0 0.0
    %3038 = vmatpush1.msra.mxu0 0.0
    %3039 = vmatprep.subr.mxu0 0.0
    %3040 = vmatpush1.msra.mxu0 0.0
    %3041 = vmatprep.subr.mxu0 0.0
    %3042 = vmatpush1.msra.mxu0 0.0
    %3043 = vmatprep.subr.mxu0 0.0
    %3044 = vmatpush1.msra.mxu0 0.0
    %3045 = vmatprep.subr.mxu0 0.0
    %3046 = vmatpush1.msra.mxu0 %v3010
    %3047 = vmatprep.subr.mxu0 0.0
    %3048 = vmatpush2.msra.mxu0 0.0
    %3049 = vmatprep.subr.mxu0 0.0
    %3050 = vmatpush2.msra.mxu0 0.0
    %3051 = vmatprep.subr.mxu0 0.0
    %3052 = vmatpush2.msra.mxu0 0.0
    %3053 = vmatprep.subr.mxu0 0.0
    %3054 = vmatpush2.msra.mxu0 0.0
    %3055 = vmatprep.subr.mxu0 0.0
    %3056 = vmatpush2.msra.mxu0 0.0
    %3057 = vmatprep.subr.mxu0 0.0
    %3058 = vmatpush2.msra.mxu0 0.0
    %3059 = vmatprep.subr.mxu0 0.0
    %3060 = vmatpush2.msra.mxu0 0.0
    %3061 = vmatprep.subr.mxu0 0.0
    %3062 = vmatpush2.msra.mxu0 0.0
    %3063 = vmatprep.subr.mxu0 0.0
    %3064 = vmatpush2.msra.mxu0 0.0
    %3065 = vmatprep.subr.mxu0 0.0
    %3066 = vmatpush2.msra.mxu0 0.0
    %3067 = vmatprep.subr.mxu0 0.0
    %3068 = vmatpush2.msra.mxu0 0.0
    %3069 = vmatprep.subr.mxu0 0.0
    %3070 = vmatpush2.msra.mxu0 0.0
    %3071 = vmatprep.subr.mxu0 0.0
    %3072 = vmatpush2.msra.mxu0 0.0
    %3073 = vmatprep.subr.mxu0 0.0
    %3074 = vmatpush2.msra.mxu0 0.0
    %3075 = vmatprep.subr.mxu0 0.0
    %3076 = vmatpush2.msra.mxu0 0.0
    %3077 = vmatprep.subr.mxu0 0.0
    %3078 = vmatpush2.msra.mxu0 0.0
    %3079 = vmatprep.mubr.f32.mxu0 0.0
    %3080 = vmatmul.mubr.f32.gmra.mxu0 %v3013
    %v3081 = vpop.f32.mrf.mxu0
    %v3082 = vadd.f32 0.0, %v3081
    %v3083 = vpop.f32.mrf.mxu0
    %3084 = vdwg.mxu0
    %3085 = vrot.lane.b32.xlu0 %v2069, 104
    %v3086 = vpop.permute.xlu0 %3085
    %3087 = vrot.lane.b32.xlu0 %v2069, 72
    %v3088 = vpop.permute.xlu0 %3087
    %v3089 = vsel %vm234, %v3086, 0
    %v3091 = vsel %vm234, %v3088, 0
    %3093 = vmatprep.subr.mxu0 0.0
    %3094 = vmatpush1.xpose.msra.mxu0 0.0
    %3095 = vmatprep.subr.mxu0 0.0
    %3096 = vmatpush1.xpose.msra.mxu0 0.0
    %3097 = vmatprep.subr.mxu0 0.0
    %3098 = vmatpush1.xpose.msra.mxu0 0.0
    %3099 = vmatprep.subr.mxu0 0.0
    %3100 = vmatpush1.xpose.msra.mxu0 0.0
    %3101 = vmatprep.subr.mxu0 0.0
    %3102 = vmatpush1.xpose.msra.mxu0 0.0
    %3103 = vmatprep.subr.mxu0 0.0
    %3104 = vmatpush1.xpose.msra.mxu0 0.0
    %3105 = vmatprep.subr.mxu0 0.0
    %3106 = vmatpush1.xpose.msra.mxu0 0.0
    %3107 = vmatprep.subr.mxu0 0.0
    %3108 = vmatpush1.xpose.msra.mxu0 0.0
    %3109 = vmatprep.subr.mxu0 0.0
    %3110 = vmatpush1.xpose.msra.mxu0 0.0
    %3111 = vmatprep.subr.mxu0 0.0
    %3112 = vmatpush1.xpose.msra.mxu0 0.0
    %3113 = vmatprep.subr.mxu0 0.0
    %3114 = vmatpush1.xpose.msra.mxu0 0.0
    %3115 = vmatprep.subr.mxu0 0.0
    %3116 = vmatpush1.xpose.msra.mxu0 0.0
    %3117 = vmatprep.subr.mxu0 0.0
    %3118 = vmatpush1.xpose.msra.mxu0 0.0
    %3119 = vmatprep.subr.mxu0 0.0
    %3120 = vmatpush1.xpose.msra.mxu0 0.0
    %3121 = vmatprep.subr.mxu0 0.0
    %3122 = vmatpush1.xpose.msra.mxu0 0.0
    %3123 = vmatprep.subr.mxu0 0.0
    %3124 = vmatpush1.xpose.msra.mxu0 %v3091
    %3125 = vmatprep.subr.mxu0 0.0
    %3126 = vmatpush2.xpose.msra.mxu0 0.0
    %3127 = vmatprep.subr.mxu0 0.0
    %3128 = vmatpush2.xpose.msra.mxu0 0.0
    %3129 = vmatprep.subr.mxu0 0.0
    %3130 = vmatpush2.xpose.msra.mxu0 0.0
    %3131 = vmatprep.subr.mxu0 0.0
    %3132 = vmatpush2.xpose.msra.mxu0 0.0
    %3133 = vmatprep.subr.mxu0 0.0
    %3134 = vmatpush2.xpose.msra.mxu0 0.0
    %3135 = vmatprep.subr.mxu0 0.0
    %3136 = vmatpush2.xpose.msra.mxu0 0.0
    %3137 = vmatprep.subr.mxu0 0.0
    %3138 = vmatpush2.xpose.msra.mxu0 0.0
    %3139 = vmatprep.subr.mxu0 0.0
    %3140 = vmatpush2.xpose.msra.mxu0 0.0
    %3141 = vmatprep.subr.mxu0 0.0
    %3142 = vmatpush2.xpose.msra.mxu0 0.0
    %3143 = vmatprep.subr.mxu0 0.0
    %3144 = vmatpush2.xpose.msra.mxu0 0.0
    %3145 = vmatprep.subr.mxu0 0.0
    %3146 = vmatpush2.xpose.msra.mxu0 0.0
    %3147 = vmatprep.subr.mxu0 0.0
    %3148 = vmatpush2.xpose.msra.mxu0 0.0
    %3149 = vmatprep.subr.mxu0 0.0
    %3150 = vmatpush2.xpose.msra.mxu0 0.0
    %3151 = vmatprep.subr.mxu0 0.0
    %3152 = vmatpush2.xpose.msra.mxu0 0.0
    %3153 = vmatprep.subr.mxu0 0.0
    %3154 = vmatpush2.xpose.msra.mxu0 0.0
    %3155 = vmatprep.subr.mxu0 0.0
    %3156 = vmatpush2.xpose.msra.mxu0 0.0
    %3157 = vmatprep.mubr.f32.mxu0 0.0
    %3158 = vmatmul.mubr.f32.gmra.mxu0 %v3089
    %v3159 = vpop.f32.mrf.mxu0
    %v3160 = vadd.f32 0.0, %v3159
    %v3161 = vpop.f32.mrf.mxu0
    %3162 = vdwg.mxu0
    %3163 = vrot.lane.b32.xlu0 %v2074, 104
    %v3164 = vpop.permute.xlu0 %3163
    %3165 = vrot.lane.b32.xlu0 %v2074, 72
    %v3166 = vpop.permute.xlu0 %3165
    %v3167 = vsel %vm234, %v3164, 0
    %v3169 = vsel %vm234, %v3166, 0
    %3171 = vmatprep.subr.mxu0 0.0
    %3172 = vmatpush1.xpose.msra.mxu0 0.0
    %3173 = vmatprep.subr.mxu0 0.0
    %3174 = vmatpush1.xpose.msra.mxu0 0.0
    %3175 = vmatprep.subr.mxu0 0.0
    %3176 = vmatpush1.xpose.msra.mxu0 0.0
    %3177 = vmatprep.subr.mxu0 0.0
    %3178 = vmatpush1.xpose.msra.mxu0 0.0
    %3179 = vmatprep.subr.mxu0 0.0
    %3180 = vmatpush1.xpose.msra.mxu0 0.0
    %3181 = vmatprep.subr.mxu0 0.0
    %3182 = vmatpush1.xpose.msra.mxu0 0.0
    %3183 = vmatprep.subr.mxu0 0.0
    %3184 = vmatpush1.xpose.msra.mxu0 0.0
    %3185 = vmatprep.subr.mxu0 0.0
    %3186 = vmatpush1.xpose.msra.mxu0 0.0
    %3187 = vmatprep.subr.mxu0 0.0
    %3188 = vmatpush1.xpose.msra.mxu0 0.0
    %3189 = vmatprep.subr.mxu0 0.0
    %3190 = vmatpush1.xpose.msra.mxu0 0.0
    %3191 = vmatprep.subr.mxu0 0.0
    %3192 = vmatpush1.xpose.msra.mxu0 0.0
    %3193 = vmatprep.subr.mxu0 0.0
    %3194 = vmatpush1.xpose.msra.mxu0 0.0
    %3195 = vmatprep.subr.mxu0 0.0
    %3196 = vmatpush1.xpose.msra.mxu0 0.0
    %3197 = vmatprep.subr.mxu0 0.0
    %3198 = vmatpush1.xpose.msra.mxu0 0.0
    %3199 = vmatprep.subr.mxu0 0.0
    %3200 = vmatpush1.xpose.msra.mxu0 0.0
    %3201 = vmatprep.subr.mxu0 0.0
    %3202 = vmatpush1.xpose.msra.mxu0 %v3169
    %3203 = vmatprep.subr.mxu0 0.0
    %3204 = vmatpush2.xpose.msra.mxu0 0.0
    %3205 = vmatprep.subr.mxu0 0.0
    %3206 = vmatpush2.xpose.msra.mxu0 0.0
    %3207 = vmatprep.subr.mxu0 0.0
    %3208 = vmatpush2.xpose.msra.mxu0 0.0
    %3209 = vmatprep.subr.mxu0 0.0
    %3210 = vmatpush2.xpose.msra.mxu0 0.0
    %3211 = vmatprep.subr.mxu0 0.0
    %3212 = vmatpush2.xpose.msra.mxu0 0.0
    %3213 = vmatprep.subr.mxu0 0.0
    %3214 = vmatpush2.xpose.msra.mxu0 0.0
    %3215 = vmatprep.subr.mxu0 0.0
    %3216 = vmatpush2.xpose.msra.mxu0 0.0
    %3217 = vmatprep.subr.mxu0 0.0
    %3218 = vmatpush2.xpose.msra.mxu0 0.0
    %3219 = vmatprep.subr.mxu0 0.0
    %3220 = vmatpush2.xpose.msra.mxu0 0.0
    %3221 = vmatprep.subr.mxu0 0.0
    %3222 = vmatpush2.xpose.msra.mxu0 0.0
    %3223 = vmatprep.subr.mxu0 0.0
    %3224 = vmatpush2.xpose.msra.mxu0 0.0
    %3225 = vmatprep.subr.mxu0 0.0
    %3226 = vmatpush2.xpose.msra.mxu0 0.0
    %3227 = vmatprep.subr.mxu0 0.0
    %3228 = vmatpush2.xpose.msra.mxu0 0.0
    %3229 = vmatprep.subr.mxu0 0.0
    %3230 = vmatpush2.xpose.msra.mxu0 0.0
    %3231 = vmatprep.subr.mxu0 0.0
    %3232 = vmatpush2.xpose.msra.mxu0 0.0
    %3233 = vmatprep.subr.mxu0 0.0
    %3234 = vmatpush2.xpose.msra.mxu0 0.0
    %3235 = vmatprep.mubr.f32.mxu0 0.0
    %3236 = vmatmul.mubr.f32.gmra.mxu0 %v3167
    %v3237 = vpop.f32.mrf.mxu0
    %v3238 = vadd.f32 0.0, %v3237
    %v3239 = vpop.f32.mrf.mxu0
    %3240 = vdwg.mxu0
    %v3241 = vmul.f32 %v3160, 0.35355338
    %v3242 = vmul.f32 %v3238, 0.35355338
    %v3243 = vsel %vm74, %v3241, -1e+30
    %v3244 = vsel %vm74, %v3242, -1e+30
    %v3245 = vsel %vm234, %v3243, -inf
    %3246 = vmax.xlane.f32.xlu0 %v3245
    %v3247 = vpop.xlane.xlu0 %3246
    %v3248 = vsel %vm234, %v3244, -inf
    %3249 = vmax.xlane.f32.xlu0 %v3248
    %v3250 = vpop.xlane.xlu0 %3249
    %v3251 = vsub.f32 %v3243, %v3247
    %v3252 = vsub.f32 %v3244, %v3250
    %v3253 = vmul.f32 %v3251, 1.442695
    %v3254 = vpow.pop %v3253
    %v3255 = vmul.f32 %v3252, 1.442695
    %v3256 = vpow.pop %v3255
    %v3257 = vsel %vm234, %v3254, 0.0
    %3258 = vadd.xlane.f32.xlu0 %v3257
    %v3259 = vpop.xlane.xlu0 %3258
    %v3260 = vsel %vm234, %v3256, 0.0
    %3261 = vadd.xlane.f32.xlu0 %v3260
    %v3262 = vpop.xlane.xlu0 %3261
    %v3263 = vrcp.pop %v3259
    %v3264 = vrcp.pop %v3262
    %v3265 = vmul.f32 %v3254, %v3263
    %v3266 = vmul.f32 %v3256, %v3264
    %3267 = vrot.lane.b32.xlu0 %v2069, 40
    %v3268 = vpop.permute.xlu0 %3267
    %v3271 = vsel %vm234, %v3265, 0
    %3273 = vmatprep.subr.mxu0 0.0
    %3274 = vmatpush1.msra.mxu0 0.0
    %3275 = vmatprep.subr.mxu0 0.0
    %3276 = vmatpush1.msra.mxu0 0.0
    %3277 = vmatprep.subr.mxu0 0.0
    %3278 = vmatpush1.msra.mxu0 0.0
    %3279 = vmatprep.subr.mxu0 0.0
    %3280 = vmatpush1.msra.mxu0 0.0
    %3281 = vmatprep.subr.mxu0 0.0
    %3282 = vmatpush1.msra.mxu0 0.0
    %3283 = vmatprep.subr.mxu0 0.0
    %3284 = vmatpush1.msra.mxu0 0.0
    %3285 = vmatprep.subr.mxu0 0.0
    %3286 = vmatpush1.msra.mxu0 0.0
    %3287 = vmatprep.subr.mxu0 0.0
    %3288 = vmatpush1.msra.mxu0 0.0
    %3289 = vmatprep.subr.mxu0 0.0
    %3290 = vmatpush1.msra.mxu0 0.0
    %3291 = vmatprep.subr.mxu0 0.0
    %3292 = vmatpush1.msra.mxu0 0.0
    %3293 = vmatprep.subr.mxu0 0.0
    %3294 = vmatpush1.msra.mxu0 0.0
    %3295 = vmatprep.subr.mxu0 0.0
    %3296 = vmatpush1.msra.mxu0 0.0
    %3297 = vmatprep.subr.mxu0 0.0
    %3298 = vmatpush1.msra.mxu0 0.0
    %3299 = vmatprep.subr.mxu0 0.0
    %3300 = vmatpush1.msra.mxu0 0.0
    %3301 = vmatprep.subr.mxu0 0.0
    %3302 = vmatpush1.msra.mxu0 0.0
    %3303 = vmatprep.subr.mxu0 0.0
    %3304 = vmatpush1.msra.mxu0 %v3268
    %3305 = vmatprep.subr.mxu0 0.0
    %3306 = vmatpush2.msra.mxu0 0.0
    %3307 = vmatprep.subr.mxu0 0.0
    %3308 = vmatpush2.msra.mxu0 0.0
    %3309 = vmatprep.subr.mxu0 0.0
    %3310 = vmatpush2.msra.mxu0 0.0
    %3311 = vmatprep.subr.mxu0 0.0
    %3312 = vmatpush2.msra.mxu0 0.0
    %3313 = vmatprep.subr.mxu0 0.0
    %3314 = vmatpush2.msra.mxu0 0.0
    %3315 = vmatprep.subr.mxu0 0.0
    %3316 = vmatpush2.msra.mxu0 0.0
    %3317 = vmatprep.subr.mxu0 0.0
    %3318 = vmatpush2.msra.mxu0 0.0
    %3319 = vmatprep.subr.mxu0 0.0
    %3320 = vmatpush2.msra.mxu0 0.0
    %3321 = vmatprep.subr.mxu0 0.0
    %3322 = vmatpush2.msra.mxu0 0.0
    %3323 = vmatprep.subr.mxu0 0.0
    %3324 = vmatpush2.msra.mxu0 0.0
    %3325 = vmatprep.subr.mxu0 0.0
    %3326 = vmatpush2.msra.mxu0 0.0
    %3327 = vmatprep.subr.mxu0 0.0
    %3328 = vmatpush2.msra.mxu0 0.0
    %3329 = vmatprep.subr.mxu0 0.0
    %3330 = vmatpush2.msra.mxu0 0.0
    %3331 = vmatprep.subr.mxu0 0.0
    %3332 = vmatpush2.msra.mxu0 0.0
    %3333 = vmatprep.subr.mxu0 0.0
    %3334 = vmatpush2.msra.mxu0 0.0
    %3335 = vmatprep.subr.mxu0 0.0
    %3336 = vmatpush2.msra.mxu0 0.0
    %3337 = vmatprep.mubr.f32.mxu0 0.0
    %3338 = vmatmul.mubr.f32.gmra.mxu0 %v3271
    %v3339 = vpop.f32.mrf.mxu0
    %v3340 = vadd.f32 0.0, %v3339
    %v3341 = vpop.f32.mrf.mxu0
    %3342 = vdwg.mxu0
    %3343 = vrot.lane.b32.xlu0 %v2074, 40
    %v3344 = vpop.permute.xlu0 %3343
    %v3347 = vsel %vm234, %v3266, 0
    %3349 = vmatprep.subr.mxu0 0.0
    %3350 = vmatpush1.msra.mxu0 0.0
    %3351 = vmatprep.subr.mxu0 0.0
    %3352 = vmatpush1.msra.mxu0 0.0
    %3353 = vmatprep.subr.mxu0 0.0
    %3354 = vmatpush1.msra.mxu0 0.0
    %3355 = vmatprep.subr.mxu0 0.0
    %3356 = vmatpush1.msra.mxu0 0.0
    %3357 = vmatprep.subr.mxu0 0.0
    %3358 = vmatpush1.msra.mxu0 0.0
    %3359 = vmatprep.subr.mxu0 0.0
    %3360 = vmatpush1.msra.mxu0 0.0
    %3361 = vmatprep.subr.mxu0 0.0
    %3362 = vmatpush1.msra.mxu0 0.0
    %3363 = vmatprep.subr.mxu0 0.0
    %3364 = vmatpush1.msra.mxu0 0.0
    %3365 = vmatprep.subr.mxu0 0.0
    %3366 = vmatpush1.msra.mxu0 0.0
    %3367 = vmatprep.subr.mxu0 0.0
    %3368 = vmatpush1.msra.mxu0 0.0
    %3369 = vmatprep.subr.mxu0 0.0
    %3370 = vmatpush1.msra.mxu0 0.0
    %3371 = vmatprep.subr.mxu0 0.0
    %3372 = vmatpush1.msra.mxu0 0.0
    %3373 = vmatprep.subr.mxu0 0.0
    %3374 = vmatpush1.msra.mxu0 0.0
    %3375 = vmatprep.subr.mxu0 0.0
    %3376 = vmatpush1.msra.mxu0 0.0
    %3377 = vmatprep.subr.mxu0 0.0
    %3378 = vmatpush1.msra.mxu0 0.0
    %3379 = vmatprep.subr.mxu0 0.0
    %3380 = vmatpush1.msra.mxu0 %v3344
    %3381 = vmatprep.subr.mxu0 0.0
    %3382 = vmatpush2.msra.mxu0 0.0
    %3383 = vmatprep.subr.mxu0 0.0
    %3384 = vmatpush2.msra.mxu0 0.0
    %3385 = vmatprep.subr.mxu0 0.0
    %3386 = vmatpush2.msra.mxu0 0.0
    %3387 = vmatprep.subr.mxu0 0.0
    %3388 = vmatpush2.msra.mxu0 0.0
    %3389 = vmatprep.subr.mxu0 0.0
    %3390 = vmatpush2.msra.mxu0 0.0
    %3391 = vmatprep.subr.mxu0 0.0
    %3392 = vmatpush2.msra.mxu0 0.0
    %3393 = vmatprep.subr.mxu0 0.0
    %3394 = vmatpush2.msra.mxu0 0.0
    %3395 = vmatprep.subr.mxu0 0.0
    %3396 = vmatpush2.msra.mxu0 0.0
    %3397 = vmatprep.subr.mxu0 0.0
    %3398 = vmatpush2.msra.mxu0 0.0
    %3399 = vmatprep.subr.mxu0 0.0
    %3400 = vmatpush2.msra.mxu0 0.0
    %3401 = vmatprep.subr.mxu0 0.0
    %3402 = vmatpush2.msra.mxu0 0.0
    %3403 = vmatprep.subr.mxu0 0.0
    %3404 = vmatpush2.msra.mxu0 0.0
    %3405 = vmatprep.subr.mxu0 0.0
    %3406 = vmatpush2.msra.mxu0 0.0
    %3407 = vmatprep.subr.mxu0 0.0
    %3408 = vmatpush2.msra.mxu0 0.0
    %3409 = vmatprep.subr.mxu0 0.0
    %3410 = vmatpush2.msra.mxu0 0.0
    %3411 = vmatprep.subr.mxu0 0.0
    %3412 = vmatpush2.msra.mxu0 0.0
    %3413 = vmatprep.mubr.f32.mxu0 0.0
    %3414 = vmatmul.mubr.f32.gmra.mxu0 %v3347
    %v3415 = vpop.f32.mrf.mxu0
    %v3416 = vadd.f32 0.0, %v3415
    %v3417 = vpop.f32.mrf.mxu0
    %3418 = vdwg.mxu0
    %3421 = vrot.lane.b32.xlu0 %v2672, 8
    %v3422 = vpop.permute.xlu0 %3421
    %3423 = vrot.lane.b32.xlu0 %v2748, 8
    %v3424 = vpop.permute.xlu0 %3423
    %3429 = vrot.lane.b32.xlu0 %v3006, 16
    %v3430 = vpop.permute.xlu0 %3429
    %3431 = vrot.lane.b32.xlu0 %v3082, 16
    %v3432 = vpop.permute.xlu0 %3431
    %3437 = vrot.lane.b32.xlu0 %v3340, 24
    %v3438 = vpop.permute.xlu0 %3437
    %3439 = vrot.lane.b32.xlu0 %v3416, 24
    %v3440 = vpop.permute.xlu0 %3439
    %v3443 = vsel %vm234, %v2341, %v3422
    %v3444 = vsel %vm234, %v2414, %v3424
    %v3445 = vsel %vm1583, %v3443, %v3430
    %v3446 = vsel %vm1583, %v3444, %v3432
    %v3447 = vsel %vm1586, %v3445, %v3438
    %v3448 = vsel %vm1586, %v3446, %v3440
    %s3449 = scalar_lea.vmem %s5, 32
    %v3450 = vld [vmem:[%s3449] sm:$0xff]
    %v3451 = vld [vmem:[%s3449 + $0x8] sm:$0xff]
    %v3452 = vld [vmem:[%s3449 + $0x10] sm:$0xff]
    %v3453 = vld [vmem:[%s3449 + $0x18] sm:$0xff]
    %s3454 = scalar_lea.vmem %s6, 1
    %v3455 = vld [vmem:[%s3454] sm:$0x1]
    %v3457 = vlaneseq
    %v3458 = vshrl.u32 %v3457, 7
    %v3459 = vsub.s32 0, %v3458
    %v3460 = vrot.slane %v3455, %v3459
    %v3463 = vsel %vm79, %v3447, 0
    %v3466 = vsel %vm79, %v3448, 0
    %3468 = vmatprep.subr.mxu0 0.0
    %3469 = vmatpush1.msra.mxu0 0.0
    %3470 = vmatprep.subr.mxu0 0.0
    %3471 = vmatpush1.msra.mxu0 0.0
    %3472 = vmatprep.subr.mxu0 0.0
    %3473 = vmatpush1.msra.mxu0 0.0
    %3474 = vmatprep.subr.mxu0 0.0
    %3475 = vmatpush1.msra.mxu0 0.0
    %3476 = vmatprep.subr.mxu0 0.0
    %3477 = vmatpush1.msra.mxu0 0.0
    %3478 = vmatprep.subr.mxu0 0.0
    %3479 = vmatpush1.msra.mxu0 0.0
    %3480 = vmatprep.subr.mxu0 0.0
    %3481 = vmatpush1.msra.mxu0 0.0
    %3482 = vmatprep.subr.mxu0 0.0
    %3483 = vmatpush1.msra.mxu0 0.0
    %3484 = vmatprep.subr.mxu0 0.0
    %3485 = vmatpush1.msra.mxu0 0.0
    %3486 = vmatprep.subr.mxu0 0.0
    %3487 = vmatpush1.msra.mxu0 0.0
    %3488 = vmatprep.subr.mxu0 0.0
    %3489 = vmatpush1.msra.mxu0 0.0
    %3490 = vmatprep.subr.mxu0 0.0
    %3491 = vmatpush1.msra.mxu0 0.0
    %3492 = vmatprep.subr.mxu0 0.0
    %3493 = vmatpush1.msra.mxu0 %v3453
    %3494 = vmatprep.subr.mxu0 0.0
    %3495 = vmatpush1.msra.mxu0 %v3452
    %3496 = vmatprep.subr.mxu0 0.0
    %3497 = vmatpush1.msra.mxu0 %v3451
    %3498 = vmatprep.subr.mxu0 0.0
    %3499 = vmatpush1.msra.mxu0 %v3450
    %3500 = vmatprep.subr.mxu0 0.0
    %3501 = vmatpush2.msra.mxu0 0.0
    %3502 = vmatprep.subr.mxu0 0.0
    %3503 = vmatpush2.msra.mxu0 0.0
    %3504 = vmatprep.subr.mxu0 0.0
    %3505 = vmatpush2.msra.mxu0 0.0
    %3506 = vmatprep.subr.mxu0 0.0
    %3507 = vmatpush2.msra.mxu0 0.0
    %3508 = vmatprep.subr.mxu0 0.0
    %3509 = vmatpush2.msra.mxu0 0.0
    %3510 = vmatprep.subr.mxu0 0.0
    %3511 = vmatpush2.msra.mxu0 0.0
    %3512 = vmatprep.subr.mxu0 0.0
    %3513 = vmatpush2.msra.mxu0 0.0
    %3514 = vmatprep.subr.mxu0 0.0
    %3515 = vmatpush2.msra.mxu0 0.0
    %3516 = vmatprep.subr.mxu0 0.0
    %3517 = vmatpush2.msra.mxu0 0.0
    %3518 = vmatprep.subr.mxu0 0.0
    %3519 = vmatpush2.msra.mxu0 0.0
    %3520 = vmatprep.subr.mxu0 0.0
    %3521 = vmatpush2.msra.mxu0 0.0
    %3522 = vmatprep.subr.mxu0 0.0
    %3523 = vmatpush2.msra.mxu0 0.0
    %3524 = vmatprep.subr.mxu0 0.0
    %3525 = vmatpush2.msra.mxu0 0.0
    %3526 = vmatprep.subr.mxu0 0.0
    %3527 = vmatpush2.msra.mxu0 0.0
    %3528 = vmatprep.subr.mxu0 0.0
    %3529 = vmatpush2.msra.mxu0 0.0
    %3530 = vmatprep.subr.mxu0 0.0
    %3531 = vmatpush2.msra.mxu0 0.0
    %3532 = vmatprep.mubr.f32.mxu0 0.0
    %3533 = vmatmul.mubr.f32.gmra.mxu0 %v3463
    %v3534 = vpop.f32.mrf.mxu0
    %v3535 = vadd.f32 %v3460, %v3534
    %v3536 = vpop.f32.mrf.mxu0
    %3537 = vmatprep.mubr.f32.mxu0 0.0
    %3538 = vmatmul.mubr.f32.gmra.mxu0 %v3466
    %v3539 = vpop.f32.mrf.mxu0
    %v3540 = vadd.f32 %v3460, %v3539
    %v3541 = vpop.f32.mrf.mxu0
    %3542 = vdwg.mxu0
    %v3543 = vadd.f32 %v1935, %v3535
    %v3544 = vadd.f32 %v1936, %v3540
    %s3545 = scalar_lea.vmem %s7, 1
    %v3546 = vld [vmem:[%s3545] sm:$0x1]
    %s3547 = scalar_lea.vmem %s8, 1
    %v3548 = vld [vmem:[%s3547] sm:$0x1]
    %v3549 = vsel %vm79, %v3543, 0.0
    %3550 = vadd.xlane.f32.xlu0 %v3549
    %v3551 = vpop.xlane.xlu0 %3550
    %v3552 = vsel %vm79, %v3544, 0.0
    %3553 = vadd.xlane.f32.xlu0 %v3552
    %v3554 = vpop.xlane.xlu0 %3553
    %v3555 = vmul.f32 %v3551, %v86
    %v3556 = vmul.f32 %v3554, %v86
    %v3557 = vsub.f32 %v3543, %v3555
    %v3558 = vsub.f32 %v3544, %v3556
    %v3559 = vmul.f32 %v3557, %v3557
    %v3560 = vmul.f32 %v3558, %v3558
    %v3561 = vsel %vm79, %v3559, 0.0
    %3562 = vadd.xlane.f32.xlu0 %v3561
    %v3563 = vpop.xlane.xlu0 %3562
    %v3564 = vsel %vm79, %v3560, 0.0
    %3565 = vadd.xlane.f32.xlu0 %v3564
    %v3566 = vpop.xlane.xlu0 %3565
    %v3567 = vmul.f32 %v3563, %v86
    %v3568 = vmul.f32 %v3566, %v86
    %v3569 = vadd.f32 %v3567, 1e-05
    %v3570 = vadd.f32 %v3568, 1e-05
    %v3571 = vrsqrt.pop %v3569
    %v3572 = vrsqrt.pop %v3570
    %v3573 = vmul.f32 %v3557, %v3571
    %v3574 = vmul.f32 %v3558, %v3572
    %v3576 = vlaneseq
    %v3577 = vshrl.u32 %v3576, 7
    %v3578 = vsub.s32 0, %v3577
    %v3579 = vrot.slane %v3546, %v3578
    %v3581 = vmul.f32 %v3573, %v3579
    %v3582 = vmul.f32 %v3574, %v3579
    %v3584 = vlaneseq
    %v3585 = vshrl.u32 %v3584, 7
    %v3586 = vsub.s32 0, %v3585
    %v3587 = vrot.slane %v3548, %v3586
    %v3589 = vadd.f32 %v3581, %v3587
    %v3590 = vadd.f32 %v3582, %v3587
    %s3591 = scalar_lea.vmem %s9, 32
    %v3592 = vld [vmem:[%s3591] sm:$0xff]
    %v3593 = vld [vmem:[%s3591 + $0x8] sm:$0xff]
    %v3594 = vld [vmem:[%s3591 + $0x10] sm:$0xff]
    %v3595 = vld [vmem:[%s3591 + $0x18] sm:$0xff]
    %s3596 = scalar_lea.vmem %s10, 1
    %v3597 = vld [vmem:[%s3596] sm:$0x1]
    %v3599 = vlaneseq
    %v3600 = vshrl.u32 %v3599, 7
    %v3601 = vsub.s32 0, %v3600
    %v3602 = vrot.slane %v3597, %v3601
    %v3605 = vsel %vm79, %v3589, 0
    %v3608 = vsel %vm79, %v3590, 0
    %3610 = vmatprep.subr.mxu0 0.0
    %3611 = vmatpush1.msra.mxu0 0.0
    %3612 = vmatprep.subr.mxu0 0.0
    %3613 = vmatpush1.msra.mxu0 0.0
    %3614 = vmatprep.subr.mxu0 0.0
    %3615 = vmatpush1.msra.mxu0 0.0
    %3616 = vmatprep.subr.mxu0 0.0
    %3617 = vmatpush1.msra.mxu0 0.0
    %3618 = vmatprep.subr.mxu0 0.0
    %3619 = vmatpush1.msra.mxu0 0.0
    %3620 = vmatprep.subr.mxu0 0.0
    %3621 = vmatpush1.msra.mxu0 0.0
    %3622 = vmatprep.subr.mxu0 0.0
    %3623 = vmatpush1.msra.mxu0 0.0
    %3624 = vmatprep.subr.mxu0 0.0
    %3625 = vmatpush1.msra.mxu0 0.0
    %3626 = vmatprep.subr.mxu0 0.0
    %3627 = vmatpush1.msra.mxu0 0.0
    %3628 = vmatprep.subr.mxu0 0.0
    %3629 = vmatpush1.msra.mxu0 0.0
    %3630 = vmatprep.subr.mxu0 0.0
    %3631 = vmatpush1.msra.mxu0 0.0
    %3632 = vmatprep.subr.mxu0 0.0
    %3633 = vmatpush1.msra.mxu0 0.0
    %3634 = vmatprep.subr.mxu0 0.0
    %3635 = vmatpush1.msra.mxu0 %v3595
    %3636 = vmatprep.subr.mxu0 0.0
    %3637 = vmatpush1.msra.mxu0 %v3594
    %3638 = vmatprep.subr.mxu0 0.0
    %3639 = vmatpush1.msra.mxu0 %v3593
    %3640 = vmatprep.subr.mxu0 0.0
    %3641 = vmatpush1.msra.mxu0 %v3592
    %3642 = vmatprep.subr.mxu0 0.0
    %3643 = vmatpush2.msra.mxu0 0.0
    %3644 = vmatprep.subr.mxu0 0.0
    %3645 = vmatpush2.msra.mxu0 0.0
    %3646 = vmatprep.subr.mxu0 0.0
    %3647 = vmatpush2.msra.mxu0 0.0
    %3648 = vmatprep.subr.mxu0 0.0
    %3649 = vmatpush2.msra.mxu0 0.0
    %3650 = vmatprep.subr.mxu0 0.0
    %3651 = vmatpush2.msra.mxu0 0.0
    %3652 = vmatprep.subr.mxu0 0.0
    %3653 = vmatpush2.msra.mxu0 0.0
    %3654 = vmatprep.subr.mxu0 0.0
    %3655 = vmatpush2.msra.mxu0 0.0
    %3656 = vmatprep.subr.mxu0 0.0
    %3657 = vmatpush2.msra.mxu0 0.0
    %3658 = vmatprep.subr.mxu0 0.0
    %3659 = vmatpush2.msra.mxu0 0.0
    %3660 = vmatprep.subr.mxu0 0.0
    %3661 = vmatpush2.msra.mxu0 0.0
    %3662 = vmatprep.subr.mxu0 0.0
    %3663 = vmatpush2.msra.mxu0 0.0
    %3664 = vmatprep.subr.mxu0 0.0
    %3665 = vmatpush2.msra.mxu0 0.0
    %3666 = vmatprep.subr.mxu0 0.0
    %3667 = vmatpush2.msra.mxu0 0.0
    %3668 = vmatprep.subr.mxu0 0.0
    %3669 = vmatpush2.msra.mxu0 0.0
    %3670 = vmatprep.subr.mxu0 0.0
    %3671 = vmatpush2.msra.mxu0 0.0
    %3672 = vmatprep.subr.mxu0 0.0
    %3673 = vmatpush2.msra.mxu0 0.0
    %3674 = vmatprep.mubr.f32.mxu0 0.0
    %3675 = vmatmul.mubr.f32.gmra.mxu0 %v3605
    %v3676 = vpop.f32.mrf.mxu0
    %v3677 = vadd.f32 %v3602, %v3676
    %v3678 = vpop.f32.mrf.mxu0
    %3679 = vmatprep.mubr.f32.mxu0 0.0
    %3680 = vmatmul.mubr.f32.gmra.mxu0 %v3608
    %v3681 = vpop.f32.mrf.mxu0
    %v3682 = vadd.f32 %v3602, %v3681
    %v3683 = vpop.f32.mrf.mxu0
    %3684 = vdwg.mxu0
    %v3685 = vmul.f32 %v3677, 0.5
    %v3686 = vmul.f32 %v3682, 0.5
    %v3687 = vmul.f32 %v3677, 0.044715
    %v3688 = vmul.f32 %v3682, 0.044715
    %v3689 = vmul.f32 %v3687, %v3677
    %v3690 = vmul.f32 %v3688, %v3682
    %v3691 = vmul.f32 %v3689, %v3677
    %v3692 = vmul.f32 %v3690, %v3682
    %v3693 = vadd.f32 %v3677, %v3691
    %v3694 = vadd.f32 %v3682, %v3692
    %v3695 = vmul.f32 %v3693, 0.7978846
    %v3696 = vmul.f32 %v3694, 0.7978846
    %v3697 = vtanh.pop %v3695
    %v3698 = vtanh.pop %v3696
    %v3699 = vadd.f32 %v3697, 1.0
    %v3700 = vadd.f32 %v3698, 1.0
    %v3701 = vmul.f32 %v3685, %v3699
    %v3702 = vmul.f32 %v3686, %v3700
    %s3703 = scalar_lea.vmem [#allocation2], 128
    %v3704 = vld [vmem:[%s3703] sm:$0xff]
    %v3705 = vld [vmem:[%s3703 + $0x8] sm:$0xff]
    %v3706 = vld [vmem:[%s3703 + $0x10] sm:$0xff]
    %v3707 = vld [vmem:[%s3703 + $0x18] sm:$0xff]
    %v3708 = vld [vmem:[%s3703 + $0x20] sm:$0xff]
    %v3709 = vld [vmem:[%s3703 + $0x28] sm:$0xff]
    %v3710 = vld [vmem:[%s3703 + $0x30] sm:$0xff]
    %v3711 = vld [vmem:[%s3703 + $0x38] sm:$0xff]
    %v3712 = vld [vmem:[%s3703 + $0x40] sm:$0xff]
    %v3713 = vld [vmem:[%s3703 + $0x48] sm:$0xff]
    %v3714 = vld [vmem:[%s3703 + $0x50] sm:$0xff]
    %v3715 = vld [vmem:[%s3703 + $0x58] sm:$0xff]
    %v3716 = vld [vmem:[%s3703 + $0x60] sm:$0xff]
    %v3717 = vld [vmem:[%s3703 + $0x68] sm:$0xff]
    %v3718 = vld [vmem:[%s3703 + $0x70] sm:$0xff]
    %v3719 = vld [vmem:[%s3703 + $0x78] sm:$0xff]
    %s3720 = scalar_lea.vmem %s12, 1
    %v3721 = vld [vmem:[%s3720] sm:$0x1]
    %v3723 = vlaneseq
    %v3724 = vshrl.u32 %v3723, 7
    %v3725 = vsub.s32 0, %v3724
    %v3726 = vrot.slane %v3721, %v3725
    %3728 = vmatprep.subr.mxu0 0.0
    %3729 = vmatpush1.msra.mxu0 %v3719
    %3730 = vmatprep.subr.mxu0 0.0
    %3731 = vmatpush1.msra.mxu0 %v3718
    %3732 = vmatprep.subr.mxu0 0.0
    %3733 = vmatpush1.msra.mxu0 %v3717
    %3734 = vmatprep.subr.mxu0 0.0
    %3735 = vmatpush1.msra.mxu0 %v3716
    %3736 = vmatprep.subr.mxu0 0.0
    %3737 = vmatpush1.msra.mxu0 %v3715
    %3738 = vmatprep.subr.mxu0 0.0
    %3739 = vmatpush1.msra.mxu0 %v3714
    %3740 = vmatprep.subr.mxu0 0.0
    %3741 = vmatpush1.msra.mxu0 %v3713
    %3742 = vmatprep.subr.mxu0 0.0
    %3743 = vmatpush1.msra.mxu0 %v3712
    %3744 = vmatprep.subr.mxu0 0.0
    %3745 = vmatpush1.msra.mxu0 %v3711
    %3746 = vmatprep.subr.mxu0 0.0
    %3747 = vmatpush1.msra.mxu0 %v3710
    %3748 = vmatprep.subr.mxu0 0.0
    %3749 = vmatpush1.msra.mxu0 %v3709
    %3750 = vmatprep.subr.mxu0 0.0
    %3751 = vmatpush1.msra.mxu0 %v3708
    %3752 = vmatprep.subr.mxu0 0.0
    %3753 = vmatpush1.msra.mxu0 %v3707
    %3754 = vmatprep.subr.mxu0 0.0
    %3755 = vmatpush1.msra.mxu0 %v3706
    %3756 = vmatprep.subr.mxu0 0.0
    %3757 = vmatpush1.msra.mxu0 %v3705
    %3758 = vmatprep.subr.mxu0 0.0
    %3759 = vmatpush1.msra.mxu0 %v3704
    %3760 = vmatprep.subr.mxu0 0.0
    %3761 = vmatpush2.msra.mxu0 0.0
    %3762 = vmatprep.subr.mxu0 0.0
    %3763 = vmatpush2.msra.mxu0 0.0
    %3764 = vmatprep.subr.mxu0 0.0
    %3765 = vmatpush2.msra.mxu0 0.0
    %3766 = vmatprep.subr.mxu0 0.0
    %3767 = vmatpush2.msra.mxu0 0.0
    %3768 = vmatprep.subr.mxu0 0.0
    %3769 = vmatpush2.msra.mxu0 0.0
    %3770 = vmatprep.subr.mxu0 0.0
    %3771 = vmatpush2.msra.mxu0 0.0
    %3772 = vmatprep.subr.mxu0 0.0
    %3773 = vmatpush2.msra.mxu0 0.0
    %3774 = vmatprep.subr.mxu0 0.0
    %3775 = vmatpush2.msra.mxu0 0.0
    %3776 = vmatprep.subr.mxu0 0.0
    %3777 = vmatpush2.msra.mxu0 0.0
    %3778 = vmatprep.subr.mxu0 0.0
    %3779 = vmatpush2.msra.mxu0 0.0
    %3780 = vmatprep.subr.mxu0 0.0
    %3781 = vmatpush2.msra.mxu0 0.0
    %3782 = vmatprep.subr.mxu0 0.0
    %3783 = vmatpush2.msra.mxu0 0.0
    %3784 = vmatprep.subr.mxu0 0.0
    %3785 = vmatpush2.msra.mxu0 0.0
    %3786 = vmatprep.subr.mxu0 0.0
    %3787 = vmatpush2.msra.mxu0 0.0
    %3788 = vmatprep.subr.mxu0 0.0
    %3789 = vmatpush2.msra.mxu0 0.0
    %3790 = vmatprep.subr.mxu0 0.0
    %3791 = vmatpush2.msra.mxu0 0.0
    %3792 = vmatprep.mubr.f32.mxu0 0.0
    %3793 = vmatmul.mubr.f32.gmra.mxu0 %v3701
    %v3794 = vpop.f32.mrf.mxu0
    %v3795 = vadd.f32 %v3726, %v3794
    %v3796 = vpop.f32.mrf.mxu0
    %3797 = vmatprep.mubr.f32.mxu0 0.0
    %3798 = vmatmul.mubr.f32.gmra.mxu0 %v3702
    %v3799 = vpop.f32.mrf.mxu0
    %v3800 = vadd.f32 %v3726, %v3799
    %v3801 = vpop.f32.mrf.mxu0
    %3802 = vdwg.mxu0
    %v3803 = vadd.f32 %v3543, %v3795
    %v3804 = vadd.f32 %v3544, %v3800
    %v3805 = vld [vmem:[%s13] sm:$0x1]
    %v3806 = vld [vmem:[%s14] sm:$0x1]
    %v3807 = vsel %vm79, %v3803, 0.0
    %3808 = vadd.xlane.f32.xlu0 %v3807
    %v3809 = vpop.xlane.xlu0 %3808
    %v3810 = vsel %vm79, %v3804, 0.0
    %3811 = vadd.xlane.f32.xlu0 %v3810
    %v3812 = vpop.xlane.xlu0 %3811
    %v3813 = vmul.f32 %v3809, %v86
    %v3814 = vmul.f32 %v3812, %v86
    %v3815 = vsub.f32 %v3803, %v3813
    %v3816 = vsub.f32 %v3804, %v3814
    %v3817 = vmul.f32 %v3815, %v3815
    %v3818 = vmul.f32 %v3816, %v3816
    %v3819 = vsel %vm79, %v3817, 0.0
    %3820 = vadd.xlane.f32.xlu0 %v3819
    %v3821 = vpop.xlane.xlu0 %3820
    %v3822 = vsel %vm79, %v3818, 0.0
    %3823 = vadd.xlane.f32.xlu0 %v3822
    %v3824 = vpop.xlane.xlu0 %3823
    %v3825 = vmul.f32 %v3821, %v86
    %v3826 = vmul.f32 %v3824, %v86
    %v3827 = vadd.f32 %v3825, 1e-05
    %v3828 = vadd.f32 %v3826, 1e-05
    %v3829 = vrsqrt.pop %v3827
    %v3830 = vrsqrt.pop %v3828
    %v3831 = vmul.f32 %v3815, %v3829
    %v3832 = vmul.f32 %v3816, %v3830
    %v3834 = vlaneseq
    %v3835 = vshrl.u32 %v3834, 7
    %v3836 = vsub.s32 0, %v3835
    %v3837 = vrot.slane %v3805, %v3836
    %v3839 = vmul.f32 %v3831, %v3837
    %v3840 = vmul.f32 %v3832, %v3837
    %v3842 = vlaneseq
    %v3843 = vshrl.u32 %v3842, 7
    %v3844 = vsub.s32 0, %v3843
    %v3845 = vrot.slane %v3806, %v3844
    %v3847 = vadd.f32 %v3839, %v3845
    %v3848 = vadd.f32 %v3840, %v3845
    %v3849 = vld [vmem:[%s15] sm:$0xff]
    %v3850 = vld [vmem:[%s15 + $0x8] sm:$0xff]
    %v3851 = vld [vmem:[%s15 + $0x10] sm:$0xff]
    %v3852 = vld [vmem:[%s15 + $0x18] sm:$0xff]
    %v3854 = vsel %vm79, %v3847, 0
    %v3857 = vsel %vm79, %v3848, 0
    %3859 = vmatprep.subr.mxu0 0.0
    %3860 = vmatpush1.msra.mxu0 0.0
    %3861 = vmatprep.subr.mxu0 0.0
    %3862 = vmatpush1.msra.mxu0 0.0
    %3863 = vmatprep.subr.mxu0 0.0
    %3864 = vmatpush1.msra.mxu0 0.0
    %3865 = vmatprep.subr.mxu0 0.0
    %3866 = vmatpush1.msra.mxu0 0.0
    %3867 = vmatprep.subr.mxu0 0.0
    %3868 = vmatpush1.msra.mxu0 0.0
    %3869 = vmatprep.subr.mxu0 0.0
    %3870 = vmatpush1.msra.mxu0 0.0
    %3871 = vmatprep.subr.mxu0 0.0
    %3872 = vmatpush1.msra.mxu0 0.0
    %3873 = vmatprep.subr.mxu0 0.0
    %3874 = vmatpush1.msra.mxu0 0.0
    %3875 = vmatprep.subr.mxu0 0.0
    %3876 = vmatpush1.msra.mxu0 0.0
    %3877 = vmatprep.subr.mxu0 0.0
    %3878 = vmatpush1.msra.mxu0 0.0
    %3879 = vmatprep.subr.mxu0 0.0
    %3880 = vmatpush1.msra.mxu0 0.0
    %3881 = vmatprep.subr.mxu0 0.0
    %3882 = vmatpush1.msra.mxu0 0.0
    %3883 = vmatprep.subr.mxu0 0.0
    %3884 = vmatpush1.msra.mxu0 %v3852
    %3885 = vmatprep.subr.mxu0 0.0
    %3886 = vmatpush1.msra.mxu0 %v3851
    %3887 = vmatprep.subr.mxu0 0.0
    %3888 = vmatpush1.msra.mxu0 %v3850
    %3889 = vmatprep.subr.mxu0 0.0
    %3890 = vmatpush1.msra.mxu0 %v3849
    %3891 = vmatprep.subr.mxu0 0.0
    %3892 = vmatpush2.msra.mxu0 0.0
    %3893 = vmatprep.subr.mxu0 0.0
    %3894 = vmatpush2.msra.mxu0 0.0
    %3895 = vmatprep.subr.mxu0 0.0
    %3896 = vmatpush2.msra.mxu0 0.0
    %3897 = vmatprep.subr.mxu0 0.0
    %3898 = vmatpush2.msra.mxu0 0.0
    %3899 = vmatprep.subr.mxu0 0.0
    %3900 = vmatpush2.msra.mxu0 0.0
    %3901 = vmatprep.subr.mxu0 0.0
    %3902 = vmatpush2.msra.mxu0 0.0
    %3903 = vmatprep.subr.mxu0 0.0
    %3904 = vmatpush2.msra.mxu0 0.0
    %3905 = vmatprep.subr.mxu0 0.0
    %3906 = vmatpush2.msra.mxu0 0.0
    %3907 = vmatprep.subr.mxu0 0.0
    %3908 = vmatpush2.msra.mxu0 0.0
    %3909 = vmatprep.subr.mxu0 0.0
    %3910 = vmatpush2.msra.mxu0 0.0
    %3911 = vmatprep.subr.mxu0 0.0
    %3912 = vmatpush2.msra.mxu0 0.0
    %3913 = vmatprep.subr.mxu0 0.0
    %3914 = vmatpush2.msra.mxu0 0.0
    %3915 = vmatprep.subr.mxu0 0.0
    %3916 = vmatpush2.msra.mxu0 0.0
    %3917 = vmatprep.subr.mxu0 0.0
    %3918 = vmatpush2.msra.mxu0 0.0
    %3919 = vmatprep.subr.mxu0 0.0
    %3920 = vmatpush2.msra.mxu0 0.0
    %3921 = vmatprep.subr.mxu0 0.0
    %3922 = vmatpush2.msra.mxu0 0.0
    %3923 = vmatprep.mubr.f32.mxu0 0.0
    %3924 = vmatmul.mubr.f32.gmra.mxu0 %v3854
    %v3925 = vpop.f32.mrf.mxu0
    %v3926 = vadd.f32 0.0, %v3925
    %v3927 = vpop.f32.mrf.mxu0
    %3928 = vmatprep.mubr.f32.mxu0 0.0
    %3929 = vmatmul.mubr.f32.gmra.mxu0 %v3857
    %v3930 = vpop.f32.mrf.mxu0
    %v3931 = vadd.f32 0.0, %v3930
    %v3932 = vpop.f32.mrf.mxu0
    %3933 = vdwg.mxu0
    %vm3934 = vcmask 523264
    %3935 = vst.msk [vmem:[#allocation5] sm:$0xff] %vm3934, %v3926
    %3936 = vst.msk [vmem:[#allocation5 + $0x8] sm:$0xff] %vm3934, %v3931
    // Predicated region
    $region70: #{encoder.1} parent=1 // pred_check
      _
    $region71: #{encoder.1} parent=1 // pred_check_branch
      %3938 = sbr.rel (0) target = $region73
    $region72: #{encoder.1} parent=1 // pred_region
      %s3940 = ssub.s32 256, 256
      %3941 = vsyncadd [#allocation4], %s3940
      %s3942 = sshll.u32 [#allocation5], 4
      %s3943 = int_to_ptr.vmem [resolvable:$true] %s3942
      %3948 = dma.vmem_to_hbm [thread:$0]  %s3943, 256, %s16, [#allocation4], 128, 128, 8
    $region73: #{encoder.1} parent=1 // pred_fallthru
      _
    // Predicated region
    $region74: #{encoder.1} parent=1 // pred_check
      _
    $region75: #{encoder.1} parent=1 // pred_check_branch
      %3950 = sbr.rel (0) target = $region77
    $region76: #{encoder.1} parent=1 // pred_region
      _
    $region77: #{encoder.1} parent=1 // pred_fallthru
      _
    // Predicated region
    $region78: #{encoder.1} parent=1 // pred_check
      _
    $region79: #{encoder.1} parent=1 // pred_check_branch
      %3952 = sbr.rel (0) target = $region81
    $region80: #{encoder.1} parent=1 // pred_region
      %3953 = dma.done [#allocation4], 256
    $region81: #{encoder.1} parent=1 // pred_fallthru
      _
    // Predicated region
    $region82: #{encoder.1} parent=1 // pred_check
      _
    $region83: #{encoder.1} parent=1 // pred_check_branch
      %3955 = sbr.rel (0) target = $region85
    $region84: #{encoder.1} parent=1 // pred_region
      _
    $region85: #{encoder.1} parent=1 // pred_fallthru
      _
    %3956 = vsyncpa [#allocation3], 1
    %3957 = vsyncpa [#allocation4], 1

</llo_original>
